<compile_context>
chip_gen: v5e
topology: v5e:2x2
jax: 0.10.0
libtpu: 0.0.40
codegen_flags: <defaults>
</compile_context>

<pallas_src>
import math

import jax
import jax.numpy as jnp
from jax.experimental import pallas as pl
from jax.experimental.pallas import tpu as pltpu

# ---- small, module-consistent config ----
N_HEAD = 4
D_MODEL = 32
D_HEAD = 8
D_INNER = 64
H = N_HEAD * D_HEAD          # n_head * d_head
EPS = 1e-5
SCALE = 1.0 / math.sqrt(D_HEAD)

# batched matmul dimension_numbers (batch dim 0 on both operands)
_DN_RIGHT = (((2,), (1,)), ((0,), (0,)))   # (G,M,K) x (G,K,N) -> (G,M,N)
_DN_LAST = (((2,), (2,)), ((0,), (0,)))    # (G,M,K) x (G,N,K) -> (G,M,N)


# --------------------------------------------------------------------------
# Fused decoder-layer kernel (single invocation, everything VMEM-resident)
# --------------------------------------------------------------------------
def _decoder_layer_kernel(xg_ref, encg_ref, rg_ref, xres_ref,
                          wq_ref, wk_ref, wv_ref, wr_ref,
                          rwb_ref, rrb_ref, wo_ref,
                          g1_ref, be1_ref, w1_ref, b1_ref, w2_ref, b2_ref,
                          g2_ref, be2_ref,
                          out_ref,
                          pad_ref, score_ref):
    G, Q, Dm = xg_ref.shape          # G = B * N_HEAD
    K = encg_ref.shape[1]
    R = rg_ref.shape[1]
    B = G // N_HEAD
    f32 = jnp.float32

    xg = xg_ref[...]                 # (G, Q, Dm)  decoder input, replicated per head
    encg = encg_ref[...]             # (G, K, Dm)  encoder hidden, replicated per head
    rg = rg_ref[...]                 # (G, R, Dm)  rel-pos embedding, replicated

    # head-batched projections (no lane-offset slicing of a fused kv output)
    q = jax.lax.dot_general(xg, wq_ref[...], _DN_RIGHT, preferred_element_type=f32)    # (G,Q,Dh)
    k = jax.lax.dot_general(encg, wk_ref[...], _DN_RIGHT, preferred_element_type=f32)  # (G,K,Dh)
    v = jax.lax.dot_general(encg, wv_ref[...], _DN_RIGHT, preferred_element_type=f32)  # (G,K,Dh)
    rk = jax.lax.dot_general(rg, wr_ref[...], _DN_RIGHT, preferred_element_type=f32)   # (G,R,Dh)

    rw_q = q + rwb_ref[...]          # (G,Q,Dh) + (G,1,Dh)
    rr_q = q + rrb_ref[...]

    ac = jax.lax.dot_general(rw_q, k, _DN_LAST, preferred_element_type=f32)   # (G,Q,K)
    bd = jax.lax.dot_general(rr_q, rk, _DN_LAST, preferred_element_type=f32)  # (G,Q,R)

    # ---- exact _rel_shift, in-kernel, via a flat zero-padded VMEM scratch ----
    # padflat[i*(R+1)] = 0 ; padflat[i*(R+1)+1+j] = BD[i, j]
    # shifted[i, j]    = padflat[Q + i*R + j]        (the PyTorch pad+view trick)
    pad_ref[...] = jnp.zeros_like(pad_ref)
    for i in range(Q):
        pad_ref[:, i * (R + 1) + 1: i * (R + 1) + 1 + R] = bd[:, i, :]
    for i in range(Q):
        score_ref[:, i, :] = ac[:, i, :] + pad_ref[:, Q + i * R: Q + i * R + R]

    # ---- one softmax over keys for all (batch, head) slices at once ----
    s = score_ref[...] * SCALE
    s = s - jnp.max(s, axis=-1, keepdims=True)
    e = jnp.exp(s)
    p = e / jnp.sum(e, axis=-1, keepdims=True)                                 # (G,Q,K)

    av = jax.lax.dot_general(p, v, _DN_RIGHT, preferred_element_type=f32)      # (G,Q,Dh)
    og = jax.lax.dot_general(av, wo_ref[...], _DN_RIGHT, preferred_element_type=f32)  # (G,Q,Dm)

    # o_net is folded per-head into wo_ref; summing over the head component of G
    # completes attn_vec @ Wo for each batch element.
    og4 = og.reshape(B, N_HEAD, Q, Dm)
    attn = og4[:, 0]
    for n in range(1, N_HEAD):
        attn = attn + og4[:, n]
    attn = attn.reshape(B * Q, Dm)                                             # (BQ, Dm)

    # residual + LayerNorm (attention, post-lnorm)
    x = xres_ref[...] + attn
    mu = jnp.mean(x, axis=-1, keepdims=True)
    var = jnp.mean(jnp.square(x - mu), axis=-1, keepdims=True)
    x = (x - mu) * jax.lax.rsqrt(var + EPS) * g1_ref[...] + be1_ref[...]

    # PositionwiseFF (post-lnorm variant)
    h = jnp.dot(x, w1_ref[...], preferred_element_type=f32) + b1_ref[...]
    h = jnp.maximum(h, 0.0)
    core = jnp.dot(h, w2_ref[...], preferred_element_type=f32) + b2_ref[...]

    y = x + core
    mu2 = jnp.mean(y, axis=-1, keepdims=True)
    var2 = jnp.mean(jnp.square(y - mu2), axis=-1, keepdims=True)
    out_ref[...] = (y - mu2) * jax.lax.rsqrt(var2 + EPS) * g2_ref[...] + be2_ref[...]


# --------------------------------------------------------------------------
# Wrapper (layout plumbing only; everything heavy happens inside the kernel)
# --------------------------------------------------------------------------
def decoder_layer_forward(params, dec_inp, rel_pos_emb, enc_hidden):
    Q, B, D = dec_inp.shape
    K = enc_hidden.shape[0]
    R = rel_pos_emb.shape[0]
    assert D == D_MODEL and K == R
    N, Dh = N_HEAD, D_HEAD
    G = B * N

    # batch-major activations
    x_b = jnp.transpose(dec_inp, (1, 0, 2))          # (B, Q, D)
    enc_b = jnp.transpose(enc_hidden, (1, 0, 2))     # (B, K, D)
    x_bq = x_b.reshape(B * Q, D)                     # residual path, dense slab

    # replicate activations over the fused (batch * head) axis  (g = b*N + n)
    xg = jnp.broadcast_to(x_b[:, None], (B, N, Q, D)).reshape(G, Q, D)
    encg = jnp.broadcast_to(enc_b[:, None], (B, N, K, D)).reshape(G, K, D)
    rg = jnp.broadcast_to(rel_pos_emb[None], (G, R, D))

    def per_head(w):                                 # (D, H) -> (G, D, Dh)
        return jnp.tile(jnp.transpose(w.reshape(D, N, Dh), (1, 0, 2)), (B, 1, 1))

    wq_g = per_head(params["Wq"])
    wk_g = per_head(params["Wkv"][:, :H])            # split kv weights wrapper-side
    wv_g = per_head(params["Wkv"][:, H:])
    wr_g = per_head(params["Wr"])
    wo_g = jnp.tile(params["Wo"].reshape(N, Dh, D), (B, 1, 1))   # (G, Dh, D)
    rwb_g = jnp.tile(params["rwb"], (B, 1)).reshape(G, 1, Dh)
    rrb_g = jnp.tile(params["rrb"], (B, 1)).reshape(G, 1, Dh)

    out_bq = pl.pallas_call(
        _decoder_layer_kernel,
        out_shape=jax.ShapeDtypeStruct((B * Q, D), jnp.float32),
        scratch_shapes=[
            pltpu.VMEM((G, Q * (R + 1)), jnp.float32),   # zero-padded flat BD (rel_shift)
            pltpu.VMEM((G, Q, K), jnp.float32),          # AC + shifted BD
        ],
    )(xg, encg, rg, x_bq,
      wq_g, wk_g, wv_g, wr_g, rwb_g, rrb_g, wo_g,
      params["g1"].reshape(1, D), params["be1"].reshape(1, D),
      params["W1"], params["b1"].reshape(1, D_INNER),
      params["W2"], params["b2"].reshape(1, D),
      params["g2"].reshape(1, D), params["be2"].reshape(1, D))

    return jnp.transpose(out_bq.reshape(B, Q, D), (1, 0, 2))     # back to (Q, B, D)


# --------------------------------------------------------------------------
# Pure-JAX reference (mirrors the PyTorch forward exactly) for validation
# --------------------------------------------------------------------------
def reference_forward(params, dec_inp, rel_pos_emb, enc_hidden):
    Q, B, D = dec_inp.shape
    K = enc_hidden.shape[0]
    R = rel_pos_emb.shape[0]

    q = dec_inp @ params["Wq"]                       # (Q, B, H)
    kv = enc_hidden @ params["Wkv"]                  # (K, B, 2H)
    k, v = kv[..., :H], kv[..., H:]
    rk = rel_pos_emb @ params["Wr"]                  # (R, H)

    qh = q.reshape(Q, B, N_HEAD, D_HEAD)
    kh = k.reshape(K, B, N_HEAD, D_HEAD)
    vh = v.reshape(K, B, N_HEAD, D_HEAD)
    rkh = rk.reshape(R, N_HEAD, D_HEAD)

    AC = jnp.einsum('ibnd,jbnd->ijbn', qh + params["rwb"], kh)
    BD = jnp.einsum('ibnd,jnd->ijbn', qh + params["rrb"], rkh)
    zp = jnp.zeros((Q, 1, B, N_HEAD), BD.dtype)
    BD = jnp.concatenate([zp, BD], axis=1).reshape(R + 1, Q, B, N_HEAD)
    BD = BD[1:].reshape(Q, R, B, N_HEAD)

    score = (AC + BD) * SCALE
    prob = jax.nn.softmax(score, axis=1)
    av = jnp.einsum('ijbn,jbnd->ibnd', prob, vh).reshape(Q, B, H)
    attn_out = av @ params["Wo"]

    def ln(x, g, b):
        mu = x.mean(-1, keepdims=True)
        var = ((x - mu) ** 2).mean(-1, keepdims=True)
        return (x - mu) / jnp.sqrt(var + EPS) * g + b

    x = ln(dec_inp + attn_out, params["g1"], params["be1"])
    core = jax.nn.relu(x @ params["W1"] + params["b1"]) @ params["W2"] + params["b2"]
    return ln(x + core, params["g2"], params["be2"])


# --------------------------------------------------------------------------
if __name__ == "__main__":
    key = jax.random.PRNGKey(0)
    keys = jax.random.split(key, 16)

    def nrm(k, shape, s=0.05):
        return (jax.random.normal(k, shape) * s).astype(jnp.float32)

    params = dict(
        Wq=nrm(keys[0], (D_MODEL, H)),
        Wkv=nrm(keys[1], (D_MODEL, 2 * H)),
        Wr=nrm(keys[2], (D_MODEL, H)),
        Wo=nrm(keys[3], (H, D_MODEL)),
        rwb=nrm(keys[4], (N_HEAD, D_HEAD)),
        rrb=nrm(keys[5], (N_HEAD, D_HEAD)),
        g1=jnp.ones((D_MODEL,), jnp.float32),
        be1=jnp.zeros((D_MODEL,), jnp.float32),
        W1=nrm(keys[6], (D_MODEL, D_INNER)),
        b1=nrm(keys[7], (D_INNER,)),
        W2=nrm(keys[8], (D_INNER, D_MODEL)),
        b2=nrm(keys[9], (D_MODEL,)),
        g2=jnp.ones((D_MODEL,), jnp.float32),
        be2=jnp.zeros((D_MODEL,), jnp.float32),
    )

    QLEN, BSZ, KLEN = 8, 2, 8
    dec_inp = jax.random.normal(keys[10], (QLEN, BSZ, D_MODEL), jnp.float32)
    enc_hidden = jax.random.normal(keys[11], (KLEN, BSZ, D_MODEL), jnp.float32)
    rel_pos_emb = jax.random.normal(keys[12], (KLEN, D_MODEL), jnp.float32)

    out = decoder_layer_forward(params, dec_inp, rel_pos_emb, enc_hidden)
    out = jax.block_until_ready(out)

    ref = reference_forward(params, dec_inp, rel_pos_emb, enc_hidden)
    assert out.shape == (QLEN, BSZ, D_MODEL)
    assert jnp.allclose(out, ref, atol=1e-3, rtol=1e-3), float(jnp.abs(out - ref).max())

    print("KERNEL_OK")
</pallas_src>

<mosaic_0001>
module attributes {stable_mosaic.version = 11 : i64} {
  func.func @_decoder_layer_kernel(%arg0: memref<8x8x32xf32, #tpu.memory_space<vmem>>, %arg1: memref<8x8x32xf32, #tpu.memory_space<vmem>>, %arg2: memref<8x8x32xf32, #tpu.memory_space<vmem>>, %arg3: memref<16x32xf32, #tpu.memory_space<vmem>>, %arg4: memref<8x32x8xf32, #tpu.memory_space<vmem>>, %arg5: memref<8x32x8xf32, #tpu.memory_space<vmem>>, %arg6: memref<8x32x8xf32, #tpu.memory_space<vmem>>, %arg7: memref<8x32x8xf32, #tpu.memory_space<vmem>>, %arg8: memref<8x1x8xf32, #tpu.memory_space<vmem>>, %arg9: memref<8x1x8xf32, #tpu.memory_space<vmem>>, %arg10: memref<8x8x32xf32, #tpu.memory_space<vmem>>, %arg11: memref<1x32xf32, #tpu.memory_space<vmem>>, %arg12: memref<1x32xf32, #tpu.memory_space<vmem>>, %arg13: memref<32x64xf32, #tpu.memory_space<vmem>>, %arg14: memref<1x64xf32, #tpu.memory_space<vmem>>, %arg15: memref<64x32xf32, #tpu.memory_space<vmem>>, %arg16: memref<1x32xf32, #tpu.memory_space<vmem>>, %arg17: memref<1x32xf32, #tpu.memory_space<vmem>>, %arg18: memref<1x32xf32, #tpu.memory_space<vmem>>, %arg19: memref<16x32xf32, #tpu.memory_space<vmem>>, %arg20: memref<8x72xf32, #tpu.memory_space<vmem>>, %arg21: memref<8x8x8xf32, #tpu.memory_space<vmem>>) attributes {dimension_semantics = [], scalar_prefetch = 0 : i64, scratch_operands = 2 : i64, tpu.core_type = #tpu.core_type<tc>} {
    %c0 = arith.constant 0 : index
    %c0_0 = arith.constant 0 : index
    %c0_1 = arith.constant 0 : index
    %0 = vector.load %arg0[%c0, %c0_0, %c0_1] : memref<8x8x32xf32, #tpu.memory_space<vmem>>, vector<8x8x32xf32>
    %c0_2 = arith.constant 0 : index
    %c0_3 = arith.constant 0 : index
    %c0_4 = arith.constant 0 : index
    %1 = vector.load %arg1[%c0_2, %c0_3, %c0_4] : memref<8x8x32xf32, #tpu.memory_space<vmem>>, vector<8x8x32xf32>
    %c0_5 = arith.constant 0 : index
    %c0_6 = arith.constant 0 : index
    %c0_7 = arith.constant 0 : index
    %2 = vector.load %arg2[%c0_5, %c0_6, %c0_7] : memref<8x8x32xf32, #tpu.memory_space<vmem>>, vector<8x8x32xf32>
    %c0_8 = arith.constant 0 : index
    %c0_9 = arith.constant 0 : index
    %c0_10 = arith.constant 0 : index
    %3 = vector.load %arg4[%c0_8, %c0_9, %c0_10] : memref<8x32x8xf32, #tpu.memory_space<vmem>>, vector<8x32x8xf32>
    %cst = arith.constant dense<0.000000e+00> : vector<8x8x8xf32>
    %4 = tpu.matmul %0, %3, %cst {dimension_numbers = #tpu.dot_dimension_numbers<[2], [1], [1], [2], [0, 0, 0, 1, 1, 2], [0], [0]>} : vector<8x8x32xf32>, vector<8x32x8xf32>, vector<8x8x8xf32> -> vector<8x8x8xf32>
    %c0_11 = arith.constant 0 : index
    %c0_12 = arith.constant 0 : index
    %c0_13 = arith.constant 0 : index
    %5 = vector.load %arg5[%c0_11, %c0_12, %c0_13] : memref<8x32x8xf32, #tpu.memory_space<vmem>>, vector<8x32x8xf32>
    %cst_14 = arith.constant dense<0.000000e+00> : vector<8x8x8xf32>
    %6 = tpu.matmul %1, %5, %cst_14 {dimension_numbers = #tpu.dot_dimension_numbers<[2], [1], [1], [2], [0, 0, 0, 1, 1, 2], [0], [0]>} : vector<8x8x32xf32>, vector<8x32x8xf32>, vector<8x8x8xf32> -> vector<8x8x8xf32>
    %c0_15 = arith.constant 0 : index
    %c0_16 = arith.constant 0 : index
    %c0_17 = arith.constant 0 : index
    %7 = vector.load %arg6[%c0_15, %c0_16, %c0_17] : memref<8x32x8xf32, #tpu.memory_space<vmem>>, vector<8x32x8xf32>
    %cst_18 = arith.constant dense<0.000000e+00> : vector<8x8x8xf32>
    %8 = tpu.matmul %1, %7, %cst_18 {dimension_numbers = #tpu.dot_dimension_numbers<[2], [1], [1], [2], [0, 0, 0, 1, 1, 2], [0], [0]>} : vector<8x8x32xf32>, vector<8x32x8xf32>, vector<8x8x8xf32> -> vector<8x8x8xf32>
    %c0_19 = arith.constant 0 : index
    %c0_20 = arith.constant 0 : index
    %c0_21 = arith.constant 0 : index
    %9 = vector.load %arg7[%c0_19, %c0_20, %c0_21] : memref<8x32x8xf32, #tpu.memory_space<vmem>>, vector<8x32x8xf32>
    %cst_22 = arith.constant dense<0.000000e+00> : vector<8x8x8xf32>
    %10 = tpu.matmul %2, %9, %cst_22 {dimension_numbers = #tpu.dot_dimension_numbers<[2], [1], [1], [2], [0, 0, 0, 1, 1, 2], [0], [0]>} : vector<8x8x32xf32>, vector<8x32x8xf32>, vector<8x8x8xf32> -> vector<8x8x8xf32>
    %c0_23 = arith.constant 0 : index
    %c0_24 = arith.constant 0 : index
    %c0_25 = arith.constant 0 : index
    %11 = vector.load %arg8[%c0_23, %c0_24, %c0_25] : memref<8x1x8xf32, #tpu.memory_space<vmem>>, vector<8x1x8xf32>
    %12 = vector.broadcast %11 : vector<8x1x8xf32> to vector<8x8x8xf32>
    %13 = arith.addf %4, %12 : vector<8x8x8xf32>
    %c0_26 = arith.constant 0 : index
    %c0_27 = arith.constant 0 : index
    %c0_28 = arith.constant 0 : index
    %14 = vector.load %arg9[%c0_26, %c0_27, %c0_28] : memref<8x1x8xf32, #tpu.memory_space<vmem>>, vector<8x1x8xf32>
    %15 = vector.broadcast %14 : vector<8x1x8xf32> to vector<8x8x8xf32>
    %16 = arith.addf %4, %15 : vector<8x8x8xf32>
    %cst_29 = arith.constant dense<0.000000e+00> : vector<8x8x8xf32>
    %17 = tpu.matmul %13, %6, %cst_29 {dimension_numbers = #tpu.dot_dimension_numbers<[2], [2], [1], [1], [0, 0, 0, 1, 1, 1], [0], [0]>} : vector<8x8x8xf32>, vector<8x8x8xf32>, vector<8x8x8xf32> -> vector<8x8x8xf32>
    %cst_30 = arith.constant dense<0.000000e+00> : vector<8x8x8xf32>
    %18 = tpu.matmul %16, %10, %cst_30 {dimension_numbers = #tpu.dot_dimension_numbers<[2], [2], [1], [1], [0, 0, 0, 1, 1, 1], [0], [0]>} : vector<8x8x8xf32>, vector<8x8x8xf32>, vector<8x8x8xf32> -> vector<8x8x8xf32>
    %cst_31 = arith.constant 0.000000e+00 : f32
    %19 = vector.broadcast %cst_31 : f32 to vector<8x72xf32>
    %c0_32 = arith.constant 0 : index
    %c0_33 = arith.constant 0 : index
    %20 = vector.load %arg20[%c0_32, %c0_33] : memref<8x72xf32, #tpu.memory_space<vmem>>, vector<8x72xf32>
    tpu.vector_store %arg20[%c0_32, %c0_33], %19 {strides = array<i32>} : memref<8x72xf32, #tpu.memory_space<vmem>>, vector<8x72xf32>,
    %21 = vector.extract_strided_slice %18 {offsets = [0, 0, 0], sizes = [8, 1, 8], strides = [1, 1, 1]} : vector<8x8x8xf32> to vector<8x1x8xf32>
    %22 = vector.shape_cast %21 : vector<8x1x8xf32> to vector<8x8xf32>
    %c0_34 = arith.constant 0 : index
    %c1 = arith.constant 1 : index
    %23 = vector.load %arg20[%c0_34, %c1] : memref<8x72xf32, #tpu.memory_space<vmem>>, vector<8x8xf32>
    tpu.vector_store %arg20[%c0_34, %c1], %22 {strides = array<i32>} : memref<8x72xf32, #tpu.memory_space<vmem>>, vector<8x8xf32>,
    %24 = vector.extract_strided_slice %18 {offsets = [0, 1, 0], sizes = [8, 1, 8], strides = [1, 1, 1]} : vector<8x8x8xf32> to vector<8x1x8xf32>
    %25 = vector.shape_cast %24 : vector<8x1x8xf32> to vector<8x8xf32>
    %c0_35 = arith.constant 0 : index
    %c10 = arith.constant 10 : index
    %26 = vector.load %arg20[%c0_35, %c10] : memref<8x72xf32, #tpu.memory_space<vmem>>, vector<8x8xf32>
    tpu.vector_store %arg20[%c0_35, %c10], %25 {strides = array<i32>} : memref<8x72xf32, #tpu.memory_space<vmem>>, vector<8x8xf32>,
    %27 = vector.extract_strided_slice %18 {offsets = [0, 2, 0], sizes = [8, 1, 8], strides = [1, 1, 1]} : vector<8x8x8xf32> to vector<8x1x8xf32>
    %28 = vector.shape_cast %27 : vector<8x1x8xf32> to vector<8x8xf32>
    %c0_36 = arith.constant 0 : index
    %c19 = arith.constant 19 : index
    %29 = vector.load %arg20[%c0_36, %c19] : memref<8x72xf32, #tpu.memory_space<vmem>>, vector<8x8xf32>
    tpu.vector_store %arg20[%c0_36, %c19], %28 {strides = array<i32>} : memref<8x72xf32, #tpu.memory_space<vmem>>, vector<8x8xf32>,
    %30 = vector.extract_strided_slice %18 {offsets = [0, 3, 0], sizes = [8, 1, 8], strides = [1, 1, 1]} : vector<8x8x8xf32> to vector<8x1x8xf32>
    %31 = vector.shape_cast %30 : vector<8x1x8xf32> to vector<8x8xf32>
    %c0_37 = arith.constant 0 : index
    %c28 = arith.constant 28 : index
    %32 = vector.load %arg20[%c0_37, %c28] : memref<8x72xf32, #tpu.memory_space<vmem>>, vector<8x8xf32>
    tpu.vector_store %arg20[%c0_37, %c28], %31 {strides = array<i32>} : memref<8x72xf32, #tpu.memory_space<vmem>>, vector<8x8xf32>,
    %33 = vector.extract_strided_slice %18 {offsets = [0, 4, 0], sizes = [8, 1, 8], strides = [1, 1, 1]} : vector<8x8x8xf32> to vector<8x1x8xf32>
    %34 = vector.shape_cast %33 : vector<8x1x8xf32> to vector<8x8xf32>
    %c0_38 = arith.constant 0 : index
    %c37 = arith.constant 37 : index
    %35 = vector.load %arg20[%c0_38, %c37] : memref<8x72xf32, #tpu.memory_space<vmem>>, vector<8x8xf32>
    tpu.vector_store %arg20[%c0_38, %c37], %34 {strides = array<i32>} : memref<8x72xf32, #tpu.memory_space<vmem>>, vector<8x8xf32>,
    %36 = vector.extract_strided_slice %18 {offsets = [0, 5, 0], sizes = [8, 1, 8], strides = [1, 1, 1]} : vector<8x8x8xf32> to vector<8x1x8xf32>
    %37 = vector.shape_cast %36 : vector<8x1x8xf32> to vector<8x8xf32>
    %c0_39 = arith.constant 0 : index
    %c46 = arith.constant 46 : index
    %38 = vector.load %arg20[%c0_39, %c46] : memref<8x72xf32, #tpu.memory_space<vmem>>, vector<8x8xf32>
    tpu.vector_store %arg20[%c0_39, %c46], %37 {strides = array<i32>} : memref<8x72xf32, #tpu.memory_space<vmem>>, vector<8x8xf32>,
    %39 = vector.extract_strided_slice %18 {offsets = [0, 6, 0], sizes = [8, 1, 8], strides = [1, 1, 1]} : vector<8x8x8xf32> to vector<8x1x8xf32>
    %40 = vector.shape_cast %39 : vector<8x1x8xf32> to vector<8x8xf32>
    %c0_40 = arith.constant 0 : index
    %c55 = arith.constant 55 : index
    %41 = vector.load %arg20[%c0_40, %c55] : memref<8x72xf32, #tpu.memory_space<vmem>>, vector<8x8xf32>
    tpu.vector_store %arg20[%c0_40, %c55], %40 {strides = array<i32>} : memref<8x72xf32, #tpu.memory_space<vmem>>, vector<8x8xf32>,
    %42 = vector.extract_strided_slice %18 {offsets = [0, 7, 0], sizes = [8, 1, 8], strides = [1, 1, 1]} : vector<8x8x8xf32> to vector<8x1x8xf32>
    %43 = vector.shape_cast %42 : vector<8x1x8xf32> to vector<8x8xf32>
    %c0_41 = arith.constant 0 : index
    %c64 = arith.constant 64 : index
    %44 = vector.load %arg20[%c0_41, %c64] : memref<8x72xf32, #tpu.memory_space<vmem>>, vector<8x8xf32>
    tpu.vector_store %arg20[%c0_41, %c64], %43 {strides = array<i32>} : memref<8x72xf32, #tpu.memory_space<vmem>>, vector<8x8xf32>,
    %45 = vector.extract_strided_slice %17 {offsets = [0, 0, 0], sizes = [8, 1, 8], strides = [1, 1, 1]} : vector<8x8x8xf32> to vector<8x1x8xf32>
    %46 = vector.shape_cast %45 : vector<8x1x8xf32> to vector<8x8xf32>
    %c0_42 = arith.constant 0 : index
    %c8 = arith.constant 8 : index
    %47 = vector.load %arg20[%c0_42, %c8] : memref<8x72xf32, #tpu.memory_space<vmem>>, vector<8x8xf32>
    %48 = arith.addf %46, %47 : vector<8x8xf32>
    %c0_43 = arith.constant 0 : index
    %c0_44 = arith.constant 0 : index
    %c0_45 = arith.constant 0 : index
    %49 = vector.load %arg21[%c0_43, %c0_44, %c0_45] : memref<8x8x8xf32, #tpu.memory_space<vmem>>, vector<8x1x8xf32>
    %50 = vector.shape_cast %49 : vector<8x1x8xf32> to vector<8x8xf32>
    %51 = vector.shape_cast %48 : vector<8x8xf32> to vector<8x1x8xf32>
    tpu.vector_store %arg21[%c0_43, %c0_44, %c0_45], %51 {strides = array<i32>} : memref<8x8x8xf32, #tpu.memory_space<vmem>>, vector<8x1x8xf32>,
    %52 = vector.extract_strided_slice %17 {offsets = [0, 1, 0], sizes = [8, 1, 8], strides = [1, 1, 1]} : vector<8x8x8xf32> to vector<8x1x8xf32>
    %53 = vector.shape_cast %52 : vector<8x1x8xf32> to vector<8x8xf32>
    %c0_46 = arith.constant 0 : index
    %c16 = arith.constant 16 : index
    %54 = vector.load %arg20[%c0_46, %c16] : memref<8x72xf32, #tpu.memory_space<vmem>>, vector<8x8xf32>
    %55 = arith.addf %53, %54 : vector<8x8xf32>
    %c0_47 = arith.constant 0 : index
    %c1_48 = arith.constant 1 : index
    %c0_49 = arith.constant 0 : index
    %56 = vector.load %arg21[%c0_47, %c1_48, %c0_49] : memref<8x8x8xf32, #tpu.memory_space<vmem>>, vector<8x1x8xf32>
    %57 = vector.shape_cast %56 : vector<8x1x8xf32> to vector<8x8xf32>
    %58 = vector.shape_cast %55 : vector<8x8xf32> to vector<8x1x8xf32>
    tpu.vector_store %arg21[%c0_47, %c1_48, %c0_49], %58 {strides = array<i32>} : memref<8x8x8xf32, #tpu.memory_space<vmem>>, vector<8x1x8xf32>,
    %59 = vector.extract_strided_slice %17 {offsets = [0, 2, 0], sizes = [8, 1, 8], strides = [1, 1, 1]} : vector<8x8x8xf32> to vector<8x1x8xf32>
    %60 = vector.shape_cast %59 : vector<8x1x8xf32> to vector<8x8xf32>
    %c0_50 = arith.constant 0 : index
    %c24 = arith.constant 24 : index
    %61 = vector.load %arg20[%c0_50, %c24] : memref<8x72xf32, #tpu.memory_space<vmem>>, vector<8x8xf32>
    %62 = arith.addf %60, %61 : vector<8x8xf32>
    %c0_51 = arith.constant 0 : index
    %c2 = arith.constant 2 : index
    %c0_52 = arith.constant 0 : index
    %63 = vector.load %arg21[%c0_51, %c2, %c0_52] : memref<8x8x8xf32, #tpu.memory_space<vmem>>, vector<8x1x8xf32>
    %64 = vector.shape_cast %63 : vector<8x1x8xf32> to vector<8x8xf32>
    %65 = vector.shape_cast %62 : vector<8x8xf32> to vector<8x1x8xf32>
    tpu.vector_store %arg21[%c0_51, %c2, %c0_52], %65 {strides = array<i32>} : memref<8x8x8xf32, #tpu.memory_space<vmem>>, vector<8x1x8xf32>,
    %66 = vector.extract_strided_slice %17 {offsets = [0, 3, 0], sizes = [8, 1, 8], strides = [1, 1, 1]} : vector<8x8x8xf32> to vector<8x1x8xf32>
    %67 = vector.shape_cast %66 : vector<8x1x8xf32> to vector<8x8xf32>
    %c0_53 = arith.constant 0 : index
    %c32 = arith.constant 32 : index
    %68 = vector.load %arg20[%c0_53, %c32] : memref<8x72xf32, #tpu.memory_space<vmem>>, vector<8x8xf32>
    %69 = arith.addf %67, %68 : vector<8x8xf32>
    %c0_54 = arith.constant 0 : index
    %c3 = arith.constant 3 : index
    %c0_55 = arith.constant 0 : index
    %70 = vector.load %arg21[%c0_54, %c3, %c0_55] : memref<8x8x8xf32, #tpu.memory_space<vmem>>, vector<8x1x8xf32>
    %71 = vector.shape_cast %70 : vector<8x1x8xf32> to vector<8x8xf32>
    %72 = vector.shape_cast %69 : vector<8x8xf32> to vector<8x1x8xf32>
    tpu.vector_store %arg21[%c0_54, %c3, %c0_55], %72 {strides = array<i32>} : memref<8x8x8xf32, #tpu.memory_space<vmem>>, vector<8x1x8xf32>,
    %73 = vector.extract_strided_slice %17 {offsets = [0, 4, 0], sizes = [8, 1, 8], strides = [1, 1, 1]} : vector<8x8x8xf32> to vector<8x1x8xf32>
    %74 = vector.shape_cast %73 : vector<8x1x8xf32> to vector<8x8xf32>
    %c0_56 = arith.constant 0 : index
    %c40 = arith.constant 40 : index
    %75 = vector.load %arg20[%c0_56, %c40] : memref<8x72xf32, #tpu.memory_space<vmem>>, vector<8x8xf32>
    %76 = arith.addf %74, %75 : vector<8x8xf32>
    %c0_57 = arith.constant 0 : index
    %c4 = arith.constant 4 : index
    %c0_58 = arith.constant 0 : index
    %77 = vector.load %arg21[%c0_57, %c4, %c0_58] : memref<8x8x8xf32, #tpu.memory_space<vmem>>, vector<8x1x8xf32>
    %78 = vector.shape_cast %77 : vector<8x1x8xf32> to vector<8x8xf32>
    %79 = vector.shape_cast %76 : vector<8x8xf32> to vector<8x1x8xf32>
    tpu.vector_store %arg21[%c0_57, %c4, %c0_58], %79 {strides = array<i32>} : memref<8x8x8xf32, #tpu.memory_space<vmem>>, vector<8x1x8xf32>,
    %80 = vector.extract_strided_slice %17 {offsets = [0, 5, 0], sizes = [8, 1, 8], strides = [1, 1, 1]} : vector<8x8x8xf32> to vector<8x1x8xf32>
    %81 = vector.shape_cast %80 : vector<8x1x8xf32> to vector<8x8xf32>
    %c0_59 = arith.constant 0 : index
    %c48 = arith.constant 48 : index
    %82 = vector.load %arg20[%c0_59, %c48] : memref<8x72xf32, #tpu.memory_space<vmem>>, vector<8x8xf32>
    %83 = arith.addf %81, %82 : vector<8x8xf32>
    %c0_60 = arith.constant 0 : index
    %c5 = arith.constant 5 : index
    %c0_61 = arith.constant 0 : index
    %84 = vector.load %arg21[%c0_60, %c5, %c0_61] : memref<8x8x8xf32, #tpu.memory_space<vmem>>, vector<8x1x8xf32>
    %85 = vector.shape_cast %84 : vector<8x1x8xf32> to vector<8x8xf32>
    %86 = vector.shape_cast %83 : vector<8x8xf32> to vector<8x1x8xf32>
    tpu.vector_store %arg21[%c0_60, %c5, %c0_61], %86 {strides = array<i32>} : memref<8x8x8xf32, #tpu.memory_space<vmem>>, vector<8x1x8xf32>,
    %87 = vector.extract_strided_slice %17 {offsets = [0, 6, 0], sizes = [8, 1, 8], strides = [1, 1, 1]} : vector<8x8x8xf32> to vector<8x1x8xf32>
    %88 = vector.shape_cast %87 : vector<8x1x8xf32> to vector<8x8xf32>
    %c0_62 = arith.constant 0 : index
    %c56 = arith.constant 56 : index
    %89 = vector.load %arg20[%c0_62, %c56] : memref<8x72xf32, #tpu.memory_space<vmem>>, vector<8x8xf32>
    %90 = arith.addf %88, %89 : vector<8x8xf32>
    %c0_63 = arith.constant 0 : index
    %c6 = arith.constant 6 : index
    %c0_64 = arith.constant 0 : index
    %91 = vector.load %arg21[%c0_63, %c6, %c0_64] : memref<8x8x8xf32, #tpu.memory_space<vmem>>, vector<8x1x8xf32>
    %92 = vector.shape_cast %91 : vector<8x1x8xf32> to vector<8x8xf32>
    %93 = vector.shape_cast %90 : vector<8x8xf32> to vector<8x1x8xf32>
    tpu.vector_store %arg21[%c0_63, %c6, %c0_64], %93 {strides = array<i32>} : memref<8x8x8xf32, #tpu.memory_space<vmem>>, vector<8x1x8xf32>,
    %94 = vector.extract_strided_slice %17 {offsets = [0, 7, 0], sizes = [8, 1, 8], strides = [1, 1, 1]} : vector<8x8x8xf32> to vector<8x1x8xf32>
    %95 = vector.shape_cast %94 : vector<8x1x8xf32> to vector<8x8xf32>
    %c0_65 = arith.constant 0 : index
    %c64_66 = arith.constant 64 : index
    %96 = vector.load %arg20[%c0_65, %c64_66] : memref<8x72xf32, #tpu.memory_space<vmem>>, vector<8x8xf32>
    %97 = arith.addf %95, %96 : vector<8x8xf32>
    %c0_67 = arith.constant 0 : index
    %c7 = arith.constant 7 : index
    %c0_68 = arith.constant 0 : index
    %98 = vector.load %arg21[%c0_67, %c7, %c0_68] : memref<8x8x8xf32, #tpu.memory_space<vmem>>, vector<8x1x8xf32>
    %99 = vector.shape_cast %98 : vector<8x1x8xf32> to vector<8x8xf32>
    %100 = vector.shape_cast %97 : vector<8x8xf32> to vector<8x1x8xf32>
    tpu.vector_store %arg21[%c0_67, %c7, %c0_68], %100 {strides = array<i32>} : memref<8x8x8xf32, #tpu.memory_space<vmem>>, vector<8x1x8xf32>,
    %c0_69 = arith.constant 0 : index
    %c0_70 = arith.constant 0 : index
    %c0_71 = arith.constant 0 : index
    %101 = vector.load %arg21[%c0_69, %c0_70, %c0_71] : memref<8x8x8xf32, #tpu.memory_space<vmem>>, vector<8x8x8xf32>
    %cst_72 = arith.constant 0.353553385 : f32
    %102 = vector.broadcast %cst_72 : f32 to vector<8x8x8xf32>
    %103 = arith.mulf %101, %102 : vector<8x8x8xf32>
    %cst_73 = arith.constant dense<0xFF800000> : vector<8x8xf32>
    %104 = vector.multi_reduction <maximumf>, %103, %cst_73 [2] : vector<8x8x8xf32> to vector<8x8xf32>
    %105 = vector.shape_cast %104 : vector<8x8xf32> to vector<8x8x1xf32>
    %106 = vector.broadcast %105 : vector<8x8x1xf32> to vector<8x8x8xf32>
    %107 = arith.subf %103, %106 : vector<8x8x8xf32>
    %108 = math.exp %107 : vector<8x8x8xf32>
    %cst_74 = arith.constant dense<0.000000e+00> : vector<8x8xf32>
    %109 = vector.multi_reduction <add>, %108, %cst_74 [2] : vector<8x8x8xf32> to vector<8x8xf32>
    %110 = vector.shape_cast %109 : vector<8x8xf32> to vector<8x8x1xf32>
    %111 = vector.broadcast %110 : vector<8x8x1xf32> to vector<8x8x8xf32>
    %112 = arith.divf %108, %111 : vector<8x8x8xf32>
    %cst_75 = arith.constant dense<0.000000e+00> : vector<8x8x8xf32>
    %113 = tpu.matmul %112, %8, %cst_75 {dimension_numbers = #tpu.dot_dimension_numbers<[2], [1], [1], [2], [0, 0, 0, 1, 1, 2], [0], [0]>} : vector<8x8x8xf32>, vector<8x8x8xf32>, vector<8x8x8xf32> -> vector<8x8x8xf32>
    %c0_76 = arith.constant 0 : index
    %c0_77 = arith.constant 0 : index
    %c0_78 = arith.constant 0 : index
    %114 = vector.load %arg10[%c0_76, %c0_77, %c0_78] : memref<8x8x32xf32, #tpu.memory_space<vmem>>, vector<8x8x32xf32>
    %cst_79 = arith.constant dense<0.000000e+00> : vector<8x8x32xf32>
    %115 = tpu.matmul %113, %114, %cst_79 {dimension_numbers = #tpu.dot_dimension_numbers<[2], [1], [1], [2], [0, 0, 0, 1, 1, 2], [0], [0]>} : vector<8x8x8xf32>, vector<8x8x32xf32>, vector<8x8x32xf32> -> vector<8x8x32xf32>
    %116 = vector.shape_cast %115 : vector<8x8x32xf32> to vector<2x4x8x32xf32>
    %117 = vector.extract_strided_slice %116 {offsets = [0, 0, 0, 0], sizes = [2, 1, 8, 32], strides = [1, 1, 1, 1]} : vector<2x4x8x32xf32> to vector<2x1x8x32xf32>
    %118 = vector.shape_cast %117 : vector<2x1x8x32xf32> to vector<2x8x32xf32>
    %119 = vector.extract_strided_slice %116 {offsets = [0, 1, 0, 0], sizes = [2, 1, 8, 32], strides = [1, 1, 1, 1]} : vector<2x4x8x32xf32> to vector<2x1x8x32xf32>
    %120 = vector.shape_cast %119 : vector<2x1x8x32xf32> to vector<2x8x32xf32>
    %121 = arith.addf %118, %120 : vector<2x8x32xf32>
    %122 = vector.extract_strided_slice %116 {offsets = [0, 2, 0, 0], sizes = [2, 1, 8, 32], strides = [1, 1, 1, 1]} : vector<2x4x8x32xf32> to vector<2x1x8x32xf32>
    %123 = vector.shape_cast %122 : vector<2x1x8x32xf32> to vector<2x8x32xf32>
    %124 = arith.addf %121, %123 : vector<2x8x32xf32>
    %125 = vector.extract_strided_slice %116 {offsets = [0, 3, 0, 0], sizes = [2, 1, 8, 32], strides = [1, 1, 1, 1]} : vector<2x4x8x32xf32> to vector<2x1x8x32xf32>
    %126 = vector.shape_cast %125 : vector<2x1x8x32xf32> to vector<2x8x32xf32>
    %127 = arith.addf %124, %126 : vector<2x8x32xf32>
    %128 = vector.shape_cast %127 : vector<2x8x32xf32> to vector<16x32xf32>
    %c0_80 = arith.constant 0 : index
    %c0_81 = arith.constant 0 : index
    %129 = vector.load %arg3[%c0_80, %c0_81] : memref<16x32xf32, #tpu.memory_space<vmem>>, vector<16x32xf32>
    %130 = arith.addf %129, %128 : vector<16x32xf32>
    %cst_82 = arith.constant dense<0.000000e+00> : vector<16xf32>
    %131 = vector.multi_reduction <add>, %130, %cst_82 [1] : vector<16x32xf32> to vector<16xf32>
    %132 = vector.shape_cast %131 : vector<16xf32> to vector<16x1xf32>
    %cst_83 = arith.constant 3.200000e+01 : f32
    %133 = vector.broadcast %cst_83 : f32 to vector<16x1xf32>
    %134 = arith.divf %132, %133 : vector<16x1xf32>
    %135 = vector.broadcast %134 : vector<16x1xf32> to vector<16x32xf32>
    %136 = arith.subf %130, %135 : vector<16x32xf32>
    %137 = arith.mulf %136, %136 : vector<16x32xf32>
    %cst_84 = arith.constant dense<0.000000e+00> : vector<16xf32>
    %138 = vector.multi_reduction <add>, %137, %cst_84 [1] : vector<16x32xf32> to vector<16xf32>
    %139 = vector.shape_cast %138 : vector<16xf32> to vector<16x1xf32>
    %cst_85 = arith.constant 3.200000e+01 : f32
    %140 = vector.broadcast %cst_85 : f32 to vector<16x1xf32>
    %141 = arith.divf %139, %140 : vector<16x1xf32>
    %142 = vector.broadcast %134 : vector<16x1xf32> to vector<16x32xf32>
    %143 = arith.subf %130, %142 : vector<16x32xf32>
    %cst_86 = arith.constant 9.99999974E-6 : f32
    %144 = vector.broadcast %cst_86 : f32 to vector<16x1xf32>
    %145 = arith.addf %141, %144 : vector<16x1xf32>
    %146 = math.rsqrt %145 : vector<16x1xf32>
    %147 = vector.broadcast %146 : vector<16x1xf32> to vector<16x32xf32>
    %148 = arith.mulf %143, %147 : vector<16x32xf32>
    %c0_87 = arith.constant 0 : index
    %c0_88 = arith.constant 0 : index
    %149 = vector.load %arg11[%c0_87, %c0_88] : memref<1x32xf32, #tpu.memory_space<vmem>>, vector<1x32xf32>
    %150 = vector.broadcast %149 : vector<1x32xf32> to vector<16x32xf32>
    %151 = arith.mulf %148, %150 : vector<16x32xf32>
    %c0_89 = arith.constant 0 : index
    %c0_90 = arith.constant 0 : index
    %152 = vector.load %arg12[%c0_89, %c0_90] : memref<1x32xf32, #tpu.memory_space<vmem>>, vector<1x32xf32>
    %153 = vector.broadcast %152 : vector<1x32xf32> to vector<16x32xf32>
    %154 = arith.addf %151, %153 : vector<16x32xf32>
    %c0_91 = arith.constant 0 : index
    %c0_92 = arith.constant 0 : index
    %155 = vector.load %arg13[%c0_91, %c0_92] : memref<32x64xf32, #tpu.memory_space<vmem>>, vector<32x64xf32>
    %cst_93 = arith.constant dense<0.000000e+00> : vector<16x64xf32>
    %156 = tpu.matmul %154, %155, %cst_93 {dimension_numbers = #tpu.dot_dimension_numbers<[1], [0], [0], [1], [0, 0, 1, 1], [], []>} : vector<16x32xf32>, vector<32x64xf32>, vector<16x64xf32> -> vector<16x64xf32>
    %c0_94 = arith.constant 0 : index
    %c0_95 = arith.constant 0 : index
    %157 = vector.load %arg14[%c0_94, %c0_95] : memref<1x64xf32, #tpu.memory_space<vmem>>, vector<1x64xf32>
    %158 = vector.broadcast %157 : vector<1x64xf32> to vector<16x64xf32>
    %159 = arith.addf %156, %158 : vector<16x64xf32>
    %cst_96 = arith.constant 0.000000e+00 : f32
    %160 = vector.broadcast %cst_96 : f32 to vector<16x64xf32>
    %161 = arith.maximumf %159, %160 : vector<16x64xf32>
    %c0_97 = arith.constant 0 : index
    %c0_98 = arith.constant 0 : index
    %162 = vector.load %arg15[%c0_97, %c0_98] : memref<64x32xf32, #tpu.memory_space<vmem>>, vector<64x32xf32>
    %cst_99 = arith.constant dense<0.000000e+00> : vector<16x32xf32>
    %163 = tpu.matmul %161, %162, %cst_99 {dimension_numbers = #tpu.dot_dimension_numbers<[1], [0], [0], [1], [0, 0, 1, 1], [], []>} : vector<16x64xf32>, vector<64x32xf32>, vector<16x32xf32> -> vector<16x32xf32>
    %c0_100 = arith.constant 0 : index
    %c0_101 = arith.constant 0 : index
    %164 = vector.load %arg16[%c0_100, %c0_101] : memref<1x32xf32, #tpu.memory_space<vmem>>, vector<1x32xf32>
    %165 = vector.broadcast %164 : vector<1x32xf32> to vector<16x32xf32>
    %166 = arith.addf %163, %165 : vector<16x32xf32>
    %167 = arith.addf %154, %166 : vector<16x32xf32>
    %cst_102 = arith.constant dense<0.000000e+00> : vector<16xf32>
    %168 = vector.multi_reduction <add>, %167, %cst_102 [1] : vector<16x32xf32> to vector<16xf32>
    %169 = vector.shape_cast %168 : vector<16xf32> to vector<16x1xf32>
    %cst_103 = arith.constant 3.200000e+01 : f32
    %170 = vector.broadcast %cst_103 : f32 to vector<16x1xf32>
    %171 = arith.divf %169, %170 : vector<16x1xf32>
    %172 = vector.broadcast %171 : vector<16x1xf32> to vector<16x32xf32>
    %173 = arith.subf %167, %172 : vector<16x32xf32>
    %174 = arith.mulf %173, %173 : vector<16x32xf32>
    %cst_104 = arith.constant dense<0.000000e+00> : vector<16xf32>
    %175 = vector.multi_reduction <add>, %174, %cst_104 [1] : vector<16x32xf32> to vector<16xf32>
    %176 = vector.shape_cast %175 : vector<16xf32> to vector<16x1xf32>
    %cst_105 = arith.constant 3.200000e+01 : f32
    %177 = vector.broadcast %cst_105 : f32 to vector<16x1xf32>
    %178 = arith.divf %176, %177 : vector<16x1xf32>
    %179 = vector.broadcast %171 : vector<16x1xf32> to vector<16x32xf32>
    %180 = arith.subf %167, %179 : vector<16x32xf32>
    %cst_106 = arith.constant 9.99999974E-6 : f32
    %181 = vector.broadcast %cst_106 : f32 to vector<16x1xf32>
    %182 = arith.addf %178, %181 : vector<16x1xf32>
    %183 = math.rsqrt %182 : vector<16x1xf32>
    %184 = vector.broadcast %183 : vector<16x1xf32> to vector<16x32xf32>
    %185 = arith.mulf %180, %184 : vector<16x32xf32>
    %c0_107 = arith.constant 0 : index
    %c0_108 = arith.constant 0 : index
    %186 = vector.load %arg17[%c0_107, %c0_108] : memref<1x32xf32, #tpu.memory_space<vmem>>, vector<1x32xf32>
    %187 = vector.broadcast %186 : vector<1x32xf32> to vector<16x32xf32>
    %188 = arith.mulf %185, %187 : vector<16x32xf32>
    %c0_109 = arith.constant 0 : index
    %c0_110 = arith.constant 0 : index
    %189 = vector.load %arg18[%c0_109, %c0_110] : memref<1x32xf32, #tpu.memory_space<vmem>>, vector<1x32xf32>
    %190 = vector.broadcast %189 : vector<1x32xf32> to vector<16x32xf32>
    %191 = arith.addf %188, %190 : vector<16x32xf32>
    %c0_111 = arith.constant 0 : index
    %c0_112 = arith.constant 0 : index
    %192 = vector.load %arg19[%c0_111, %c0_112] : memref<16x32xf32, #tpu.memory_space<vmem>>, vector<16x32xf32>
    tpu.vector_store %arg19[%c0_111, %c0_112], %191 {strides = array<i32>} : memref<16x32xf32, #tpu.memory_space<vmem>>, vector<16x32xf32>,
    return
  }
}

</mosaic_0001>

<llo_original>
// kernel: tpu_custom_call.1
$region0: #{tpu_custom_call.1}
  #allocation0 [shape = 'u32[]', space=smem, size = 0x4, offset = 0x4, fixed_abs, tag = 'smem constant byte address 0x4 - core index']
  #allocation1 [shape = 'u32[72,128]{1,0:T(1,128)}', space=vmem, size = 0x9000, scoped, tag = 'internal scratch']
  #allocation2 [shape = 'f32[8,72]{1,0:T(8,128)}', space=vmem, size = 0x1000, scoped, tag = 'scratch operand']
  #allocation3 [shape = 'f32[8,8,8]{2,1,0:T(8,128)}', space=vmem, size = 0x8000, scoped, tag = 'scratch operand']
  %s0 = inlined_call_operand.vmem [shape: f32[8,8,32], index: 0, kind: input, shape index: {}]
  %s1 = inlined_call_operand.vmem [shape: f32[8,8,32], index: 1, kind: input, shape index: {}]
  %s2 = inlined_call_operand.vmem [shape: f32[8,8,32], index: 2, kind: input, shape index: {}]
  %s3 = inlined_call_operand.vmem [shape: f32[16,32], index: 3, kind: input, shape index: {}]
  %s4 = inlined_call_operand.vmem [shape: f32[8,32,8], index: 4, kind: input, shape index: {}]
  %s5 = inlined_call_operand.vmem [shape: f32[8,32,8], index: 5, kind: input, shape index: {}]
  %s6 = inlined_call_operand.vmem [shape: f32[8,32,8], index: 6, kind: input, shape index: {}]
  %s7 = inlined_call_operand.vmem [shape: f32[8,32,8], index: 7, kind: input, shape index: {}]
  %s8 = inlined_call_operand.vmem [shape: f32[8,1,8], index: 8, kind: input, shape index: {}]
  %s9 = inlined_call_operand.vmem [shape: f32[8,1,8], index: 9, kind: input, shape index: {}]
  %s10 = inlined_call_operand.vmem [shape: f32[8,8,32], index: 10, kind: input, shape index: {}]
  %s11 = inlined_call_operand.vmem [shape: f32[1,32], index: 11, kind: input, shape index: {}]
  %s12 = inlined_call_operand.vmem [shape: f32[1,32], index: 12, kind: input, shape index: {}]
  %s13 = inlined_call_operand.vmem [shape: f32[32,64], index: 13, kind: input, shape index: {}]
  %s14 = inlined_call_operand.vmem [shape: f32[1,64], index: 14, kind: input, shape index: {}]
  %s15 = inlined_call_operand.vmem [shape: f32[64,32], index: 15, kind: input, shape index: {}]
  %s16 = inlined_call_operand.vmem [shape: f32[1,32], index: 16, kind: input, shape index: {}]
  %s17 = inlined_call_operand.vmem [shape: f32[1,32], index: 17, kind: input, shape index: {}]
  %s18 = inlined_call_operand.vmem [shape: f32[1,32], index: 18, kind: input, shape index: {}]
  %s19 = inlined_call_operand.hbm [shape: f32[16,32], index: 19, kind: output, shape index: {}]
  %s20 = sld [smem:[#allocation0]]
  $region86: #{tpu_custom_call.1} parent=0
    _
  %s22 = ssub.s32 1, %s20
  %s23 = scalar_select 0, %s22, %s20
  $region1: #{tpu_custom_call.1} parent=0
    #allocation4 [shape = 'u8[8192]{0}', space=vmem, size = 0x2000, scoped, tag = 'output window, operand 0, single buffered']
    #allocation5 [shape = 's32[1]{0}', space=sflag, size = 0x4, scoped, tag = 'scoped memory for tpu_custom_call.1']
    %24 = vsyncpa [#allocation5], 0
    // Predicated region
    $region2: #{tpu_custom_call.1} parent=1 // pred_check
      _
    $region3: #{tpu_custom_call.1} parent=1 // pred_check_branch
      %26 = sbr.rel (0) target = $region5
    $region4: #{tpu_custom_call.1} parent=1 // pred_region
      _
    $region5: #{tpu_custom_call.1} parent=1 // pred_fallthru
      _
    // Predicated region
    $region6: #{tpu_custom_call.1} parent=1 // pred_check
      _
    $region7: #{tpu_custom_call.1} parent=1 // pred_check_branch
      %28 = sbr.rel (0) target = $region9
    $region8: #{tpu_custom_call.1} parent=1 // pred_region
      _
    $region9: #{tpu_custom_call.1} parent=1 // pred_fallthru
      _
    // Predicated region
    $region10: #{tpu_custom_call.1} parent=1 // pred_check
      _
    $region11: #{tpu_custom_call.1} parent=1 // pred_check_branch
      %30 = sbr.rel (0) target = $region13
    $region12: #{tpu_custom_call.1} parent=1 // pred_region
      _
    $region13: #{tpu_custom_call.1} parent=1 // pred_fallthru
      _
    // Predicated region
    $region14: #{tpu_custom_call.1} parent=1 // pred_check
      _
    $region15: #{tpu_custom_call.1} parent=1 // pred_check_branch
      %32 = sbr.rel (0) target = $region17
    $region16: #{tpu_custom_call.1} parent=1 // pred_region
      _
    $region17: #{tpu_custom_call.1} parent=1 // pred_fallthru
      _
    // Predicated region
    $region18: #{tpu_custom_call.1} parent=1 // pred_check
      _
    $region19: #{tpu_custom_call.1} parent=1 // pred_check_branch
      %34 = sbr.rel (0) target = $region21
    $region20: #{tpu_custom_call.1} parent=1 // pred_region
      _
    $region21: #{tpu_custom_call.1} parent=1 // pred_fallthru
      _
    // Predicated region
    $region22: #{tpu_custom_call.1} parent=1 // pred_check
      _
    $region23: #{tpu_custom_call.1} parent=1 // pred_check_branch
      %36 = sbr.rel (0) target = $region25
    $region24: #{tpu_custom_call.1} parent=1 // pred_region
      _
    $region25: #{tpu_custom_call.1} parent=1 // pred_fallthru
      _
    // Predicated region
    $region26: #{tpu_custom_call.1} parent=1 // pred_check
      _
    $region27: #{tpu_custom_call.1} parent=1 // pred_check_branch
      %38 = sbr.rel (0) target = $region29
    $region28: #{tpu_custom_call.1} parent=1 // pred_region
      _
    $region29: #{tpu_custom_call.1} parent=1 // pred_fallthru
      _
    // Predicated region
    $region30: #{tpu_custom_call.1} parent=1 // pred_check
      _
    $region31: #{tpu_custom_call.1} parent=1 // pred_check_branch
      %40 = sbr.rel (0) target = $region33
    $region32: #{tpu_custom_call.1} parent=1 // pred_region
      _
    $region33: #{tpu_custom_call.1} parent=1 // pred_fallthru
      _
    // Predicated region
    $region34: #{tpu_custom_call.1} parent=1 // pred_check
      _
    $region35: #{tpu_custom_call.1} parent=1 // pred_check_branch
      %42 = sbr.rel (0) target = $region37
    $region36: #{tpu_custom_call.1} parent=1 // pred_region
      _
    $region37: #{tpu_custom_call.1} parent=1 // pred_fallthru
      _
    // Predicated region
    $region38: #{tpu_custom_call.1} parent=1 // pred_check
      _
    $region39: #{tpu_custom_call.1} parent=1 // pred_check_branch
      %44 = sbr.rel (0) target = $region41
    $region40: #{tpu_custom_call.1} parent=1 // pred_region
      _
    $region41: #{tpu_custom_call.1} parent=1 // pred_fallthru
      _
    // Predicated region
    $region42: #{tpu_custom_call.1} parent=1 // pred_check
      _
    $region43: #{tpu_custom_call.1} parent=1 // pred_check_branch
      %46 = sbr.rel (0) target = $region45
    $region44: #{tpu_custom_call.1} parent=1 // pred_region
      _
    $region45: #{tpu_custom_call.1} parent=1 // pred_fallthru
      _
    // Predicated region
    $region46: #{tpu_custom_call.1} parent=1 // pred_check
      _
    $region47: #{tpu_custom_call.1} parent=1 // pred_check_branch
      %48 = sbr.rel (0) target = $region49
    $region48: #{tpu_custom_call.1} parent=1 // pred_region
      _
    $region49: #{tpu_custom_call.1} parent=1 // pred_fallthru
      _
    // Predicated region
    $region50: #{tpu_custom_call.1} parent=1 // pred_check
      _
    $region51: #{tpu_custom_call.1} parent=1 // pred_check_branch
      %50 = sbr.rel (0) target = $region53
    $region52: #{tpu_custom_call.1} parent=1 // pred_region
      _
    $region53: #{tpu_custom_call.1} parent=1 // pred_fallthru
      _
    // Predicated region
    $region54: #{tpu_custom_call.1} parent=1 // pred_check
      _
    $region55: #{tpu_custom_call.1} parent=1 // pred_check_branch
      %52 = sbr.rel (0) target = $region57
    $region56: #{tpu_custom_call.1} parent=1 // pred_region
      _
    $region57: #{tpu_custom_call.1} parent=1 // pred_fallthru
      _
    // Predicated region
    $region58: #{tpu_custom_call.1} parent=1 // pred_check
      _
    $region59: #{tpu_custom_call.1} parent=1 // pred_check_branch
      %54 = sbr.rel (0) target = $region61
    $region60: #{tpu_custom_call.1} parent=1 // pred_region
      _
    $region61: #{tpu_custom_call.1} parent=1 // pred_fallthru
      _
    // Predicated region
    $region62: #{tpu_custom_call.1} parent=1 // pred_check
      _
    $region63: #{tpu_custom_call.1} parent=1 // pred_check_branch
      %56 = sbr.rel (0) target = $region65
    $region64: #{tpu_custom_call.1} parent=1 // pred_region
      _
    $region65: #{tpu_custom_call.1} parent=1 // pred_fallthru
      _
    // Predicated region
    $region66: #{tpu_custom_call.1} parent=1 // pred_check
      _
    $region67: #{tpu_custom_call.1} parent=1 // pred_check_branch
      %58 = sbr.rel (0) target = $region69
    $region68: #{tpu_custom_call.1} parent=1 // pred_region
      _
    $region69: #{tpu_custom_call.1} parent=1 // pred_fallthru
      _
    // Predicated region
    $region70: #{tpu_custom_call.1} parent=1 // pred_check
      _
    $region71: #{tpu_custom_call.1} parent=1 // pred_check_branch
      %60 = sbr.rel (0) target = $region73
    $region72: #{tpu_custom_call.1} parent=1 // pred_region
      _
    $region73: #{tpu_custom_call.1} parent=1 // pred_fallthru
      _
    // Predicated region
    $region74: #{tpu_custom_call.1} parent=1 // pred_check
      _
    $region75: #{tpu_custom_call.1} parent=1 // pred_check_branch
      %62 = sbr.rel (0) target = $region77
    $region76: #{tpu_custom_call.1} parent=1 // pred_region
      _
    $region77: #{tpu_custom_call.1} parent=1 // pred_fallthru
      _
    %v63 = vld [vmem:[%s0] sm:$0xff]
    %v64 = vld [vmem:[%s0 + $0x8] sm:$0xff]
    %v65 = vld [vmem:[%s0 + $0x10] sm:$0xff]
    %v66 = vld [vmem:[%s0 + $0x18] sm:$0xff]
    %v67 = vld [vmem:[%s0 + $0x20] sm:$0xff]
    %v68 = vld [vmem:[%s0 + $0x28] sm:$0xff]
    %v69 = vld [vmem:[%s0 + $0x30] sm:$0xff]
    %v70 = vld [vmem:[%s0 + $0x38] sm:$0xff]
    %v71 = vld [vmem:[%s1] sm:$0xff]
    %v72 = vld [vmem:[%s1 + $0x8] sm:$0xff]
    %v73 = vld [vmem:[%s1 + $0x10] sm:$0xff]
    %v74 = vld [vmem:[%s1 + $0x18] sm:$0xff]
    %v75 = vld [vmem:[%s1 + $0x20] sm:$0xff]
    %v76 = vld [vmem:[%s1 + $0x28] sm:$0xff]
    %v77 = vld [vmem:[%s1 + $0x30] sm:$0xff]
    %v78 = vld [vmem:[%s1 + $0x38] sm:$0xff]
    %v79 = vld [vmem:[%s2] sm:$0xff]
    %v80 = vld [vmem:[%s2 + $0x8] sm:$0xff]
    %v81 = vld [vmem:[%s2 + $0x10] sm:$0xff]
    %v82 = vld [vmem:[%s2 + $0x18] sm:$0xff]
    %v83 = vld [vmem:[%s2 + $0x20] sm:$0xff]
    %v84 = vld [vmem:[%s2 + $0x28] sm:$0xff]
    %v85 = vld [vmem:[%s2 + $0x30] sm:$0xff]
    %v86 = vld [vmem:[%s2 + $0x38] sm:$0xff]
    %v87 = vld [vmem:[%s4] sm:$0xff]
    %v88 = vld [vmem:[%s4 + $0x8] sm:$0xff]
    %v89 = vld [vmem:[%s4 + $0x10] sm:$0xff]
    %v90 = vld [vmem:[%s4 + $0x18] sm:$0xff]
    %v91 = vld [vmem:[%s4 + $0x20] sm:$0xff]
    %v92 = vld [vmem:[%s4 + $0x28] sm:$0xff]
    %v93 = vld [vmem:[%s4 + $0x30] sm:$0xff]
    %v94 = vld [vmem:[%s4 + $0x38] sm:$0xff]
    %v95 = vld [vmem:[%s4 + $0x40] sm:$0xff]
    %v96 = vld [vmem:[%s4 + $0x48] sm:$0xff]
    %v97 = vld [vmem:[%s4 + $0x50] sm:$0xff]
    %v98 = vld [vmem:[%s4 + $0x58] sm:$0xff]
    %v99 = vld [vmem:[%s4 + $0x60] sm:$0xff]
    %v100 = vld [vmem:[%s4 + $0x68] sm:$0xff]
    %v101 = vld [vmem:[%s4 + $0x70] sm:$0xff]
    %v102 = vld [vmem:[%s4 + $0x78] sm:$0xff]
    %v103 = vld [vmem:[%s4 + $0x80] sm:$0xff]
    %v104 = vld [vmem:[%s4 + $0x88] sm:$0xff]
    %v105 = vld [vmem:[%s4 + $0x90] sm:$0xff]
    %v106 = vld [vmem:[%s4 + $0x98] sm:$0xff]
    %v107 = vld [vmem:[%s4 + $0xa0] sm:$0xff]
    %v108 = vld [vmem:[%s4 + $0xa8] sm:$0xff]
    %v109 = vld [vmem:[%s4 + $0xb0] sm:$0xff]
    %v110 = vld [vmem:[%s4 + $0xb8] sm:$0xff]
    %v111 = vld [vmem:[%s4 + $0xc0] sm:$0xff]
    %v112 = vld [vmem:[%s4 + $0xc8] sm:$0xff]
    %v113 = vld [vmem:[%s4 + $0xd0] sm:$0xff]
    %v114 = vld [vmem:[%s4 + $0xd8] sm:$0xff]
    %v115 = vld [vmem:[%s4 + $0xe0] sm:$0xff]
    %v116 = vld [vmem:[%s4 + $0xe8] sm:$0xff]
    %v117 = vld [vmem:[%s4 + $0xf0] sm:$0xff]
    %v118 = vld [vmem:[%s4 + $0xf8] sm:$0xff]
    %vm119 = vcmask 261120
    %v121 = vsel %vm119, %v63, 0
    %123 = vmatpush.msra.mxu0 0.0
    %124 = vmatpush.msra.mxu0 0.0
    %125 = vmatpush.msra.mxu0 0.0
    %126 = vmatpush.msra.mxu0 0.0
    %127 = vmatpush.msra.mxu0 0.0
    %128 = vmatpush.msra.mxu0 0.0
    %129 = vmatpush.msra.mxu0 0.0
    %130 = vmatpush.msra.mxu0 0.0
    %131 = vmatpush.msra.mxu0 0.0
    %132 = vmatpush.msra.mxu0 0.0
    %133 = vmatpush.msra.mxu0 0.0
    %134 = vmatpush.msra.mxu0 0.0
    %135 = vmatpush.msra.mxu0 %v90
    %136 = vmatpush.msra.mxu0 %v89
    %137 = vmatpush.msra.mxu0 %v88
    %138 = vmatpush.msra.mxu0 %v87
    %139 = vmatmul.f32.gmra.mxu0 %v121
    %v140 = vpop.f32.mrf.mxu0
    %v141 = vadd.f32 0.0, %v140
    %142 = vdwg.mxu0
    %v144 = vsel %vm119, %v64, 0
    %146 = vmatpush.msra.mxu0 0.0
    %147 = vmatpush.msra.mxu0 0.0
    %148 = vmatpush.msra.mxu0 0.0
    %149 = vmatpush.msra.mxu0 0.0
    %150 = vmatpush.msra.mxu0 0.0
    %151 = vmatpush.msra.mxu0 0.0
    %152 = vmatpush.msra.mxu0 0.0
    %153 = vmatpush.msra.mxu0 0.0
    %154 = vmatpush.msra.mxu0 0.0
    %155 = vmatpush.msra.mxu0 0.0
    %156 = vmatpush.msra.mxu0 0.0
    %157 = vmatpush.msra.mxu0 0.0
    %158 = vmatpush.msra.mxu0 %v94
    %159 = vmatpush.msra.mxu0 %v93
    %160 = vmatpush.msra.mxu0 %v92
    %161 = vmatpush.msra.mxu0 %v91
    %162 = vmatmul.f32.gmra.mxu0 %v144
    %v163 = vpop.f32.mrf.mxu0
    %v164 = vadd.f32 0.0, %v163
    %165 = vdwg.mxu0
    %v167 = vsel %vm119, %v65, 0
    %169 = vmatpush.msra.mxu0 0.0
    %170 = vmatpush.msra.mxu0 0.0
    %171 = vmatpush.msra.mxu0 0.0
    %172 = vmatpush.msra.mxu0 0.0
    %173 = vmatpush.msra.mxu0 0.0
    %174 = vmatpush.msra.mxu0 0.0
    %175 = vmatpush.msra.mxu0 0.0
    %176 = vmatpush.msra.mxu0 0.0
    %177 = vmatpush.msra.mxu0 0.0
    %178 = vmatpush.msra.mxu0 0.0
    %179 = vmatpush.msra.mxu0 0.0
    %180 = vmatpush.msra.mxu0 0.0
    %181 = vmatpush.msra.mxu0 %v98
    %182 = vmatpush.msra.mxu0 %v97
    %183 = vmatpush.msra.mxu0 %v96
    %184 = vmatpush.msra.mxu0 %v95
    %185 = vmatmul.f32.gmra.mxu0 %v167
    %v186 = vpop.f32.mrf.mxu0
    %v187 = vadd.f32 0.0, %v186
    %188 = vdwg.mxu0
    %v190 = vsel %vm119, %v66, 0
    %192 = vmatpush.msra.mxu0 0.0
    %193 = vmatpush.msra.mxu0 0.0
    %194 = vmatpush.msra.mxu0 0.0
    %195 = vmatpush.msra.mxu0 0.0
    %196 = vmatpush.msra.mxu0 0.0
    %197 = vmatpush.msra.mxu0 0.0
    %198 = vmatpush.msra.mxu0 0.0
    %199 = vmatpush.msra.mxu0 0.0
    %200 = vmatpush.msra.mxu0 0.0
    %201 = vmatpush.msra.mxu0 0.0
    %202 = vmatpush.msra.mxu0 0.0
    %203 = vmatpush.msra.mxu0 0.0
    %204 = vmatpush.msra.mxu0 %v102
    %205 = vmatpush.msra.mxu0 %v101
    %206 = vmatpush.msra.mxu0 %v100
    %207 = vmatpush.msra.mxu0 %v99
    %208 = vmatmul.f32.gmra.mxu0 %v190
    %v209 = vpop.f32.mrf.mxu0
    %v210 = vadd.f32 0.0, %v209
    %211 = vdwg.mxu0
    %v213 = vsel %vm119, %v67, 0
    %215 = vmatpush.msra.mxu0 0.0
    %216 = vmatpush.msra.mxu0 0.0
    %217 = vmatpush.msra.mxu0 0.0
    %218 = vmatpush.msra.mxu0 0.0
    %219 = vmatpush.msra.mxu0 0.0
    %220 = vmatpush.msra.mxu0 0.0
    %221 = vmatpush.msra.mxu0 0.0
    %222 = vmatpush.msra.mxu0 0.0
    %223 = vmatpush.msra.mxu0 0.0
    %224 = vmatpush.msra.mxu0 0.0
    %225 = vmatpush.msra.mxu0 0.0
    %226 = vmatpush.msra.mxu0 0.0
    %227 = vmatpush.msra.mxu0 %v106
    %228 = vmatpush.msra.mxu0 %v105
    %229 = vmatpush.msra.mxu0 %v104
    %230 = vmatpush.msra.mxu0 %v103
    %231 = vmatmul.f32.gmra.mxu0 %v213
    %v232 = vpop.f32.mrf.mxu0
    %v233 = vadd.f32 0.0, %v232
    %234 = vdwg.mxu0
    %v236 = vsel %vm119, %v68, 0
    %238 = vmatpush.msra.mxu0 0.0
    %239 = vmatpush.msra.mxu0 0.0
    %240 = vmatpush.msra.mxu0 0.0
    %241 = vmatpush.msra.mxu0 0.0
    %242 = vmatpush.msra.mxu0 0.0
    %243 = vmatpush.msra.mxu0 0.0
    %244 = vmatpush.msra.mxu0 0.0
    %245 = vmatpush.msra.mxu0 0.0
    %246 = vmatpush.msra.mxu0 0.0
    %247 = vmatpush.msra.mxu0 0.0
    %248 = vmatpush.msra.mxu0 0.0
    %249 = vmatpush.msra.mxu0 0.0
    %250 = vmatpush.msra.mxu0 %v110
    %251 = vmatpush.msra.mxu0 %v109
    %252 = vmatpush.msra.mxu0 %v108
    %253 = vmatpush.msra.mxu0 %v107
    %254 = vmatmul.f32.gmra.mxu0 %v236
    %v255 = vpop.f32.mrf.mxu0
    %v256 = vadd.f32 0.0, %v255
    %257 = vdwg.mxu0
    %v259 = vsel %vm119, %v69, 0
    %261 = vmatpush.msra.mxu0 0.0
    %262 = vmatpush.msra.mxu0 0.0
    %263 = vmatpush.msra.mxu0 0.0
    %264 = vmatpush.msra.mxu0 0.0
    %265 = vmatpush.msra.mxu0 0.0
    %266 = vmatpush.msra.mxu0 0.0
    %267 = vmatpush.msra.mxu0 0.0
    %268 = vmatpush.msra.mxu0 0.0
    %269 = vmatpush.msra.mxu0 0.0
    %270 = vmatpush.msra.mxu0 0.0
    %271 = vmatpush.msra.mxu0 0.0
    %272 = vmatpush.msra.mxu0 0.0
    %273 = vmatpush.msra.mxu0 %v114
    %274 = vmatpush.msra.mxu0 %v113
    %275 = vmatpush.msra.mxu0 %v112
    %276 = vmatpush.msra.mxu0 %v111
    %277 = vmatmul.f32.gmra.mxu0 %v259
    %v278 = vpop.f32.mrf.mxu0
    %v279 = vadd.f32 0.0, %v278
    %280 = vdwg.mxu0
    %v282 = vsel %vm119, %v70, 0
    %284 = vmatpush.msra.mxu0 0.0
    %285 = vmatpush.msra.mxu0 0.0
    %286 = vmatpush.msra.mxu0 0.0
    %287 = vmatpush.msra.mxu0 0.0
    %288 = vmatpush.msra.mxu0 0.0
    %289 = vmatpush.msra.mxu0 0.0
    %290 = vmatpush.msra.mxu0 0.0
    %291 = vmatpush.msra.mxu0 0.0
    %292 = vmatpush.msra.mxu0 0.0
    %293 = vmatpush.msra.mxu0 0.0
    %294 = vmatpush.msra.mxu0 0.0
    %295 = vmatpush.msra.mxu0 0.0
    %296 = vmatpush.msra.mxu0 %v118
    %297 = vmatpush.msra.mxu0 %v117
    %298 = vmatpush.msra.mxu0 %v116
    %299 = vmatpush.msra.mxu0 %v115
    %300 = vmatmul.f32.gmra.mxu0 %v282
    %v301 = vpop.f32.mrf.mxu0
    %v302 = vadd.f32 0.0, %v301
    %303 = vdwg.mxu0
    %v304 = vld [vmem:[%s5] sm:$0xff]
    %v305 = vld [vmem:[%s5 + $0x8] sm:$0xff]
    %v306 = vld [vmem:[%s5 + $0x10] sm:$0xff]
    %v307 = vld [vmem:[%s5 + $0x18] sm:$0xff]
    %v308 = vld [vmem:[%s5 + $0x20] sm:$0xff]
    %v309 = vld [vmem:[%s5 + $0x28] sm:$0xff]
    %v310 = vld [vmem:[%s5 + $0x30] sm:$0xff]
    %v311 = vld [vmem:[%s5 + $0x38] sm:$0xff]
    %v312 = vld [vmem:[%s5 + $0x40] sm:$0xff]
    %v313 = vld [vmem:[%s5 + $0x48] sm:$0xff]
    %v314 = vld [vmem:[%s5 + $0x50] sm:$0xff]
    %v315 = vld [vmem:[%s5 + $0x58] sm:$0xff]
    %v316 = vld [vmem:[%s5 + $0x60] sm:$0xff]
    %v317 = vld [vmem:[%s5 + $0x68] sm:$0xff]
    %v318 = vld [vmem:[%s5 + $0x70] sm:$0xff]
    %v319 = vld [vmem:[%s5 + $0x78] sm:$0xff]
    %v320 = vld [vmem:[%s5 + $0x80] sm:$0xff]
    %v321 = vld [vmem:[%s5 + $0x88] sm:$0xff]
    %v322 = vld [vmem:[%s5 + $0x90] sm:$0xff]
    %v323 = vld [vmem:[%s5 + $0x98] sm:$0xff]
    %v324 = vld [vmem:[%s5 + $0xa0] sm:$0xff]
    %v325 = vld [vmem:[%s5 + $0xa8] sm:$0xff]
    %v326 = vld [vmem:[%s5 + $0xb0] sm:$0xff]
    %v327 = vld [vmem:[%s5 + $0xb8] sm:$0xff]
    %v328 = vld [vmem:[%s5 + $0xc0] sm:$0xff]
    %v329 = vld [vmem:[%s5 + $0xc8] sm:$0xff]
    %v330 = vld [vmem:[%s5 + $0xd0] sm:$0xff]
    %v331 = vld [vmem:[%s5 + $0xd8] sm:$0xff]
    %v332 = vld [vmem:[%s5 + $0xe0] sm:$0xff]
    %v333 = vld [vmem:[%s5 + $0xe8] sm:$0xff]
    %v334 = vld [vmem:[%s5 + $0xf0] sm:$0xff]
    %v335 = vld [vmem:[%s5 + $0xf8] sm:$0xff]
    %v337 = vsel %vm119, %v71, 0
    %339 = vmatpush.msra.mxu0 0.0
    %340 = vmatpush.msra.mxu0 0.0
    %341 = vmatpush.msra.mxu0 0.0
    %342 = vmatpush.msra.mxu0 0.0
    %343 = vmatpush.msra.mxu0 0.0
    %344 = vmatpush.msra.mxu0 0.0
    %345 = vmatpush.msra.mxu0 0.0
    %346 = vmatpush.msra.mxu0 0.0
    %347 = vmatpush.msra.mxu0 0.0
    %348 = vmatpush.msra.mxu0 0.0
    %349 = vmatpush.msra.mxu0 0.0
    %350 = vmatpush.msra.mxu0 0.0
    %351 = vmatpush.msra.mxu0 %v307
    %352 = vmatpush.msra.mxu0 %v306
    %353 = vmatpush.msra.mxu0 %v305
    %354 = vmatpush.msra.mxu0 %v304
    %355 = vmatmul.f32.gmra.mxu0 %v337
    %v356 = vpop.f32.mrf.mxu0
    %v357 = vadd.f32 0.0, %v356
    %358 = vdwg.mxu0
    %v360 = vsel %vm119, %v72, 0
    %362 = vmatpush.msra.mxu0 0.0
    %363 = vmatpush.msra.mxu0 0.0
    %364 = vmatpush.msra.mxu0 0.0
    %365 = vmatpush.msra.mxu0 0.0
    %366 = vmatpush.msra.mxu0 0.0
    %367 = vmatpush.msra.mxu0 0.0
    %368 = vmatpush.msra.mxu0 0.0
    %369 = vmatpush.msra.mxu0 0.0
    %370 = vmatpush.msra.mxu0 0.0
    %371 = vmatpush.msra.mxu0 0.0
    %372 = vmatpush.msra.mxu0 0.0
    %373 = vmatpush.msra.mxu0 0.0
    %374 = vmatpush.msra.mxu0 %v311
    %375 = vmatpush.msra.mxu0 %v310
    %376 = vmatpush.msra.mxu0 %v309
    %377 = vmatpush.msra.mxu0 %v308
    %378 = vmatmul.f32.gmra.mxu0 %v360
    %v379 = vpop.f32.mrf.mxu0
    %v380 = vadd.f32 0.0, %v379
    %381 = vdwg.mxu0
    %v383 = vsel %vm119, %v73, 0
    %385 = vmatpush.msra.mxu0 0.0
    %386 = vmatpush.msra.mxu0 0.0
    %387 = vmatpush.msra.mxu0 0.0
    %388 = vmatpush.msra.mxu0 0.0
    %389 = vmatpush.msra.mxu0 0.0
    %390 = vmatpush.msra.mxu0 0.0
    %391 = vmatpush.msra.mxu0 0.0
    %392 = vmatpush.msra.mxu0 0.0
    %393 = vmatpush.msra.mxu0 0.0
    %394 = vmatpush.msra.mxu0 0.0
    %395 = vmatpush.msra.mxu0 0.0
    %396 = vmatpush.msra.mxu0 0.0
    %397 = vmatpush.msra.mxu0 %v315
    %398 = vmatpush.msra.mxu0 %v314
    %399 = vmatpush.msra.mxu0 %v313
    %400 = vmatpush.msra.mxu0 %v312
    %401 = vmatmul.f32.gmra.mxu0 %v383
    %v402 = vpop.f32.mrf.mxu0
    %v403 = vadd.f32 0.0, %v402
    %404 = vdwg.mxu0
    %v406 = vsel %vm119, %v74, 0
    %408 = vmatpush.msra.mxu0 0.0
    %409 = vmatpush.msra.mxu0 0.0
    %410 = vmatpush.msra.mxu0 0.0
    %411 = vmatpush.msra.mxu0 0.0
    %412 = vmatpush.msra.mxu0 0.0
    %413 = vmatpush.msra.mxu0 0.0
    %414 = vmatpush.msra.mxu0 0.0
    %415 = vmatpush.msra.mxu0 0.0
    %416 = vmatpush.msra.mxu0 0.0
    %417 = vmatpush.msra.mxu0 0.0
    %418 = vmatpush.msra.mxu0 0.0
    %419 = vmatpush.msra.mxu0 0.0
    %420 = vmatpush.msra.mxu0 %v319
    %421 = vmatpush.msra.mxu0 %v318
    %422 = vmatpush.msra.mxu0 %v317
    %423 = vmatpush.msra.mxu0 %v316
    %424 = vmatmul.f32.gmra.mxu0 %v406
    %v425 = vpop.f32.mrf.mxu0
    %v426 = vadd.f32 0.0, %v425
    %427 = vdwg.mxu0
    %v429 = vsel %vm119, %v75, 0
    %431 = vmatpush.msra.mxu0 0.0
    %432 = vmatpush.msra.mxu0 0.0
    %433 = vmatpush.msra.mxu0 0.0
    %434 = vmatpush.msra.mxu0 0.0
    %435 = vmatpush.msra.mxu0 0.0
    %436 = vmatpush.msra.mxu0 0.0
    %437 = vmatpush.msra.mxu0 0.0
    %438 = vmatpush.msra.mxu0 0.0
    %439 = vmatpush.msra.mxu0 0.0
    %440 = vmatpush.msra.mxu0 0.0
    %441 = vmatpush.msra.mxu0 0.0
    %442 = vmatpush.msra.mxu0 0.0
    %443 = vmatpush.msra.mxu0 %v323
    %444 = vmatpush.msra.mxu0 %v322
    %445 = vmatpush.msra.mxu0 %v321
    %446 = vmatpush.msra.mxu0 %v320
    %447 = vmatmul.f32.gmra.mxu0 %v429
    %v448 = vpop.f32.mrf.mxu0
    %v449 = vadd.f32 0.0, %v448
    %450 = vdwg.mxu0
    %v452 = vsel %vm119, %v76, 0
    %454 = vmatpush.msra.mxu0 0.0
    %455 = vmatpush.msra.mxu0 0.0
    %456 = vmatpush.msra.mxu0 0.0
    %457 = vmatpush.msra.mxu0 0.0
    %458 = vmatpush.msra.mxu0 0.0
    %459 = vmatpush.msra.mxu0 0.0
    %460 = vmatpush.msra.mxu0 0.0
    %461 = vmatpush.msra.mxu0 0.0
    %462 = vmatpush.msra.mxu0 0.0
    %463 = vmatpush.msra.mxu0 0.0
    %464 = vmatpush.msra.mxu0 0.0
    %465 = vmatpush.msra.mxu0 0.0
    %466 = vmatpush.msra.mxu0 %v327
    %467 = vmatpush.msra.mxu0 %v326
    %468 = vmatpush.msra.mxu0 %v325
    %469 = vmatpush.msra.mxu0 %v324
    %470 = vmatmul.f32.gmra.mxu0 %v452
    %v471 = vpop.f32.mrf.mxu0
    %v472 = vadd.f32 0.0, %v471
    %473 = vdwg.mxu0
    %v475 = vsel %vm119, %v77, 0
    %477 = vmatpush.msra.mxu0 0.0
    %478 = vmatpush.msra.mxu0 0.0
    %479 = vmatpush.msra.mxu0 0.0
    %480 = vmatpush.msra.mxu0 0.0
    %481 = vmatpush.msra.mxu0 0.0
    %482 = vmatpush.msra.mxu0 0.0
    %483 = vmatpush.msra.mxu0 0.0
    %484 = vmatpush.msra.mxu0 0.0
    %485 = vmatpush.msra.mxu0 0.0
    %486 = vmatpush.msra.mxu0 0.0
    %487 = vmatpush.msra.mxu0 0.0
    %488 = vmatpush.msra.mxu0 0.0
    %489 = vmatpush.msra.mxu0 %v331
    %490 = vmatpush.msra.mxu0 %v330
    %491 = vmatpush.msra.mxu0 %v329
    %492 = vmatpush.msra.mxu0 %v328
    %493 = vmatmul.f32.gmra.mxu0 %v475
    %v494 = vpop.f32.mrf.mxu0
    %v495 = vadd.f32 0.0, %v494
    %496 = vdwg.mxu0
    %v498 = vsel %vm119, %v78, 0
    %500 = vmatpush.msra.mxu0 0.0
    %501 = vmatpush.msra.mxu0 0.0
    %502 = vmatpush.msra.mxu0 0.0
    %503 = vmatpush.msra.mxu0 0.0
    %504 = vmatpush.msra.mxu0 0.0
    %505 = vmatpush.msra.mxu0 0.0
    %506 = vmatpush.msra.mxu0 0.0
    %507 = vmatpush.msra.mxu0 0.0
    %508 = vmatpush.msra.mxu0 0.0
    %509 = vmatpush.msra.mxu0 0.0
    %510 = vmatpush.msra.mxu0 0.0
    %511 = vmatpush.msra.mxu0 0.0
    %512 = vmatpush.msra.mxu0 %v335
    %513 = vmatpush.msra.mxu0 %v334
    %514 = vmatpush.msra.mxu0 %v333
    %515 = vmatpush.msra.mxu0 %v332
    %516 = vmatmul.f32.gmra.mxu0 %v498
    %v517 = vpop.f32.mrf.mxu0
    %v518 = vadd.f32 0.0, %v517
    %519 = vdwg.mxu0
    %v520 = vld [vmem:[%s6] sm:$0xff]
    %v521 = vld [vmem:[%s6 + $0x8] sm:$0xff]
    %v522 = vld [vmem:[%s6 + $0x10] sm:$0xff]
    %v523 = vld [vmem:[%s6 + $0x18] sm:$0xff]
    %v524 = vld [vmem:[%s6 + $0x20] sm:$0xff]
    %v525 = vld [vmem:[%s6 + $0x28] sm:$0xff]
    %v526 = vld [vmem:[%s6 + $0x30] sm:$0xff]
    %v527 = vld [vmem:[%s6 + $0x38] sm:$0xff]
    %v528 = vld [vmem:[%s6 + $0x40] sm:$0xff]
    %v529 = vld [vmem:[%s6 + $0x48] sm:$0xff]
    %v530 = vld [vmem:[%s6 + $0x50] sm:$0xff]
    %v531 = vld [vmem:[%s6 + $0x58] sm:$0xff]
    %v532 = vld [vmem:[%s6 + $0x60] sm:$0xff]
    %v533 = vld [vmem:[%s6 + $0x68] sm:$0xff]
    %v534 = vld [vmem:[%s6 + $0x70] sm:$0xff]
    %v535 = vld [vmem:[%s6 + $0x78] sm:$0xff]
    %v536 = vld [vmem:[%s6 + $0x80] sm:$0xff]
    %v537 = vld [vmem:[%s6 + $0x88] sm:$0xff]
    %v538 = vld [vmem:[%s6 + $0x90] sm:$0xff]
    %v539 = vld [vmem:[%s6 + $0x98] sm:$0xff]
    %v540 = vld [vmem:[%s6 + $0xa0] sm:$0xff]
    %v541 = vld [vmem:[%s6 + $0xa8] sm:$0xff]
    %v542 = vld [vmem:[%s6 + $0xb0] sm:$0xff]
    %v543 = vld [vmem:[%s6 + $0xb8] sm:$0xff]
    %v544 = vld [vmem:[%s6 + $0xc0] sm:$0xff]
    %v545 = vld [vmem:[%s6 + $0xc8] sm:$0xff]
    %v546 = vld [vmem:[%s6 + $0xd0] sm:$0xff]
    %v547 = vld [vmem:[%s6 + $0xd8] sm:$0xff]
    %v548 = vld [vmem:[%s6 + $0xe0] sm:$0xff]
    %v549 = vld [vmem:[%s6 + $0xe8] sm:$0xff]
    %v550 = vld [vmem:[%s6 + $0xf0] sm:$0xff]
    %v551 = vld [vmem:[%s6 + $0xf8] sm:$0xff]
    %552 = vmatpush.msra.mxu0 0.0
    %553 = vmatpush.msra.mxu0 0.0
    %554 = vmatpush.msra.mxu0 0.0
    %555 = vmatpush.msra.mxu0 0.0
    %556 = vmatpush.msra.mxu0 0.0
    %557 = vmatpush.msra.mxu0 0.0
    %558 = vmatpush.msra.mxu0 0.0
    %559 = vmatpush.msra.mxu0 0.0
    %560 = vmatpush.msra.mxu0 0.0
    %561 = vmatpush.msra.mxu0 0.0
    %562 = vmatpush.msra.mxu0 0.0
    %563 = vmatpush.msra.mxu0 0.0
    %564 = vmatpush.msra.mxu0 %v523
    %565 = vmatpush.msra.mxu0 %v522
    %566 = vmatpush.msra.mxu0 %v521
    %567 = vmatpush.msra.mxu0 %v520
    %568 = vmatmul.f32.gmra.mxu0 %v337
    %v569 = vpop.f32.mrf.mxu0
    %v570 = vadd.f32 0.0, %v569
    %571 = vdwg.mxu0
    %572 = vmatpush.msra.mxu0 0.0
    %573 = vmatpush.msra.mxu0 0.0
    %574 = vmatpush.msra.mxu0 0.0
    %575 = vmatpush.msra.mxu0 0.0
    %576 = vmatpush.msra.mxu0 0.0
    %577 = vmatpush.msra.mxu0 0.0
    %578 = vmatpush.msra.mxu0 0.0
    %579 = vmatpush.msra.mxu0 0.0
    %580 = vmatpush.msra.mxu0 0.0
    %581 = vmatpush.msra.mxu0 0.0
    %582 = vmatpush.msra.mxu0 0.0
    %583 = vmatpush.msra.mxu0 0.0
    %584 = vmatpush.msra.mxu0 %v527
    %585 = vmatpush.msra.mxu0 %v526
    %586 = vmatpush.msra.mxu0 %v525
    %587 = vmatpush.msra.mxu0 %v524
    %588 = vmatmul.f32.gmra.mxu0 %v360
    %v589 = vpop.f32.mrf.mxu0
    %v590 = vadd.f32 0.0, %v589
    %591 = vdwg.mxu0
    %592 = vmatpush.msra.mxu0 0.0
    %593 = vmatpush.msra.mxu0 0.0
    %594 = vmatpush.msra.mxu0 0.0
    %595 = vmatpush.msra.mxu0 0.0
    %596 = vmatpush.msra.mxu0 0.0
    %597 = vmatpush.msra.mxu0 0.0
    %598 = vmatpush.msra.mxu0 0.0
    %599 = vmatpush.msra.mxu0 0.0
    %600 = vmatpush.msra.mxu0 0.0
    %601 = vmatpush.msra.mxu0 0.0
    %602 = vmatpush.msra.mxu0 0.0
    %603 = vmatpush.msra.mxu0 0.0
    %604 = vmatpush.msra.mxu0 %v531
    %605 = vmatpush.msra.mxu0 %v530
    %606 = vmatpush.msra.mxu0 %v529
    %607 = vmatpush.msra.mxu0 %v528
    %608 = vmatmul.f32.gmra.mxu0 %v383
    %v609 = vpop.f32.mrf.mxu0
    %v610 = vadd.f32 0.0, %v609
    %611 = vdwg.mxu0
    %612 = vmatpush.msra.mxu0 0.0
    %613 = vmatpush.msra.mxu0 0.0
    %614 = vmatpush.msra.mxu0 0.0
    %615 = vmatpush.msra.mxu0 0.0
    %616 = vmatpush.msra.mxu0 0.0
    %617 = vmatpush.msra.mxu0 0.0
    %618 = vmatpush.msra.mxu0 0.0
    %619 = vmatpush.msra.mxu0 0.0
    %620 = vmatpush.msra.mxu0 0.0
    %621 = vmatpush.msra.mxu0 0.0
    %622 = vmatpush.msra.mxu0 0.0
    %623 = vmatpush.msra.mxu0 0.0
    %624 = vmatpush.msra.mxu0 %v535
    %625 = vmatpush.msra.mxu0 %v534
    %626 = vmatpush.msra.mxu0 %v533
    %627 = vmatpush.msra.mxu0 %v532
    %628 = vmatmul.f32.gmra.mxu0 %v406
    %v629 = vpop.f32.mrf.mxu0
    %v630 = vadd.f32 0.0, %v629
    %631 = vdwg.mxu0
    %632 = vmatpush.msra.mxu0 0.0
    %633 = vmatpush.msra.mxu0 0.0
    %634 = vmatpush.msra.mxu0 0.0
    %635 = vmatpush.msra.mxu0 0.0
    %636 = vmatpush.msra.mxu0 0.0
    %637 = vmatpush.msra.mxu0 0.0
    %638 = vmatpush.msra.mxu0 0.0
    %639 = vmatpush.msra.mxu0 0.0
    %640 = vmatpush.msra.mxu0 0.0
    %641 = vmatpush.msra.mxu0 0.0
    %642 = vmatpush.msra.mxu0 0.0
    %643 = vmatpush.msra.mxu0 0.0
    %644 = vmatpush.msra.mxu0 %v539
    %645 = vmatpush.msra.mxu0 %v538
    %646 = vmatpush.msra.mxu0 %v537
    %647 = vmatpush.msra.mxu0 %v536
    %648 = vmatmul.f32.gmra.mxu0 %v429
    %v649 = vpop.f32.mrf.mxu0
    %v650 = vadd.f32 0.0, %v649
    %651 = vdwg.mxu0
    %652 = vmatpush.msra.mxu0 0.0
    %653 = vmatpush.msra.mxu0 0.0
    %654 = vmatpush.msra.mxu0 0.0
    %655 = vmatpush.msra.mxu0 0.0
    %656 = vmatpush.msra.mxu0 0.0
    %657 = vmatpush.msra.mxu0 0.0
    %658 = vmatpush.msra.mxu0 0.0
    %659 = vmatpush.msra.mxu0 0.0
    %660 = vmatpush.msra.mxu0 0.0
    %661 = vmatpush.msra.mxu0 0.0
    %662 = vmatpush.msra.mxu0 0.0
    %663 = vmatpush.msra.mxu0 0.0
    %664 = vmatpush.msra.mxu0 %v543
    %665 = vmatpush.msra.mxu0 %v542
    %666 = vmatpush.msra.mxu0 %v541
    %667 = vmatpush.msra.mxu0 %v540
    %668 = vmatmul.f32.gmra.mxu0 %v452
    %v669 = vpop.f32.mrf.mxu0
    %v670 = vadd.f32 0.0, %v669
    %671 = vdwg.mxu0
    %672 = vmatpush.msra.mxu0 0.0
    %673 = vmatpush.msra.mxu0 0.0
    %674 = vmatpush.msra.mxu0 0.0
    %675 = vmatpush.msra.mxu0 0.0
    %676 = vmatpush.msra.mxu0 0.0
    %677 = vmatpush.msra.mxu0 0.0
    %678 = vmatpush.msra.mxu0 0.0
    %679 = vmatpush.msra.mxu0 0.0
    %680 = vmatpush.msra.mxu0 0.0
    %681 = vmatpush.msra.mxu0 0.0
    %682 = vmatpush.msra.mxu0 0.0
    %683 = vmatpush.msra.mxu0 0.0
    %684 = vmatpush.msra.mxu0 %v547
    %685 = vmatpush.msra.mxu0 %v546
    %686 = vmatpush.msra.mxu0 %v545
    %687 = vmatpush.msra.mxu0 %v544
    %688 = vmatmul.f32.gmra.mxu0 %v475
    %v689 = vpop.f32.mrf.mxu0
    %v690 = vadd.f32 0.0, %v689
    %691 = vdwg.mxu0
    %692 = vmatpush.msra.mxu0 0.0
    %693 = vmatpush.msra.mxu0 0.0
    %694 = vmatpush.msra.mxu0 0.0
    %695 = vmatpush.msra.mxu0 0.0
    %696 = vmatpush.msra.mxu0 0.0
    %697 = vmatpush.msra.mxu0 0.0
    %698 = vmatpush.msra.mxu0 0.0
    %699 = vmatpush.msra.mxu0 0.0
    %700 = vmatpush.msra.mxu0 0.0
    %701 = vmatpush.msra.mxu0 0.0
    %702 = vmatpush.msra.mxu0 0.0
    %703 = vmatpush.msra.mxu0 0.0
    %704 = vmatpush.msra.mxu0 %v551
    %705 = vmatpush.msra.mxu0 %v550
    %706 = vmatpush.msra.mxu0 %v549
    %707 = vmatpush.msra.mxu0 %v548
    %708 = vmatmul.f32.gmra.mxu0 %v498
    %v709 = vpop.f32.mrf.mxu0
    %v710 = vadd.f32 0.0, %v709
    %711 = vdwg.mxu0
    %v712 = vld [vmem:[%s7] sm:$0xff]
    %v713 = vld [vmem:[%s7 + $0x8] sm:$0xff]
    %v714 = vld [vmem:[%s7 + $0x10] sm:$0xff]
    %v715 = vld [vmem:[%s7 + $0x18] sm:$0xff]
    %v716 = vld [vmem:[%s7 + $0x20] sm:$0xff]
    %v717 = vld [vmem:[%s7 + $0x28] sm:$0xff]
    %v718 = vld [vmem:[%s7 + $0x30] sm:$0xff]
    %v719 = vld [vmem:[%s7 + $0x38] sm:$0xff]
    %v720 = vld [vmem:[%s7 + $0x40] sm:$0xff]
    %v721 = vld [vmem:[%s7 + $0x48] sm:$0xff]
    %v722 = vld [vmem:[%s7 + $0x50] sm:$0xff]
    %v723 = vld [vmem:[%s7 + $0x58] sm:$0xff]
    %v724 = vld [vmem:[%s7 + $0x60] sm:$0xff]
    %v725 = vld [vmem:[%s7 + $0x68] sm:$0xff]
    %v726 = vld [vmem:[%s7 + $0x70] sm:$0xff]
    %v727 = vld [vmem:[%s7 + $0x78] sm:$0xff]
    %v728 = vld [vmem:[%s7 + $0x80] sm:$0xff]
    %v729 = vld [vmem:[%s7 + $0x88] sm:$0xff]
    %v730 = vld [vmem:[%s7 + $0x90] sm:$0xff]
    %v731 = vld [vmem:[%s7 + $0x98] sm:$0xff]
    %v732 = vld [vmem:[%s7 + $0xa0] sm:$0xff]
    %v733 = vld [vmem:[%s7 + $0xa8] sm:$0xff]
    %v734 = vld [vmem:[%s7 + $0xb0] sm:$0xff]
    %v735 = vld [vmem:[%s7 + $0xb8] sm:$0xff]
    %v736 = vld [vmem:[%s7 + $0xc0] sm:$0xff]
    %v737 = vld [vmem:[%s7 + $0xc8] sm:$0xff]
    %v738 = vld [vmem:[%s7 + $0xd0] sm:$0xff]
    %v739 = vld [vmem:[%s7 + $0xd8] sm:$0xff]
    %v740 = vld [vmem:[%s7 + $0xe0] sm:$0xff]
    %v741 = vld [vmem:[%s7 + $0xe8] sm:$0xff]
    %v742 = vld [vmem:[%s7 + $0xf0] sm:$0xff]
    %v743 = vld [vmem:[%s7 + $0xf8] sm:$0xff]
    %v745 = vsel %vm119, %v79, 0
    %747 = vmatpush.msra.mxu0 0.0
    %748 = vmatpush.msra.mxu0 0.0
    %749 = vmatpush.msra.mxu0 0.0
    %750 = vmatpush.msra.mxu0 0.0
    %751 = vmatpush.msra.mxu0 0.0
    %752 = vmatpush.msra.mxu0 0.0
    %753 = vmatpush.msra.mxu0 0.0
    %754 = vmatpush.msra.mxu0 0.0
    %755 = vmatpush.msra.mxu0 0.0
    %756 = vmatpush.msra.mxu0 0.0
    %757 = vmatpush.msra.mxu0 0.0
    %758 = vmatpush.msra.mxu0 0.0
    %759 = vmatpush.msra.mxu0 %v715
    %760 = vmatpush.msra.mxu0 %v714
    %761 = vmatpush.msra.mxu0 %v713
    %762 = vmatpush.msra.mxu0 %v712
    %763 = vmatmul.f32.gmra.mxu0 %v745
    %v764 = vpop.f32.mrf.mxu0
    %v765 = vadd.f32 0.0, %v764
    %766 = vdwg.mxu0
    %v768 = vsel %vm119, %v80, 0
    %770 = vmatpush.msra.mxu0 0.0
    %771 = vmatpush.msra.mxu0 0.0
    %772 = vmatpush.msra.mxu0 0.0
    %773 = vmatpush.msra.mxu0 0.0
    %774 = vmatpush.msra.mxu0 0.0
    %775 = vmatpush.msra.mxu0 0.0
    %776 = vmatpush.msra.mxu0 0.0
    %777 = vmatpush.msra.mxu0 0.0
    %778 = vmatpush.msra.mxu0 0.0
    %779 = vmatpush.msra.mxu0 0.0
    %780 = vmatpush.msra.mxu0 0.0
    %781 = vmatpush.msra.mxu0 0.0
    %782 = vmatpush.msra.mxu0 %v719
    %783 = vmatpush.msra.mxu0 %v718
    %784 = vmatpush.msra.mxu0 %v717
    %785 = vmatpush.msra.mxu0 %v716
    %786 = vmatmul.f32.gmra.mxu0 %v768
    %v787 = vpop.f32.mrf.mxu0
    %v788 = vadd.f32 0.0, %v787
    %789 = vdwg.mxu0
    %v791 = vsel %vm119, %v81, 0
    %793 = vmatpush.msra.mxu0 0.0
    %794 = vmatpush.msra.mxu0 0.0
    %795 = vmatpush.msra.mxu0 0.0
    %796 = vmatpush.msra.mxu0 0.0
    %797 = vmatpush.msra.mxu0 0.0
    %798 = vmatpush.msra.mxu0 0.0
    %799 = vmatpush.msra.mxu0 0.0
    %800 = vmatpush.msra.mxu0 0.0
    %801 = vmatpush.msra.mxu0 0.0
    %802 = vmatpush.msra.mxu0 0.0
    %803 = vmatpush.msra.mxu0 0.0
    %804 = vmatpush.msra.mxu0 0.0
    %805 = vmatpush.msra.mxu0 %v723
    %806 = vmatpush.msra.mxu0 %v722
    %807 = vmatpush.msra.mxu0 %v721
    %808 = vmatpush.msra.mxu0 %v720
    %809 = vmatmul.f32.gmra.mxu0 %v791
    %v810 = vpop.f32.mrf.mxu0
    %v811 = vadd.f32 0.0, %v810
    %812 = vdwg.mxu0
    %v814 = vsel %vm119, %v82, 0
    %816 = vmatpush.msra.mxu0 0.0
    %817 = vmatpush.msra.mxu0 0.0
    %818 = vmatpush.msra.mxu0 0.0
    %819 = vmatpush.msra.mxu0 0.0
    %820 = vmatpush.msra.mxu0 0.0
    %821 = vmatpush.msra.mxu0 0.0
    %822 = vmatpush.msra.mxu0 0.0
    %823 = vmatpush.msra.mxu0 0.0
    %824 = vmatpush.msra.mxu0 0.0
    %825 = vmatpush.msra.mxu0 0.0
    %826 = vmatpush.msra.mxu0 0.0
    %827 = vmatpush.msra.mxu0 0.0
    %828 = vmatpush.msra.mxu0 %v727
    %829 = vmatpush.msra.mxu0 %v726
    %830 = vmatpush.msra.mxu0 %v725
    %831 = vmatpush.msra.mxu0 %v724
    %832 = vmatmul.f32.gmra.mxu0 %v814
    %v833 = vpop.f32.mrf.mxu0
    %v834 = vadd.f32 0.0, %v833
    %835 = vdwg.mxu0
    %v837 = vsel %vm119, %v83, 0
    %839 = vmatpush.msra.mxu0 0.0
    %840 = vmatpush.msra.mxu0 0.0
    %841 = vmatpush.msra.mxu0 0.0
    %842 = vmatpush.msra.mxu0 0.0
    %843 = vmatpush.msra.mxu0 0.0
    %844 = vmatpush.msra.mxu0 0.0
    %845 = vmatpush.msra.mxu0 0.0
    %846 = vmatpush.msra.mxu0 0.0
    %847 = vmatpush.msra.mxu0 0.0
    %848 = vmatpush.msra.mxu0 0.0
    %849 = vmatpush.msra.mxu0 0.0
    %850 = vmatpush.msra.mxu0 0.0
    %851 = vmatpush.msra.mxu0 %v731
    %852 = vmatpush.msra.mxu0 %v730
    %853 = vmatpush.msra.mxu0 %v729
    %854 = vmatpush.msra.mxu0 %v728
    %855 = vmatmul.f32.gmra.mxu0 %v837
    %v856 = vpop.f32.mrf.mxu0
    %v857 = vadd.f32 0.0, %v856
    %858 = vdwg.mxu0
    %v860 = vsel %vm119, %v84, 0
    %862 = vmatpush.msra.mxu0 0.0
    %863 = vmatpush.msra.mxu0 0.0
    %864 = vmatpush.msra.mxu0 0.0
    %865 = vmatpush.msra.mxu0 0.0
    %866 = vmatpush.msra.mxu0 0.0
    %867 = vmatpush.msra.mxu0 0.0
    %868 = vmatpush.msra.mxu0 0.0
    %869 = vmatpush.msra.mxu0 0.0
    %870 = vmatpush.msra.mxu0 0.0
    %871 = vmatpush.msra.mxu0 0.0
    %872 = vmatpush.msra.mxu0 0.0
    %873 = vmatpush.msra.mxu0 0.0
    %874 = vmatpush.msra.mxu0 %v735
    %875 = vmatpush.msra.mxu0 %v734
    %876 = vmatpush.msra.mxu0 %v733
    %877 = vmatpush.msra.mxu0 %v732
    %878 = vmatmul.f32.gmra.mxu0 %v860
    %v879 = vpop.f32.mrf.mxu0
    %v880 = vadd.f32 0.0, %v879
    %881 = vdwg.mxu0
    %v883 = vsel %vm119, %v85, 0
    %885 = vmatpush.msra.mxu0 0.0
    %886 = vmatpush.msra.mxu0 0.0
    %887 = vmatpush.msra.mxu0 0.0
    %888 = vmatpush.msra.mxu0 0.0
    %889 = vmatpush.msra.mxu0 0.0
    %890 = vmatpush.msra.mxu0 0.0
    %891 = vmatpush.msra.mxu0 0.0
    %892 = vmatpush.msra.mxu0 0.0
    %893 = vmatpush.msra.mxu0 0.0
    %894 = vmatpush.msra.mxu0 0.0
    %895 = vmatpush.msra.mxu0 0.0
    %896 = vmatpush.msra.mxu0 0.0
    %897 = vmatpush.msra.mxu0 %v739
    %898 = vmatpush.msra.mxu0 %v738
    %899 = vmatpush.msra.mxu0 %v737
    %900 = vmatpush.msra.mxu0 %v736
    %901 = vmatmul.f32.gmra.mxu0 %v883
    %v902 = vpop.f32.mrf.mxu0
    %v903 = vadd.f32 0.0, %v902
    %904 = vdwg.mxu0
    %v906 = vsel %vm119, %v86, 0
    %908 = vmatpush.msra.mxu0 0.0
    %909 = vmatpush.msra.mxu0 0.0
    %910 = vmatpush.msra.mxu0 0.0
    %911 = vmatpush.msra.mxu0 0.0
    %912 = vmatpush.msra.mxu0 0.0
    %913 = vmatpush.msra.mxu0 0.0
    %914 = vmatpush.msra.mxu0 0.0
    %915 = vmatpush.msra.mxu0 0.0
    %916 = vmatpush.msra.mxu0 0.0
    %917 = vmatpush.msra.mxu0 0.0
    %918 = vmatpush.msra.mxu0 0.0
    %919 = vmatpush.msra.mxu0 0.0
    %920 = vmatpush.msra.mxu0 %v743
    %921 = vmatpush.msra.mxu0 %v742
    %922 = vmatpush.msra.mxu0 %v741
    %923 = vmatpush.msra.mxu0 %v740
    %924 = vmatmul.f32.gmra.mxu0 %v906
    %v925 = vpop.f32.mrf.mxu0
    %v926 = vadd.f32 0.0, %v925
    %927 = vdwg.mxu0
    %v928 = vld [vmem:[%s8] sm:$0x1]
    %v929 = vld [vmem:[%s8 + $0x1] sm:$0x1]
    %v930 = vld [vmem:[%s8 + $0x2] sm:$0x1]
    %v931 = vld [vmem:[%s8 + $0x3] sm:$0x1]
    %v932 = vld [vmem:[%s8 + $0x4] sm:$0x1]
    %v933 = vld [vmem:[%s8 + $0x5] sm:$0x1]
    %v934 = vld [vmem:[%s8 + $0x6] sm:$0x1]
    %v935 = vld [vmem:[%s8 + $0x7] sm:$0x1]
    %v944 = vperm.slane %v928, 0
    %v945 = vperm.slane %v929, 0
    %v946 = vperm.slane %v930, 0
    %v947 = vperm.slane %v931, 0
    %v948 = vperm.slane %v932, 0
    %v949 = vperm.slane %v933, 0
    %v950 = vperm.slane %v934, 0
    %v951 = vperm.slane %v935, 0
    %v960 = vadd.f32 %v141, %v944
    %v961 = vadd.f32 %v164, %v945
    %v962 = vadd.f32 %v187, %v946
    %v963 = vadd.f32 %v210, %v947
    %v964 = vadd.f32 %v233, %v948
    %v965 = vadd.f32 %v256, %v949
    %v966 = vadd.f32 %v279, %v950
    %v967 = vadd.f32 %v302, %v951
    %v968 = vld [vmem:[%s9] sm:$0x1]
    %v969 = vld [vmem:[%s9 + $0x1] sm:$0x1]
    %v970 = vld [vmem:[%s9 + $0x2] sm:$0x1]
    %v971 = vld [vmem:[%s9 + $0x3] sm:$0x1]
    %v972 = vld [vmem:[%s9 + $0x4] sm:$0x1]
    %v973 = vld [vmem:[%s9 + $0x5] sm:$0x1]
    %v974 = vld [vmem:[%s9 + $0x6] sm:$0x1]
    %v975 = vld [vmem:[%s9 + $0x7] sm:$0x1]
    %v984 = vperm.slane %v968, 0
    %v985 = vperm.slane %v969, 0
    %v986 = vperm.slane %v970, 0
    %v987 = vperm.slane %v971, 0
    %v988 = vperm.slane %v972, 0
    %v989 = vperm.slane %v973, 0
    %v990 = vperm.slane %v974, 0
    %v991 = vperm.slane %v975, 0
    %v1000 = vadd.f32 %v141, %v984
    %v1001 = vadd.f32 %v164, %v985
    %v1002 = vadd.f32 %v187, %v986
    %v1003 = vadd.f32 %v210, %v987
    %v1004 = vadd.f32 %v233, %v988
    %v1005 = vadd.f32 %v256, %v989
    %v1006 = vadd.f32 %v279, %v990
    %v1007 = vadd.f32 %v302, %v991
    %vm1008 = vcmask 64512
    %v1010 = vsel %vm1008, %v960, 0
    %v1013 = vsel %vm1008, %v357, 0
    %1015 = vmatpush.xpose.msra.mxu0 0.0
    %1016 = vmatpush.xpose.msra.mxu0 0.0
    %1017 = vmatpush.xpose.msra.mxu0 0.0
    %1018 = vmatpush.xpose.msra.mxu0 0.0
    %1019 = vmatpush.xpose.msra.mxu0 0.0
    %1020 = vmatpush.xpose.msra.mxu0 0.0
    %1021 = vmatpush.xpose.msra.mxu0 0.0
    %1022 = vmatpush.xpose.msra.mxu0 0.0
    %1023 = vmatpush.xpose.msra.mxu0 0.0
    %1024 = vmatpush.xpose.msra.mxu0 0.0
    %1025 = vmatpush.xpose.msra.mxu0 0.0
    %1026 = vmatpush.xpose.msra.mxu0 0.0
    %1027 = vmatpush.xpose.msra.mxu0 0.0
    %1028 = vmatpush.xpose.msra.mxu0 0.0
    %1029 = vmatpush.xpose.msra.mxu0 0.0
    %1030 = vmatpush.xpose.msra.mxu0 %v1013
    %1031 = vmatmul.f32.gmra.mxu0 %v1010
    %v1032 = vpop.f32.mrf.mxu0
    %v1033 = vadd.f32 0.0, %v1032
    %1034 = vdwg.mxu0
    %v1036 = vsel %vm1008, %v961, 0
    %v1039 = vsel %vm1008, %v380, 0
    %1041 = vmatpush.xpose.msra.mxu0 0.0
    %1042 = vmatpush.xpose.msra.mxu0 0.0
    %1043 = vmatpush.xpose.msra.mxu0 0.0
    %1044 = vmatpush.xpose.msra.mxu0 0.0
    %1045 = vmatpush.xpose.msra.mxu0 0.0
    %1046 = vmatpush.xpose.msra.mxu0 0.0
    %1047 = vmatpush.xpose.msra.mxu0 0.0
    %1048 = vmatpush.xpose.msra.mxu0 0.0
    %1049 = vmatpush.xpose.msra.mxu0 0.0
    %1050 = vmatpush.xpose.msra.mxu0 0.0
    %1051 = vmatpush.xpose.msra.mxu0 0.0
    %1052 = vmatpush.xpose.msra.mxu0 0.0
    %1053 = vmatpush.xpose.msra.mxu0 0.0
    %1054 = vmatpush.xpose.msra.mxu0 0.0
    %1055 = vmatpush.xpose.msra.mxu0 0.0
    %1056 = vmatpush.xpose.msra.mxu0 %v1039
    %1057 = vmatmul.f32.gmra.mxu0 %v1036
    %v1058 = vpop.f32.mrf.mxu0
    %v1059 = vadd.f32 0.0, %v1058
    %1060 = vdwg.mxu0
    %v1062 = vsel %vm1008, %v962, 0
    %v1065 = vsel %vm1008, %v403, 0
    %1067 = vmatpush.xpose.msra.mxu0 0.0
    %1068 = vmatpush.xpose.msra.mxu0 0.0
    %1069 = vmatpush.xpose.msra.mxu0 0.0
    %1070 = vmatpush.xpose.msra.mxu0 0.0
    %1071 = vmatpush.xpose.msra.mxu0 0.0
    %1072 = vmatpush.xpose.msra.mxu0 0.0
    %1073 = vmatpush.xpose.msra.mxu0 0.0
    %1074 = vmatpush.xpose.msra.mxu0 0.0
    %1075 = vmatpush.xpose.msra.mxu0 0.0
    %1076 = vmatpush.xpose.msra.mxu0 0.0
    %1077 = vmatpush.xpose.msra.mxu0 0.0
    %1078 = vmatpush.xpose.msra.mxu0 0.0
    %1079 = vmatpush.xpose.msra.mxu0 0.0
    %1080 = vmatpush.xpose.msra.mxu0 0.0
    %1081 = vmatpush.xpose.msra.mxu0 0.0
    %1082 = vmatpush.xpose.msra.mxu0 %v1065
    %1083 = vmatmul.f32.gmra.mxu0 %v1062
    %v1084 = vpop.f32.mrf.mxu0
    %v1085 = vadd.f32 0.0, %v1084
    %1086 = vdwg.mxu0
    %v1088 = vsel %vm1008, %v963, 0
    %v1091 = vsel %vm1008, %v426, 0
    %1093 = vmatpush.xpose.msra.mxu0 0.0
    %1094 = vmatpush.xpose.msra.mxu0 0.0
    %1095 = vmatpush.xpose.msra.mxu0 0.0
    %1096 = vmatpush.xpose.msra.mxu0 0.0
    %1097 = vmatpush.xpose.msra.mxu0 0.0
    %1098 = vmatpush.xpose.msra.mxu0 0.0
    %1099 = vmatpush.xpose.msra.mxu0 0.0
    %1100 = vmatpush.xpose.msra.mxu0 0.0
    %1101 = vmatpush.xpose.msra.mxu0 0.0
    %1102 = vmatpush.xpose.msra.mxu0 0.0
    %1103 = vmatpush.xpose.msra.mxu0 0.0
    %1104 = vmatpush.xpose.msra.mxu0 0.0
    %1105 = vmatpush.xpose.msra.mxu0 0.0
    %1106 = vmatpush.xpose.msra.mxu0 0.0
    %1107 = vmatpush.xpose.msra.mxu0 0.0
    %1108 = vmatpush.xpose.msra.mxu0 %v1091
    %1109 = vmatmul.f32.gmra.mxu0 %v1088
    %v1110 = vpop.f32.mrf.mxu0
    %v1111 = vadd.f32 0.0, %v1110
    %1112 = vdwg.mxu0
    %v1114 = vsel %vm1008, %v964, 0
    %v1117 = vsel %vm1008, %v449, 0
    %1119 = vmatpush.xpose.msra.mxu0 0.0
    %1120 = vmatpush.xpose.msra.mxu0 0.0
    %1121 = vmatpush.xpose.msra.mxu0 0.0
    %1122 = vmatpush.xpose.msra.mxu0 0.0
    %1123 = vmatpush.xpose.msra.mxu0 0.0
    %1124 = vmatpush.xpose.msra.mxu0 0.0
    %1125 = vmatpush.xpose.msra.mxu0 0.0
    %1126 = vmatpush.xpose.msra.mxu0 0.0
    %1127 = vmatpush.xpose.msra.mxu0 0.0
    %1128 = vmatpush.xpose.msra.mxu0 0.0
    %1129 = vmatpush.xpose.msra.mxu0 0.0
    %1130 = vmatpush.xpose.msra.mxu0 0.0
    %1131 = vmatpush.xpose.msra.mxu0 0.0
    %1132 = vmatpush.xpose.msra.mxu0 0.0
    %1133 = vmatpush.xpose.msra.mxu0 0.0
    %1134 = vmatpush.xpose.msra.mxu0 %v1117
    %1135 = vmatmul.f32.gmra.mxu0 %v1114
    %v1136 = vpop.f32.mrf.mxu0
    %v1137 = vadd.f32 0.0, %v1136
    %1138 = vdwg.mxu0
    %v1140 = vsel %vm1008, %v965, 0
    %v1143 = vsel %vm1008, %v472, 0
    %1145 = vmatpush.xpose.msra.mxu0 0.0
    %1146 = vmatpush.xpose.msra.mxu0 0.0
    %1147 = vmatpush.xpose.msra.mxu0 0.0
    %1148 = vmatpush.xpose.msra.mxu0 0.0
    %1149 = vmatpush.xpose.msra.mxu0 0.0
    %1150 = vmatpush.xpose.msra.mxu0 0.0
    %1151 = vmatpush.xpose.msra.mxu0 0.0
    %1152 = vmatpush.xpose.msra.mxu0 0.0
    %1153 = vmatpush.xpose.msra.mxu0 0.0
    %1154 = vmatpush.xpose.msra.mxu0 0.0
    %1155 = vmatpush.xpose.msra.mxu0 0.0
    %1156 = vmatpush.xpose.msra.mxu0 0.0
    %1157 = vmatpush.xpose.msra.mxu0 0.0
    %1158 = vmatpush.xpose.msra.mxu0 0.0
    %1159 = vmatpush.xpose.msra.mxu0 0.0
    %1160 = vmatpush.xpose.msra.mxu0 %v1143
    %1161 = vmatmul.f32.gmra.mxu0 %v1140
    %v1162 = vpop.f32.mrf.mxu0
    %v1163 = vadd.f32 0.0, %v1162
    %1164 = vdwg.mxu0
    %v1166 = vsel %vm1008, %v966, 0
    %v1169 = vsel %vm1008, %v495, 0
    %1171 = vmatpush.xpose.msra.mxu0 0.0
    %1172 = vmatpush.xpose.msra.mxu0 0.0
    %1173 = vmatpush.xpose.msra.mxu0 0.0
    %1174 = vmatpush.xpose.msra.mxu0 0.0
    %1175 = vmatpush.xpose.msra.mxu0 0.0
    %1176 = vmatpush.xpose.msra.mxu0 0.0
    %1177 = vmatpush.xpose.msra.mxu0 0.0
    %1178 = vmatpush.xpose.msra.mxu0 0.0
    %1179 = vmatpush.xpose.msra.mxu0 0.0
    %1180 = vmatpush.xpose.msra.mxu0 0.0
    %1181 = vmatpush.xpose.msra.mxu0 0.0
    %1182 = vmatpush.xpose.msra.mxu0 0.0
    %1183 = vmatpush.xpose.msra.mxu0 0.0
    %1184 = vmatpush.xpose.msra.mxu0 0.0
    %1185 = vmatpush.xpose.msra.mxu0 0.0
    %1186 = vmatpush.xpose.msra.mxu0 %v1169
    %1187 = vmatmul.f32.gmra.mxu0 %v1166
    %v1188 = vpop.f32.mrf.mxu0
    %v1189 = vadd.f32 0.0, %v1188
    %1190 = vdwg.mxu0
    %v1192 = vsel %vm1008, %v967, 0
    %v1195 = vsel %vm1008, %v518, 0
    %1197 = vmatpush.xpose.msra.mxu0 0.0
    %1198 = vmatpush.xpose.msra.mxu0 0.0
    %1199 = vmatpush.xpose.msra.mxu0 0.0
    %1200 = vmatpush.xpose.msra.mxu0 0.0
    %1201 = vmatpush.xpose.msra.mxu0 0.0
    %1202 = vmatpush.xpose.msra.mxu0 0.0
    %1203 = vmatpush.xpose.msra.mxu0 0.0
    %1204 = vmatpush.xpose.msra.mxu0 0.0
    %1205 = vmatpush.xpose.msra.mxu0 0.0
    %1206 = vmatpush.xpose.msra.mxu0 0.0
    %1207 = vmatpush.xpose.msra.mxu0 0.0
    %1208 = vmatpush.xpose.msra.mxu0 0.0
    %1209 = vmatpush.xpose.msra.mxu0 0.0
    %1210 = vmatpush.xpose.msra.mxu0 0.0
    %1211 = vmatpush.xpose.msra.mxu0 0.0
    %1212 = vmatpush.xpose.msra.mxu0 %v1195
    %1213 = vmatmul.f32.gmra.mxu0 %v1192
    %v1214 = vpop.f32.mrf.mxu0
    %v1215 = vadd.f32 0.0, %v1214
    %1216 = vdwg.mxu0
    %v1218 = vsel %vm1008, %v1000, 0
    %v1221 = vsel %vm1008, %v765, 0
    %1223 = vmatpush.xpose.msra.mxu0 0.0
    %1224 = vmatpush.xpose.msra.mxu0 0.0
    %1225 = vmatpush.xpose.msra.mxu0 0.0
    %1226 = vmatpush.xpose.msra.mxu0 0.0
    %1227 = vmatpush.xpose.msra.mxu0 0.0
    %1228 = vmatpush.xpose.msra.mxu0 0.0
    %1229 = vmatpush.xpose.msra.mxu0 0.0
    %1230 = vmatpush.xpose.msra.mxu0 0.0
    %1231 = vmatpush.xpose.msra.mxu0 0.0
    %1232 = vmatpush.xpose.msra.mxu0 0.0
    %1233 = vmatpush.xpose.msra.mxu0 0.0
    %1234 = vmatpush.xpose.msra.mxu0 0.0
    %1235 = vmatpush.xpose.msra.mxu0 0.0
    %1236 = vmatpush.xpose.msra.mxu0 0.0
    %1237 = vmatpush.xpose.msra.mxu0 0.0
    %1238 = vmatpush.xpose.msra.mxu0 %v1221
    %1239 = vmatmul.f32.gmra.mxu0 %v1218
    %v1240 = vpop.f32.mrf.mxu0
    %v1241 = vadd.f32 0.0, %v1240
    %1242 = vdwg.mxu0
    %v1244 = vsel %vm1008, %v1001, 0
    %v1247 = vsel %vm1008, %v788, 0
    %1249 = vmatpush.xpose.msra.mxu0 0.0
    %1250 = vmatpush.xpose.msra.mxu0 0.0
    %1251 = vmatpush.xpose.msra.mxu0 0.0
    %1252 = vmatpush.xpose.msra.mxu0 0.0
    %1253 = vmatpush.xpose.msra.mxu0 0.0
    %1254 = vmatpush.xpose.msra.mxu0 0.0
    %1255 = vmatpush.xpose.msra.mxu0 0.0
    %1256 = vmatpush.xpose.msra.mxu0 0.0
    %1257 = vmatpush.xpose.msra.mxu0 0.0
    %1258 = vmatpush.xpose.msra.mxu0 0.0
    %1259 = vmatpush.xpose.msra.mxu0 0.0
    %1260 = vmatpush.xpose.msra.mxu0 0.0
    %1261 = vmatpush.xpose.msra.mxu0 0.0
    %1262 = vmatpush.xpose.msra.mxu0 0.0
    %1263 = vmatpush.xpose.msra.mxu0 0.0
    %1264 = vmatpush.xpose.msra.mxu0 %v1247
    %1265 = vmatmul.f32.gmra.mxu0 %v1244
    %v1266 = vpop.f32.mrf.mxu0
    %v1267 = vadd.f32 0.0, %v1266
    %1268 = vdwg.mxu0
    %v1270 = vsel %vm1008, %v1002, 0
    %v1273 = vsel %vm1008, %v811, 0
    %1275 = vmatpush.xpose.msra.mxu0 0.0
    %1276 = vmatpush.xpose.msra.mxu0 0.0
    %1277 = vmatpush.xpose.msra.mxu0 0.0
    %1278 = vmatpush.xpose.msra.mxu0 0.0
    %1279 = vmatpush.xpose.msra.mxu0 0.0
    %1280 = vmatpush.xpose.msra.mxu0 0.0
    %1281 = vmatpush.xpose.msra.mxu0 0.0
    %1282 = vmatpush.xpose.msra.mxu0 0.0
    %1283 = vmatpush.xpose.msra.mxu0 0.0
    %1284 = vmatpush.xpose.msra.mxu0 0.0
    %1285 = vmatpush.xpose.msra.mxu0 0.0
    %1286 = vmatpush.xpose.msra.mxu0 0.0
    %1287 = vmatpush.xpose.msra.mxu0 0.0
    %1288 = vmatpush.xpose.msra.mxu0 0.0
    %1289 = vmatpush.xpose.msra.mxu0 0.0
    %1290 = vmatpush.xpose.msra.mxu0 %v1273
    %1291 = vmatmul.f32.gmra.mxu0 %v1270
    %v1292 = vpop.f32.mrf.mxu0
    %v1293 = vadd.f32 0.0, %v1292
    %1294 = vdwg.mxu0
    %v1296 = vsel %vm1008, %v1003, 0
    %v1299 = vsel %vm1008, %v834, 0
    %1301 = vmatpush.xpose.msra.mxu0 0.0
    %1302 = vmatpush.xpose.msra.mxu0 0.0
    %1303 = vmatpush.xpose.msra.mxu0 0.0
    %1304 = vmatpush.xpose.msra.mxu0 0.0
    %1305 = vmatpush.xpose.msra.mxu0 0.0
    %1306 = vmatpush.xpose.msra.mxu0 0.0
    %1307 = vmatpush.xpose.msra.mxu0 0.0
    %1308 = vmatpush.xpose.msra.mxu0 0.0
    %1309 = vmatpush.xpose.msra.mxu0 0.0
    %1310 = vmatpush.xpose.msra.mxu0 0.0
    %1311 = vmatpush.xpose.msra.mxu0 0.0
    %1312 = vmatpush.xpose.msra.mxu0 0.0
    %1313 = vmatpush.xpose.msra.mxu0 0.0
    %1314 = vmatpush.xpose.msra.mxu0 0.0
    %1315 = vmatpush.xpose.msra.mxu0 0.0
    %1316 = vmatpush.xpose.msra.mxu0 %v1299
    %1317 = vmatmul.f32.gmra.mxu0 %v1296
    %v1318 = vpop.f32.mrf.mxu0
    %v1319 = vadd.f32 0.0, %v1318
    %1320 = vdwg.mxu0
    %v1322 = vsel %vm1008, %v1004, 0
    %v1325 = vsel %vm1008, %v857, 0
    %1327 = vmatpush.xpose.msra.mxu0 0.0
    %1328 = vmatpush.xpose.msra.mxu0 0.0
    %1329 = vmatpush.xpose.msra.mxu0 0.0
    %1330 = vmatpush.xpose.msra.mxu0 0.0
    %1331 = vmatpush.xpose.msra.mxu0 0.0
    %1332 = vmatpush.xpose.msra.mxu0 0.0
    %1333 = vmatpush.xpose.msra.mxu0 0.0
    %1334 = vmatpush.xpose.msra.mxu0 0.0
    %1335 = vmatpush.xpose.msra.mxu0 0.0
    %1336 = vmatpush.xpose.msra.mxu0 0.0
    %1337 = vmatpush.xpose.msra.mxu0 0.0
    %1338 = vmatpush.xpose.msra.mxu0 0.0
    %1339 = vmatpush.xpose.msra.mxu0 0.0
    %1340 = vmatpush.xpose.msra.mxu0 0.0
    %1341 = vmatpush.xpose.msra.mxu0 0.0
    %1342 = vmatpush.xpose.msra.mxu0 %v1325
    %1343 = vmatmul.f32.gmra.mxu0 %v1322
    %v1344 = vpop.f32.mrf.mxu0
    %v1345 = vadd.f32 0.0, %v1344
    %1346 = vdwg.mxu0
    %v1348 = vsel %vm1008, %v1005, 0
    %v1351 = vsel %vm1008, %v880, 0
    %1353 = vmatpush.xpose.msra.mxu0 0.0
    %1354 = vmatpush.xpose.msra.mxu0 0.0
    %1355 = vmatpush.xpose.msra.mxu0 0.0
    %1356 = vmatpush.xpose.msra.mxu0 0.0
    %1357 = vmatpush.xpose.msra.mxu0 0.0
    %1358 = vmatpush.xpose.msra.mxu0 0.0
    %1359 = vmatpush.xpose.msra.mxu0 0.0
    %1360 = vmatpush.xpose.msra.mxu0 0.0
    %1361 = vmatpush.xpose.msra.mxu0 0.0
    %1362 = vmatpush.xpose.msra.mxu0 0.0
    %1363 = vmatpush.xpose.msra.mxu0 0.0
    %1364 = vmatpush.xpose.msra.mxu0 0.0
    %1365 = vmatpush.xpose.msra.mxu0 0.0
    %1366 = vmatpush.xpose.msra.mxu0 0.0
    %1367 = vmatpush.xpose.msra.mxu0 0.0
    %1368 = vmatpush.xpose.msra.mxu0 %v1351
    %1369 = vmatmul.f32.gmra.mxu0 %v1348
    %v1370 = vpop.f32.mrf.mxu0
    %v1371 = vadd.f32 0.0, %v1370
    %1372 = vdwg.mxu0
    %v1374 = vsel %vm1008, %v1006, 0
    %v1377 = vsel %vm1008, %v903, 0
    %1379 = vmatpush.xpose.msra.mxu0 0.0
    %1380 = vmatpush.xpose.msra.mxu0 0.0
    %1381 = vmatpush.xpose.msra.mxu0 0.0
    %1382 = vmatpush.xpose.msra.mxu0 0.0
    %1383 = vmatpush.xpose.msra.mxu0 0.0
    %1384 = vmatpush.xpose.msra.mxu0 0.0
    %1385 = vmatpush.xpose.msra.mxu0 0.0
    %1386 = vmatpush.xpose.msra.mxu0 0.0
    %1387 = vmatpush.xpose.msra.mxu0 0.0
    %1388 = vmatpush.xpose.msra.mxu0 0.0
    %1389 = vmatpush.xpose.msra.mxu0 0.0
    %1390 = vmatpush.xpose.msra.mxu0 0.0
    %1391 = vmatpush.xpose.msra.mxu0 0.0
    %1392 = vmatpush.xpose.msra.mxu0 0.0
    %1393 = vmatpush.xpose.msra.mxu0 0.0
    %1394 = vmatpush.xpose.msra.mxu0 %v1377
    %1395 = vmatmul.f32.gmra.mxu0 %v1374
    %v1396 = vpop.f32.mrf.mxu0
    %v1397 = vadd.f32 0.0, %v1396
    %1398 = vdwg.mxu0
    %v1400 = vsel %vm1008, %v1007, 0
    %v1403 = vsel %vm1008, %v926, 0
    %1405 = vmatpush.xpose.msra.mxu0 0.0
    %1406 = vmatpush.xpose.msra.mxu0 0.0
    %1407 = vmatpush.xpose.msra.mxu0 0.0
    %1408 = vmatpush.xpose.msra.mxu0 0.0
    %1409 = vmatpush.xpose.msra.mxu0 0.0
    %1410 = vmatpush.xpose.msra.mxu0 0.0
    %1411 = vmatpush.xpose.msra.mxu0 0.0
    %1412 = vmatpush.xpose.msra.mxu0 0.0
    %1413 = vmatpush.xpose.msra.mxu0 0.0
    %1414 = vmatpush.xpose.msra.mxu0 0.0
    %1415 = vmatpush.xpose.msra.mxu0 0.0
    %1416 = vmatpush.xpose.msra.mxu0 0.0
    %1417 = vmatpush.xpose.msra.mxu0 0.0
    %1418 = vmatpush.xpose.msra.mxu0 0.0
    %1419 = vmatpush.xpose.msra.mxu0 0.0
    %1420 = vmatpush.xpose.msra.mxu0 %v1403
    %1421 = vmatmul.f32.gmra.mxu0 %v1400
    %v1422 = vpop.f32.mrf.mxu0
    %v1423 = vadd.f32 0.0, %v1422
    %1424 = vdwg.mxu0
    %vm1425 = vcmask 588800
    %1426 = vst.msk [vmem:[#allocation2] sm:$0xff] %vm1425, 0.0
    %v1435 = vrot.slane %v1267, 7
    %vm1436 = vcmask 1041409
    %v1437 = vsel %vm1436, %v1435, %v1241
    %v1438 = vrot.slane %v1293, 6
    %vm1439 = vcmask 1042434
    %v1440 = vsel %vm1439, %v1438, %v1437
    %v1441 = vrot.slane %v1319, 5
    %vm1442 = vcmask 1043459
    %v1443 = vsel %vm1442, %v1441, %v1440
    %v1444 = vrot.slane %v1345, 4
    %vm1445 = vcmask 1044484
    %v1446 = vsel %vm1445, %v1444, %v1443
    %v1447 = vrot.slane %v1371, 3
    %vm1448 = vcmask 1045509
    %v1449 = vsel %vm1448, %v1447, %v1446
    %v1450 = vrot.slane %v1397, 2
    %vm1451 = vcmask 1046534
    %v1452 = vsel %vm1451, %v1450, %v1449
    %v1453 = vrot.slane %v1423, 1
    %vm1454 = vcmask 1047559
    %v1455 = vsel %vm1454, %v1453, %v1452
    %1456 = vrot.lane.b32.xlu0 %v1455, 1
    %v1457 = vpop.permute.xlu0 %1456
    %vm1459 = vcmask 72712
    %1460 = vst.msk [vmem:[#allocation2] sm:$0xff] %vm1459, %v1457
    %v1461 = vsel %vm1439, %v1435, %v1241
    %v1462 = vsel %vm1442, %v1438, %v1461
    %v1463 = vsel %vm1445, %v1441, %v1462
    %v1464 = vsel %vm1448, %v1444, %v1463
    %v1465 = vsel %vm1451, %v1447, %v1464
    %v1466 = vsel %vm1454, %v1450, %v1465
    %1467 = vrot.lane.b32.xlu0 %v1466, 10
    %v1468 = vpop.permute.xlu0 %1467
    %1469 = vrot.lane.b32.xlu0 %v1453, 10
    %v1470 = vpop.permute.xlu0 %1469
    %vm1473 = vcmask 146513
    %1474 = vst.msk [vmem:[#allocation2 - $0x1] sm:$0xfe] %vm1473, %v1468
    %vm1475 = vcmask 139344
    %1476 = vst.msk [vmem:[#allocation2 + $0x7] sm:$0x1] %vm1475, %v1470
    %v1477 = vsel %vm1442, %v1435, %v1241
    %v1478 = vsel %vm1445, %v1438, %v1477
    %v1479 = vsel %vm1448, %v1441, %v1478
    %v1480 = vsel %vm1451, %v1444, %v1479
    %v1481 = vsel %vm1454, %v1447, %v1480
    %v1482 = vsel %vm1436, %v1453, %v1450
    %1483 = vrot.lane.b32.xlu0 %v1481, 19
    %v1484 = vpop.permute.xlu0 %1483
    %1485 = vrot.lane.b32.xlu0 %v1482, 19
    %v1486 = vpop.permute.xlu0 %1485
    %vm1489 = vcmask 220314
    %1490 = vst.msk [vmem:[#allocation2 - $0x2] sm:$0xfc] %vm1489, %v1484
    %vm1491 = vcmask 214168
    %1492 = vst.msk [vmem:[#allocation2 + $0x6] sm:$0x3] %vm1491, %v1486
    %v1493 = vsel %vm1445, %v1435, %v1241
    %v1494 = vsel %vm1448, %v1438, %v1493
    %v1495 = vsel %vm1451, %v1441, %v1494
    %v1496 = vsel %vm1454, %v1444, %v1495
    %v1497 = vsel %vm1436, %v1450, %v1447
    %v1498 = vsel %vm1439, %v1453, %v1497
    %1499 = vrot.lane.b32.xlu0 %v1496, 28
    %v1500 = vpop.permute.xlu0 %1499
    %1501 = vrot.lane.b32.xlu0 %v1498, 28
    %v1502 = vpop.permute.xlu0 %1501
    %vm1505 = vcmask 294115
    %1506 = vst.msk [vmem:[#allocation2 - $0x3] sm:$0xf8] %vm1505, %v1500
    %vm1507 = vcmask 288992
    %1508 = vst.msk [vmem:[#allocation2 + $0x5] sm:$0x7] %vm1507, %v1502
    %v1509 = vsel %vm1448, %v1435, %v1241
    %v1510 = vsel %vm1451, %v1438, %v1509
    %v1511 = vsel %vm1454, %v1441, %v1510
    %v1512 = vsel %vm1436, %v1447, %v1444
    %v1513 = vsel %vm1439, %v1450, %v1512
    %v1514 = vsel %vm1442, %v1453, %v1513
    %1515 = vrot.lane.b32.xlu0 %v1511, 37
    %v1516 = vpop.permute.xlu0 %1515
    %1517 = vrot.lane.b32.xlu0 %v1514, 37
    %v1518 = vpop.permute.xlu0 %1517
    %vm1521 = vcmask 367916
    %1522 = vst.msk [vmem:[#allocation2 - $0x4] sm:$0xf0] %vm1521, %v1516
    %vm1523 = vcmask 363816
    %1524 = vst.msk [vmem:[#allocation2 + $0x4] sm:$0xf] %vm1523, %v1518
    %v1525 = vsel %vm1451, %v1435, %v1241
    %v1526 = vsel %vm1454, %v1438, %v1525
    %v1527 = vsel %vm1436, %v1444, %v1441
    %v1528 = vsel %vm1439, %v1447, %v1527
    %v1529 = vsel %vm1442, %v1450, %v1528
    %v1530 = vsel %vm1445, %v1453, %v1529
    %1531 = vrot.lane.b32.xlu0 %v1526, 46
    %v1532 = vpop.permute.xlu0 %1531
    %1533 = vrot.lane.b32.xlu0 %v1530, 46
    %v1534 = vpop.permute.xlu0 %1533
    %vm1537 = vcmask 441717
    %1538 = vst.msk [vmem:[#allocation2 - $0x5] sm:$0xe0] %vm1537, %v1532
    %vm1539 = vcmask 438640
    %1540 = vst.msk [vmem:[#allocation2 + $0x3] sm:$0x1f] %vm1539, %v1534
    %v1541 = vsel %vm1454, %v1435, %v1241
    %v1542 = vsel %vm1436, %v1441, %v1438
    %v1543 = vsel %vm1439, %v1444, %v1542
    %v1544 = vsel %vm1442, %v1447, %v1543
    %v1545 = vsel %vm1445, %v1450, %v1544
    %v1546 = vsel %vm1448, %v1453, %v1545
    %1547 = vrot.lane.b32.xlu0 %v1541, 55
    %v1548 = vpop.permute.xlu0 %1547
    %1549 = vrot.lane.b32.xlu0 %v1546, 55
    %v1550 = vpop.permute.xlu0 %1549
    %vm1553 = vcmask 515518
    %1554 = vst.msk [vmem:[#allocation2 - $0x6] sm:$0xc0] %vm1553, %v1548
    %vm1555 = vcmask 513464
    %1556 = vst.msk [vmem:[#allocation2 + $0x2] sm:$0x3f] %vm1555, %v1550
    %v1557 = vsel %vm1436, %v1438, %v1435
    %v1558 = vsel %vm1439, %v1441, %v1557
    %v1559 = vsel %vm1442, %v1444, %v1558
    %v1560 = vsel %vm1445, %v1447, %v1559
    %v1561 = vsel %vm1448, %v1450, %v1560
    %v1562 = vsel %vm1451, %v1453, %v1561
    %1563 = vrot.lane.b32.xlu0 %v1241, 64
    %v1564 = vpop.permute.xlu0 %1563
    %1565 = vrot.lane.b32.xlu0 %v1562, 64
    %v1566 = vpop.permute.xlu0 %1565
    %vm1569 = vcmask 589319
    %1570 = vst.msk [vmem:[#allocation2 - $0x7] sm:$0x80] %vm1569, %v1564
    %vm1571 = vcmask 588288
    %1572 = vst.msk [vmem:[#allocation2 + $0x1] sm:$0x7f] %vm1571, %v1566
    %v1573 = vld [vmem:[#allocation2] sm:$0xff]
    %v1575 = vrot.slane %v1573, 1
    %v1576 = vrot.slane %v1573, 2
    %v1577 = vrot.slane %v1573, 3
    %v1578 = vrot.slane %v1573, 4
    %v1579 = vrot.slane %v1573, 5
    %v1580 = vrot.slane %v1573, 6
    %v1581 = vrot.slane %v1573, 7
    %1582 = vrot.lane.b32.xlu0 %v1573, 120
    %v1583 = vpop.permute.xlu0 %1582
    %1584 = vrot.lane.b32.xlu0 %v1575, 120
    %v1585 = vpop.permute.xlu0 %1584
    %1586 = vrot.lane.b32.xlu0 %v1576, 120
    %v1587 = vpop.permute.xlu0 %1586
    %1588 = vrot.lane.b32.xlu0 %v1577, 120
    %v1589 = vpop.permute.xlu0 %1588
    %1590 = vrot.lane.b32.xlu0 %v1578, 120
    %v1591 = vpop.permute.xlu0 %1590
    %1592 = vrot.lane.b32.xlu0 %v1579, 120
    %v1593 = vpop.permute.xlu0 %1592
    %1594 = vrot.lane.b32.xlu0 %v1580, 120
    %v1595 = vpop.permute.xlu0 %1594
    %1596 = vrot.lane.b32.xlu0 %v1581, 120
    %v1597 = vpop.permute.xlu0 %1596
    %v1606 = vadd.f32 %v1033, %v1583
    %v1607 = vadd.f32 %v1059, %v1585
    %v1608 = vadd.f32 %v1085, %v1587
    %v1609 = vadd.f32 %v1111, %v1589
    %v1610 = vadd.f32 %v1137, %v1591
    %v1611 = vadd.f32 %v1163, %v1593
    %v1612 = vadd.f32 %v1189, %v1595
    %v1613 = vadd.f32 %v1215, %v1597
    %vm1614 = vcmask 57344
    %1615 = vst.msk [vmem:[#allocation3] sm:$0x1] %vm1614, %v1606
    %1616 = vst.msk [vmem:[#allocation3 + $0x8] sm:$0x1] %vm1614, %v1607
    %1617 = vst.msk [vmem:[#allocation3 + $0x10] sm:$0x1] %vm1614, %v1608
    %1618 = vst.msk [vmem:[#allocation3 + $0x18] sm:$0x1] %vm1614, %v1609
    %1619 = vst.msk [vmem:[#allocation3 + $0x20] sm:$0x1] %vm1614, %v1610
    %1620 = vst.msk [vmem:[#allocation3 + $0x28] sm:$0x1] %vm1614, %v1611
    %1621 = vst.msk [vmem:[#allocation3 + $0x30] sm:$0x1] %vm1614, %v1612
    %1622 = vst.msk [vmem:[#allocation3 + $0x38] sm:$0x1] %vm1614, %v1613
    %v1623 = vld [vmem:[#allocation2] sm:$0xff]
    %v1625 = vrot.slane %v1623, 7
    %v1626 = vrot.slane %v1623, 1
    %v1627 = vrot.slane %v1623, 2
    %v1628 = vrot.slane %v1623, 3
    %v1629 = vrot.slane %v1623, 4
    %v1630 = vrot.slane %v1623, 5
    %v1631 = vrot.slane %v1623, 6
    %1632 = vrot.lane.b32.xlu0 %v1625, 112
    %v1633 = vpop.permute.xlu0 %1632
    %1634 = vrot.lane.b32.xlu0 %v1623, 112
    %v1635 = vpop.permute.xlu0 %1634
    %1636 = vrot.lane.b32.xlu0 %v1626, 112
    %v1637 = vpop.permute.xlu0 %1636
    %1638 = vrot.lane.b32.xlu0 %v1627, 112
    %v1639 = vpop.permute.xlu0 %1638
    %1640 = vrot.lane.b32.xlu0 %v1628, 112
    %v1641 = vpop.permute.xlu0 %1640
    %1642 = vrot.lane.b32.xlu0 %v1629, 112
    %v1643 = vpop.permute.xlu0 %1642
    %1644 = vrot.lane.b32.xlu0 %v1630, 112
    %v1645 = vpop.permute.xlu0 %1644
    %1646 = vrot.lane.b32.xlu0 %v1631, 112
    %v1647 = vpop.permute.xlu0 %1646
    %v1656 = vadd.f32 %v1033, %v1633
    %v1657 = vadd.f32 %v1059, %v1635
    %v1658 = vadd.f32 %v1085, %v1637
    %v1659 = vadd.f32 %v1111, %v1639
    %v1660 = vadd.f32 %v1137, %v1641
    %v1661 = vadd.f32 %v1163, %v1643
    %v1662 = vadd.f32 %v1189, %v1645
    %v1663 = vadd.f32 %v1215, %v1647
    %vm1664 = vcmask 58369
    %1665 = vst.msk [vmem:[#allocation3] sm:$0x2] %vm1664, %v1656
    %1666 = vst.msk [vmem:[#allocation3 + $0x8] sm:$0x2] %vm1664, %v1657
    %1667 = vst.msk [vmem:[#allocation3 + $0x10] sm:$0x2] %vm1664, %v1658
    %1668 = vst.msk [vmem:[#allocation3 + $0x18] sm:$0x2] %vm1664, %v1659
    %1669 = vst.msk [vmem:[#allocation3 + $0x20] sm:$0x2] %vm1664, %v1660
    %1670 = vst.msk [vmem:[#allocation3 + $0x28] sm:$0x2] %vm1664, %v1661
    %1671 = vst.msk [vmem:[#allocation3 + $0x30] sm:$0x2] %vm1664, %v1662
    %1672 = vst.msk [vmem:[#allocation3 + $0x38] sm:$0x2] %vm1664, %v1663
    %v1673 = vld [vmem:[#allocation2] sm:$0xff]
    %v1675 = vrot.slane %v1673, 6
    %v1676 = vrot.slane %v1673, 7
    %v1677 = vrot.slane %v1673, 1
    %v1678 = vrot.slane %v1673, 2
    %v1679 = vrot.slane %v1673, 3
    %v1680 = vrot.slane %v1673, 4
    %v1681 = vrot.slane %v1673, 5
    %1682 = vrot.lane.b32.xlu0 %v1675, 104
    %v1683 = vpop.permute.xlu0 %1682
    %1684 = vrot.lane.b32.xlu0 %v1676, 104
    %v1685 = vpop.permute.xlu0 %1684
    %1686 = vrot.lane.b32.xlu0 %v1673, 104
    %v1687 = vpop.permute.xlu0 %1686
    %1688 = vrot.lane.b32.xlu0 %v1677, 104
    %v1689 = vpop.permute.xlu0 %1688
    %1690 = vrot.lane.b32.xlu0 %v1678, 104
    %v1691 = vpop.permute.xlu0 %1690
    %1692 = vrot.lane.b32.xlu0 %v1679, 104
    %v1693 = vpop.permute.xlu0 %1692
    %1694 = vrot.lane.b32.xlu0 %v1680, 104
    %v1695 = vpop.permute.xlu0 %1694
    %1696 = vrot.lane.b32.xlu0 %v1681, 104
    %v1697 = vpop.permute.xlu0 %1696
    %v1706 = vadd.f32 %v1033, %v1683
    %v1707 = vadd.f32 %v1059, %v1685
    %v1708 = vadd.f32 %v1085, %v1687
    %v1709 = vadd.f32 %v1111, %v1689
    %v1710 = vadd.f32 %v1137, %v1691
    %v1711 = vadd.f32 %v1163, %v1693
    %v1712 = vadd.f32 %v1189, %v1695
    %v1713 = vadd.f32 %v1215, %v1697
    %vm1714 = vcmask 59394
    %1715 = vst.msk [vmem:[#allocation3] sm:$0x4] %vm1714, %v1706
    %1716 = vst.msk [vmem:[#allocation3 + $0x8] sm:$0x4] %vm1714, %v1707
    %1717 = vst.msk [vmem:[#allocation3 + $0x10] sm:$0x4] %vm1714, %v1708
    %1718 = vst.msk [vmem:[#allocation3 + $0x18] sm:$0x4] %vm1714, %v1709
    %1719 = vst.msk [vmem:[#allocation3 + $0x20] sm:$0x4] %vm1714, %v1710
    %1720 = vst.msk [vmem:[#allocation3 + $0x28] sm:$0x4] %vm1714, %v1711
    %1721 = vst.msk [vmem:[#allocation3 + $0x30] sm:$0x4] %vm1714, %v1712
    %1722 = vst.msk [vmem:[#allocation3 + $0x38] sm:$0x4] %vm1714, %v1713
    %v1723 = vld [vmem:[#allocation2] sm:$0xff]
    %v1725 = vrot.slane %v1723, 5
    %v1726 = vrot.slane %v1723, 6
    %v1727 = vrot.slane %v1723, 7
    %v1728 = vrot.slane %v1723, 1
    %v1729 = vrot.slane %v1723, 2
    %v1730 = vrot.slane %v1723, 3
    %v1731 = vrot.slane %v1723, 4
    %1732 = vrot.lane.b32.xlu0 %v1725, 96
    %v1733 = vpop.permute.xlu0 %1732
    %1734 = vrot.lane.b32.xlu0 %v1726, 96
    %v1735 = vpop.permute.xlu0 %1734
    %1736 = vrot.lane.b32.xlu0 %v1727, 96
    %v1737 = vpop.permute.xlu0 %1736
    %1738 = vrot.lane.b32.xlu0 %v1723, 96
    %v1739 = vpop.permute.xlu0 %1738
    %1740 = vrot.lane.b32.xlu0 %v1728, 96
    %v1741 = vpop.permute.xlu0 %1740
    %1742 = vrot.lane.b32.xlu0 %v1729, 96
    %v1743 = vpop.permute.xlu0 %1742
    %1744 = vrot.lane.b32.xlu0 %v1730, 96
    %v1745 = vpop.permute.xlu0 %1744
    %1746 = vrot.lane.b32.xlu0 %v1731, 96
    %v1747 = vpop.permute.xlu0 %1746
    %v1756 = vadd.f32 %v1033, %v1733
    %v1757 = vadd.f32 %v1059, %v1735
    %v1758 = vadd.f32 %v1085, %v1737
    %v1759 = vadd.f32 %v1111, %v1739
    %v1760 = vadd.f32 %v1137, %v1741
    %v1761 = vadd.f32 %v1163, %v1743
    %v1762 = vadd.f32 %v1189, %v1745
    %v1763 = vadd.f32 %v1215, %v1747
    %vm1764 = vcmask 60419
    %1765 = vst.msk [vmem:[#allocation3] sm:$0x8] %vm1764, %v1756
    %1766 = vst.msk [vmem:[#allocation3 + $0x8] sm:$0x8] %vm1764, %v1757
    %1767 = vst.msk [vmem:[#allocation3 + $0x10] sm:$0x8] %vm1764, %v1758
    %1768 = vst.msk [vmem:[#allocation3 + $0x18] sm:$0x8] %vm1764, %v1759
    %1769 = vst.msk [vmem:[#allocation3 + $0x20] sm:$0x8] %vm1764, %v1760
    %1770 = vst.msk [vmem:[#allocation3 + $0x28] sm:$0x8] %vm1764, %v1761
    %1771 = vst.msk [vmem:[#allocation3 + $0x30] sm:$0x8] %vm1764, %v1762
    %1772 = vst.msk [vmem:[#allocation3 + $0x38] sm:$0x8] %vm1764, %v1763
    %v1773 = vld [vmem:[#allocation2] sm:$0xff]
    %v1775 = vrot.slane %v1773, 4
    %v1776 = vrot.slane %v1773, 5
    %v1777 = vrot.slane %v1773, 6
    %v1778 = vrot.slane %v1773, 7
    %v1779 = vrot.slane %v1773, 1
    %v1780 = vrot.slane %v1773, 2
    %v1781 = vrot.slane %v1773, 3
    %1782 = vrot.lane.b32.xlu0 %v1775, 88
    %v1783 = vpop.permute.xlu0 %1782
    %1784 = vrot.lane.b32.xlu0 %v1776, 88
    %v1785 = vpop.permute.xlu0 %1784
    %1786 = vrot.lane.b32.xlu0 %v1777, 88
    %v1787 = vpop.permute.xlu0 %1786
    %1788 = vrot.lane.b32.xlu0 %v1778, 88
    %v1789 = vpop.permute.xlu0 %1788
    %1790 = vrot.lane.b32.xlu0 %v1773, 88
    %v1791 = vpop.permute.xlu0 %1790
    %1792 = vrot.lane.b32.xlu0 %v1779, 88
    %v1793 = vpop.permute.xlu0 %1792
    %1794 = vrot.lane.b32.xlu0 %v1780, 88
    %v1795 = vpop.permute.xlu0 %1794
    %1796 = vrot.lane.b32.xlu0 %v1781, 88
    %v1797 = vpop.permute.xlu0 %1796
    %v1806 = vadd.f32 %v1033, %v1783
    %v1807 = vadd.f32 %v1059, %v1785
    %v1808 = vadd.f32 %v1085, %v1787
    %v1809 = vadd.f32 %v1111, %v1789
    %v1810 = vadd.f32 %v1137, %v1791
    %v1811 = vadd.f32 %v1163, %v1793
    %v1812 = vadd.f32 %v1189, %v1795
    %v1813 = vadd.f32 %v1215, %v1797
    %vm1814 = vcmask 61444
    %1815 = vst.msk [vmem:[#allocation3] sm:$0x10] %vm1814, %v1806
    %1816 = vst.msk [vmem:[#allocation3 + $0x8] sm:$0x10] %vm1814, %v1807
    %1817 = vst.msk [vmem:[#allocation3 + $0x10] sm:$0x10] %vm1814, %v1808
    %1818 = vst.msk [vmem:[#allocation3 + $0x18] sm:$0x10] %vm1814, %v1809
    %1819 = vst.msk [vmem:[#allocation3 + $0x20] sm:$0x10] %vm1814, %v1810
    %1820 = vst.msk [vmem:[#allocation3 + $0x28] sm:$0x10] %vm1814, %v1811
    %1821 = vst.msk [vmem:[#allocation3 + $0x30] sm:$0x10] %vm1814, %v1812
    %1822 = vst.msk [vmem:[#allocation3 + $0x38] sm:$0x10] %vm1814, %v1813
    %v1823 = vld [vmem:[#allocation2] sm:$0xff]
    %v1825 = vrot.slane %v1823, 3
    %v1826 = vrot.slane %v1823, 4
    %v1827 = vrot.slane %v1823, 5
    %v1828 = vrot.slane %v1823, 6
    %v1829 = vrot.slane %v1823, 7
    %v1830 = vrot.slane %v1823, 1
    %v1831 = vrot.slane %v1823, 2
    %1832 = vrot.lane.b32.xlu0 %v1825, 80
    %v1833 = vpop.permute.xlu0 %1832
    %1834 = vrot.lane.b32.xlu0 %v1826, 80
    %v1835 = vpop.permute.xlu0 %1834
    %1836 = vrot.lane.b32.xlu0 %v1827, 80
    %v1837 = vpop.permute.xlu0 %1836
    %1838 = vrot.lane.b32.xlu0 %v1828, 80
    %v1839 = vpop.permute.xlu0 %1838
    %1840 = vrot.lane.b32.xlu0 %v1829, 80
    %v1841 = vpop.permute.xlu0 %1840
    %1842 = vrot.lane.b32.xlu0 %v1823, 80
    %v1843 = vpop.permute.xlu0 %1842
    %1844 = vrot.lane.b32.xlu0 %v1830, 80
    %v1845 = vpop.permute.xlu0 %1844
    %1846 = vrot.lane.b32.xlu0 %v1831, 80
    %v1847 = vpop.permute.xlu0 %1846
    %v1856 = vadd.f32 %v1033, %v1833
    %v1857 = vadd.f32 %v1059, %v1835
    %v1858 = vadd.f32 %v1085, %v1837
    %v1859 = vadd.f32 %v1111, %v1839
    %v1860 = vadd.f32 %v1137, %v1841
    %v1861 = vadd.f32 %v1163, %v1843
    %v1862 = vadd.f32 %v1189, %v1845
    %v1863 = vadd.f32 %v1215, %v1847
    %vm1864 = vcmask 62469
    %1865 = vst.msk [vmem:[#allocation3] sm:$0x20] %vm1864, %v1856
    %1866 = vst.msk [vmem:[#allocation3 + $0x8] sm:$0x20] %vm1864, %v1857
    %1867 = vst.msk [vmem:[#allocation3 + $0x10] sm:$0x20] %vm1864, %v1858
    %1868 = vst.msk [vmem:[#allocation3 + $0x18] sm:$0x20] %vm1864, %v1859
    %1869 = vst.msk [vmem:[#allocation3 + $0x20] sm:$0x20] %vm1864, %v1860
    %1870 = vst.msk [vmem:[#allocation3 + $0x28] sm:$0x20] %vm1864, %v1861
    %1871 = vst.msk [vmem:[#allocation3 + $0x30] sm:$0x20] %vm1864, %v1862
    %1872 = vst.msk [vmem:[#allocation3 + $0x38] sm:$0x20] %vm1864, %v1863
    %v1873 = vld [vmem:[#allocation2] sm:$0xff]
    %v1875 = vrot.slane %v1873, 2
    %v1876 = vrot.slane %v1873, 3
    %v1877 = vrot.slane %v1873, 4
    %v1878 = vrot.slane %v1873, 5
    %v1879 = vrot.slane %v1873, 6
    %v1880 = vrot.slane %v1873, 7
    %v1881 = vrot.slane %v1873, 1
    %1882 = vrot.lane.b32.xlu0 %v1875, 72
    %v1883 = vpop.permute.xlu0 %1882
    %1884 = vrot.lane.b32.xlu0 %v1876, 72
    %v1885 = vpop.permute.xlu0 %1884
    %1886 = vrot.lane.b32.xlu0 %v1877, 72
    %v1887 = vpop.permute.xlu0 %1886
    %1888 = vrot.lane.b32.xlu0 %v1878, 72
    %v1889 = vpop.permute.xlu0 %1888
    %1890 = vrot.lane.b32.xlu0 %v1879, 72
    %v1891 = vpop.permute.xlu0 %1890
    %1892 = vrot.lane.b32.xlu0 %v1880, 72
    %v1893 = vpop.permute.xlu0 %1892
    %1894 = vrot.lane.b32.xlu0 %v1873, 72
    %v1895 = vpop.permute.xlu0 %1894
    %1896 = vrot.lane.b32.xlu0 %v1881, 72
    %v1897 = vpop.permute.xlu0 %1896
    %v1906 = vadd.f32 %v1033, %v1883
    %v1907 = vadd.f32 %v1059, %v1885
    %v1908 = vadd.f32 %v1085, %v1887
    %v1909 = vadd.f32 %v1111, %v1889
    %v1910 = vadd.f32 %v1137, %v1891
    %v1911 = vadd.f32 %v1163, %v1893
    %v1912 = vadd.f32 %v1189, %v1895
    %v1913 = vadd.f32 %v1215, %v1897
    %vm1914 = vcmask 63494
    %1915 = vst.msk [vmem:[#allocation3] sm:$0x40] %vm1914, %v1906
    %1916 = vst.msk [vmem:[#allocation3 + $0x8] sm:$0x40] %vm1914, %v1907
    %1917 = vst.msk [vmem:[#allocation3 + $0x10] sm:$0x40] %vm1914, %v1908
    %1918 = vst.msk [vmem:[#allocation3 + $0x18] sm:$0x40] %vm1914, %v1909
    %1919 = vst.msk [vmem:[#allocation3 + $0x20] sm:$0x40] %vm1914, %v1910
    %1920 = vst.msk [vmem:[#allocation3 + $0x28] sm:$0x40] %vm1914, %v1911
    %1921 = vst.msk [vmem:[#allocation3 + $0x30] sm:$0x40] %vm1914, %v1912
    %1922 = vst.msk [vmem:[#allocation3 + $0x38] sm:$0x40] %vm1914, %v1913
    %v1923 = vld [vmem:[#allocation2] sm:$0xff]
    %v1925 = vrot.slane %v1923, 1
    %v1926 = vrot.slane %v1923, 2
    %v1927 = vrot.slane %v1923, 3
    %v1928 = vrot.slane %v1923, 4
    %v1929 = vrot.slane %v1923, 5
    %v1930 = vrot.slane %v1923, 6
    %v1931 = vrot.slane %v1923, 7
    %1932 = vrot.lane.b32.xlu0 %v1925, 64
    %v1933 = vpop.permute.xlu0 %1932
    %1934 = vrot.lane.b32.xlu0 %v1926, 64
    %v1935 = vpop.permute.xlu0 %1934
    %1936 = vrot.lane.b32.xlu0 %v1927, 64
    %v1937 = vpop.permute.xlu0 %1936
    %1938 = vrot.lane.b32.xlu0 %v1928, 64
    %v1939 = vpop.permute.xlu0 %1938
    %1940 = vrot.lane.b32.xlu0 %v1929, 64
    %v1941 = vpop.permute.xlu0 %1940
    %1942 = vrot.lane.b32.xlu0 %v1930, 64
    %v1943 = vpop.permute.xlu0 %1942
    %1944 = vrot.lane.b32.xlu0 %v1931, 64
    %v1945 = vpop.permute.xlu0 %1944
    %1946 = vrot.lane.b32.xlu0 %v1923, 64
    %v1947 = vpop.permute.xlu0 %1946
    %v1956 = vadd.f32 %v1033, %v1933
    %v1957 = vadd.f32 %v1059, %v1935
    %v1958 = vadd.f32 %v1085, %v1937
    %v1959 = vadd.f32 %v1111, %v1939
    %v1960 = vadd.f32 %v1137, %v1941
    %v1961 = vadd.f32 %v1163, %v1943
    %v1962 = vadd.f32 %v1189, %v1945
    %v1963 = vadd.f32 %v1215, %v1947
    %vm1964 = vcmask 64519
    %1965 = vst.msk [vmem:[#allocation3] sm:$0x80] %vm1964, %v1956
    %1966 = vst.msk [vmem:[#allocation3 + $0x8] sm:$0x80] %vm1964, %v1957
    %1967 = vst.msk [vmem:[#allocation3 + $0x10] sm:$0x80] %vm1964, %v1958
    %1968 = vst.msk [vmem:[#allocation3 + $0x18] sm:$0x80] %vm1964, %v1959
    %1969 = vst.msk [vmem:[#allocation3 + $0x20] sm:$0x80] %vm1964, %v1960
    %1970 = vst.msk [vmem:[#allocation3 + $0x28] sm:$0x80] %vm1964, %v1961
    %1971 = vst.msk [vmem:[#allocation3 + $0x30] sm:$0x80] %vm1964, %v1962
    %1972 = vst.msk [vmem:[#allocation3 + $0x38] sm:$0x80] %vm1964, %v1963
    %v1973 = vld [vmem:[#allocation3] sm:$0xff]
    %v1974 = vld [vmem:[#allocation3 + $0x8] sm:$0xff]
    %v1975 = vld [vmem:[#allocation3 + $0x10] sm:$0xff]
    %v1976 = vld [vmem:[#allocation3 + $0x18] sm:$0xff]
    %v1977 = vld [vmem:[#allocation3 + $0x20] sm:$0xff]
    %v1978 = vld [vmem:[#allocation3 + $0x28] sm:$0xff]
    %v1979 = vld [vmem:[#allocation3 + $0x30] sm:$0xff]
    %v1980 = vld [vmem:[#allocation3 + $0x38] sm:$0xff]
    %v1981 = vmul.f32 %v1973, 0.35355338
    %v1982 = vmul.f32 %v1974, 0.35355338
    %v1983 = vmul.f32 %v1975, 0.35355338
    %v1984 = vmul.f32 %v1976, 0.35355338
    %v1985 = vmul.f32 %v1977, 0.35355338
    %v1986 = vmul.f32 %v1978, 0.35355338
    %v1987 = vmul.f32 %v1979, 0.35355338
    %v1988 = vmul.f32 %v1980, 0.35355338
    %v1989 = vsel %vm1008, %v1981, -inf
    %1990 = vmax.xlane.f32.xlu0 %v1989
    %v1991 = vpop.xlane.xlu0 %1990
    %v1992 = vsel %vm1008, %v1982, -inf
    %1993 = vmax.xlane.f32.xlu0 %v1992
    %v1994 = vpop.xlane.xlu0 %1993
    %v1995 = vsel %vm1008, %v1983, -inf
    %1996 = vmax.xlane.f32.xlu0 %v1995
    %v1997 = vpop.xlane.xlu0 %1996
    %v1998 = vsel %vm1008, %v1984, -inf
    %1999 = vmax.xlane.f32.xlu0 %v1998
    %v2000 = vpop.xlane.xlu0 %1999
    %v2001 = vsel %vm1008, %v1985, -inf
    %2002 = vmax.xlane.f32.xlu0 %v2001
    %v2003 = vpop.xlane.xlu0 %2002
    %v2004 = vsel %vm1008, %v1986, -inf
    %2005 = vmax.xlane.f32.xlu0 %v2004
    %v2006 = vpop.xlane.xlu0 %2005
    %v2007 = vsel %vm1008, %v1987, -inf
    %2008 = vmax.xlane.f32.xlu0 %v2007
    %v2009 = vpop.xlane.xlu0 %2008
    %v2010 = vsel %vm1008, %v1988, -inf
    %2011 = vmax.xlane.f32.xlu0 %v2010
    %v2012 = vpop.xlane.xlu0 %2011
    %v2013 = vsub.f32 %v1981, %v1991
    %v2014 = vsub.f32 %v1982, %v1994
    %v2015 = vsub.f32 %v1983, %v1997
    %v2016 = vsub.f32 %v1984, %v2000
    %v2017 = vsub.f32 %v1985, %v2003
    %v2018 = vsub.f32 %v1986, %v2006
    %v2019 = vsub.f32 %v1987, %v2009
    %v2020 = vsub.f32 %v1988, %v2012
    %v2021 = vmul.f32 %v2013, 1.442695
    %v2022 = vpow.pop %v2021
    %v2023 = vmul.f32 %v2014, 1.442695
    %v2024 = vpow.pop %v2023
    %v2025 = vmul.f32 %v2015, 1.442695
    %v2026 = vpow.pop %v2025
    %v2027 = vmul.f32 %v2016, 1.442695
    %v2028 = vpow.pop %v2027
    %v2029 = vmul.f32 %v2017, 1.442695
    %v2030 = vpow.pop %v2029
    %v2031 = vmul.f32 %v2018, 1.442695
    %v2032 = vpow.pop %v2031
    %v2033 = vmul.f32 %v2019, 1.442695
    %v2034 = vpow.pop %v2033
    %v2035 = vmul.f32 %v2020, 1.442695
    %v2036 = vpow.pop %v2035
    %v2037 = vsel %vm1008, %v2022, 0.0
    %2038 = vadd.xlane.f32.xlu0 %v2037
    %v2039 = vpop.xlane.xlu0 %2038
    %v2040 = vsel %vm1008, %v2024, 0.0
    %2041 = vadd.xlane.f32.xlu0 %v2040
    %v2042 = vpop.xlane.xlu0 %2041
    %v2043 = vsel %vm1008, %v2026, 0.0
    %2044 = vadd.xlane.f32.xlu0 %v2043
    %v2045 = vpop.xlane.xlu0 %2044
    %v2046 = vsel %vm1008, %v2028, 0.0
    %2047 = vadd.xlane.f32.xlu0 %v2046
    %v2048 = vpop.xlane.xlu0 %2047
    %v2049 = vsel %vm1008, %v2030, 0.0
    %2050 = vadd.xlane.f32.xlu0 %v2049
    %v2051 = vpop.xlane.xlu0 %2050
    %v2052 = vsel %vm1008, %v2032, 0.0
    %2053 = vadd.xlane.f32.xlu0 %v2052
    %v2054 = vpop.xlane.xlu0 %2053
    %v2055 = vsel %vm1008, %v2034, 0.0
    %2056 = vadd.xlane.f32.xlu0 %v2055
    %v2057 = vpop.xlane.xlu0 %2056
    %v2058 = vsel %vm1008, %v2036, 0.0
    %2059 = vadd.xlane.f32.xlu0 %v2058
    %v2060 = vpop.xlane.xlu0 %2059
    %v2061 = vrcp.pop %v2039
    %v2062 = vmul.f32 %v2039, %v2061
    %v2063 = vsub.f32 1.0, %v2062
    %v2064 = vmul.f32 %v2061, %v2063
    %v2065 = vadd.f32 %v2061, %v2064
    %vm2066 = vweird.f32 %v2039
    %vm2067 = vweird.f32 %v2061
    %vm2068 = vmor %vm2066, %vm2067
    %v2069 = vsel %vm2068, %v2061, %v2065
    %v2070 = vand.u32 2147483647, %v2039
    %vm2071 = vcmp.eq.f32.partialorder %v2070, 8.507059e+37
    %v2072 = vand.u32 %v2039, 2147483648
    %v2073 = vor.u32 1.1754944e-38, %v2072
    %v2074 = vsel %vm2071, %v2073, %v2069
    %v2075 = vmul.f32 %v2022, %v2074
    %v2076 = vrcp.pop %v2042
    %v2077 = vmul.f32 %v2042, %v2076
    %v2078 = vsub.f32 1.0, %v2077
    %v2079 = vmul.f32 %v2076, %v2078
    %v2080 = vadd.f32 %v2076, %v2079
    %vm2081 = vweird.f32 %v2042
    %vm2082 = vweird.f32 %v2076
    %vm2083 = vmor %vm2081, %vm2082
    %v2084 = vsel %vm2083, %v2076, %v2080
    %v2085 = vand.u32 2147483647, %v2042
    %vm2086 = vcmp.eq.f32.partialorder %v2085, 8.507059e+37
    %v2087 = vand.u32 %v2042, 2147483648
    %v2088 = vor.u32 1.1754944e-38, %v2087
    %v2089 = vsel %vm2086, %v2088, %v2084
    %v2090 = vmul.f32 %v2024, %v2089
    %v2091 = vrcp.pop %v2045
    %v2092 = vmul.f32 %v2045, %v2091
    %v2093 = vsub.f32 1.0, %v2092
    %v2094 = vmul.f32 %v2091, %v2093
    %v2095 = vadd.f32 %v2091, %v2094
    %vm2096 = vweird.f32 %v2045
    %vm2097 = vweird.f32 %v2091
    %vm2098 = vmor %vm2096, %vm2097
    %v2099 = vsel %vm2098, %v2091, %v2095
    %v2100 = vand.u32 2147483647, %v2045
    %vm2101 = vcmp.eq.f32.partialorder %v2100, 8.507059e+37
    %v2102 = vand.u32 %v2045, 2147483648
    %v2103 = vor.u32 1.1754944e-38, %v2102
    %v2104 = vsel %vm2101, %v2103, %v2099
    %v2105 = vmul.f32 %v2026, %v2104
    %v2106 = vrcp.pop %v2048
    %v2107 = vmul.f32 %v2048, %v2106
    %v2108 = vsub.f32 1.0, %v2107
    %v2109 = vmul.f32 %v2106, %v2108
    %v2110 = vadd.f32 %v2106, %v2109
    %vm2111 = vweird.f32 %v2048
    %vm2112 = vweird.f32 %v2106
    %vm2113 = vmor %vm2111, %vm2112
    %v2114 = vsel %vm2113, %v2106, %v2110
    %v2115 = vand.u32 2147483647, %v2048
    %vm2116 = vcmp.eq.f32.partialorder %v2115, 8.507059e+37
    %v2117 = vand.u32 %v2048, 2147483648
    %v2118 = vor.u32 1.1754944e-38, %v2117
    %v2119 = vsel %vm2116, %v2118, %v2114
    %v2120 = vmul.f32 %v2028, %v2119
    %v2121 = vrcp.pop %v2051
    %v2122 = vmul.f32 %v2051, %v2121
    %v2123 = vsub.f32 1.0, %v2122
    %v2124 = vmul.f32 %v2121, %v2123
    %v2125 = vadd.f32 %v2121, %v2124
    %vm2126 = vweird.f32 %v2051
    %vm2127 = vweird.f32 %v2121
    %vm2128 = vmor %vm2126, %vm2127
    %v2129 = vsel %vm2128, %v2121, %v2125
    %v2130 = vand.u32 2147483647, %v2051
    %vm2131 = vcmp.eq.f32.partialorder %v2130, 8.507059e+37
    %v2132 = vand.u32 %v2051, 2147483648
    %v2133 = vor.u32 1.1754944e-38, %v2132
    %v2134 = vsel %vm2131, %v2133, %v2129
    %v2135 = vmul.f32 %v2030, %v2134
    %v2136 = vrcp.pop %v2054
    %v2137 = vmul.f32 %v2054, %v2136
    %v2138 = vsub.f32 1.0, %v2137
    %v2139 = vmul.f32 %v2136, %v2138
    %v2140 = vadd.f32 %v2136, %v2139
    %vm2141 = vweird.f32 %v2054
    %vm2142 = vweird.f32 %v2136
    %vm2143 = vmor %vm2141, %vm2142
    %v2144 = vsel %vm2143, %v2136, %v2140
    %v2145 = vand.u32 2147483647, %v2054
    %vm2146 = vcmp.eq.f32.partialorder %v2145, 8.507059e+37
    %v2147 = vand.u32 %v2054, 2147483648
    %v2148 = vor.u32 1.1754944e-38, %v2147
    %v2149 = vsel %vm2146, %v2148, %v2144
    %v2150 = vmul.f32 %v2032, %v2149
    %v2151 = vrcp.pop %v2057
    %v2152 = vmul.f32 %v2057, %v2151
    %v2153 = vsub.f32 1.0, %v2152
    %v2154 = vmul.f32 %v2151, %v2153
    %v2155 = vadd.f32 %v2151, %v2154
    %vm2156 = vweird.f32 %v2057
    %vm2157 = vweird.f32 %v2151
    %vm2158 = vmor %vm2156, %vm2157
    %v2159 = vsel %vm2158, %v2151, %v2155
    %v2160 = vand.u32 2147483647, %v2057
    %vm2161 = vcmp.eq.f32.partialorder %v2160, 8.507059e+37
    %v2162 = vand.u32 %v2057, 2147483648
    %v2163 = vor.u32 1.1754944e-38, %v2162
    %v2164 = vsel %vm2161, %v2163, %v2159
    %v2165 = vmul.f32 %v2034, %v2164
    %v2166 = vrcp.pop %v2060
    %v2167 = vmul.f32 %v2060, %v2166
    %v2168 = vsub.f32 1.0, %v2167
    %v2169 = vmul.f32 %v2166, %v2168
    %v2170 = vadd.f32 %v2166, %v2169
    %vm2171 = vweird.f32 %v2060
    %vm2172 = vweird.f32 %v2166
    %vm2173 = vmor %vm2171, %vm2172
    %v2174 = vsel %vm2173, %v2166, %v2170
    %v2175 = vand.u32 2147483647, %v2060
    %vm2176 = vcmp.eq.f32.partialorder %v2175, 8.507059e+37
    %v2177 = vand.u32 %v2060, 2147483648
    %v2178 = vor.u32 1.1754944e-38, %v2177
    %v2179 = vsel %vm2176, %v2178, %v2174
    %v2180 = vmul.f32 %v2036, %v2179
    %v2182 = vsel %vm1008, %v2075, 0
    %2184 = vmatpush.msra.mxu0 0.0
    %2185 = vmatpush.msra.mxu0 0.0
    %2186 = vmatpush.msra.mxu0 0.0
    %2187 = vmatpush.msra.mxu0 0.0
    %2188 = vmatpush.msra.mxu0 0.0
    %2189 = vmatpush.msra.mxu0 0.0
    %2190 = vmatpush.msra.mxu0 0.0
    %2191 = vmatpush.msra.mxu0 0.0
    %2192 = vmatpush.msra.mxu0 0.0
    %2193 = vmatpush.msra.mxu0 0.0
    %2194 = vmatpush.msra.mxu0 0.0
    %2195 = vmatpush.msra.mxu0 0.0
    %2196 = vmatpush.msra.mxu0 0.0
    %2197 = vmatpush.msra.mxu0 0.0
    %2198 = vmatpush.msra.mxu0 0.0
    %2199 = vmatpush.msra.mxu0 %v570
    %2200 = vmatmul.f32.gmra.mxu0 %v2182
    %v2201 = vpop.f32.mrf.mxu0
    %v2202 = vadd.f32 0.0, %v2201
    %2203 = vdwg.mxu0
    %v2205 = vsel %vm1008, %v2090, 0
    %2207 = vmatpush.msra.mxu0 0.0
    %2208 = vmatpush.msra.mxu0 0.0
    %2209 = vmatpush.msra.mxu0 0.0
    %2210 = vmatpush.msra.mxu0 0.0
    %2211 = vmatpush.msra.mxu0 0.0
    %2212 = vmatpush.msra.mxu0 0.0
    %2213 = vmatpush.msra.mxu0 0.0
    %2214 = vmatpush.msra.mxu0 0.0
    %2215 = vmatpush.msra.mxu0 0.0
    %2216 = vmatpush.msra.mxu0 0.0
    %2217 = vmatpush.msra.mxu0 0.0
    %2218 = vmatpush.msra.mxu0 0.0
    %2219 = vmatpush.msra.mxu0 0.0
    %2220 = vmatpush.msra.mxu0 0.0
    %2221 = vmatpush.msra.mxu0 0.0
    %2222 = vmatpush.msra.mxu0 %v590
    %2223 = vmatmul.f32.gmra.mxu0 %v2205
    %v2224 = vpop.f32.mrf.mxu0
    %v2225 = vadd.f32 0.0, %v2224
    %2226 = vdwg.mxu0
    %v2228 = vsel %vm1008, %v2105, 0
    %2230 = vmatpush.msra.mxu0 0.0
    %2231 = vmatpush.msra.mxu0 0.0
    %2232 = vmatpush.msra.mxu0 0.0
    %2233 = vmatpush.msra.mxu0 0.0
    %2234 = vmatpush.msra.mxu0 0.0
    %2235 = vmatpush.msra.mxu0 0.0
    %2236 = vmatpush.msra.mxu0 0.0
    %2237 = vmatpush.msra.mxu0 0.0
    %2238 = vmatpush.msra.mxu0 0.0
    %2239 = vmatpush.msra.mxu0 0.0
    %2240 = vmatpush.msra.mxu0 0.0
    %2241 = vmatpush.msra.mxu0 0.0
    %2242 = vmatpush.msra.mxu0 0.0
    %2243 = vmatpush.msra.mxu0 0.0
    %2244 = vmatpush.msra.mxu0 0.0
    %2245 = vmatpush.msra.mxu0 %v610
    %2246 = vmatmul.f32.gmra.mxu0 %v2228
    %v2247 = vpop.f32.mrf.mxu0
    %v2248 = vadd.f32 0.0, %v2247
    %2249 = vdwg.mxu0
    %v2251 = vsel %vm1008, %v2120, 0
    %2253 = vmatpush.msra.mxu0 0.0
    %2254 = vmatpush.msra.mxu0 0.0
    %2255 = vmatpush.msra.mxu0 0.0
    %2256 = vmatpush.msra.mxu0 0.0
    %2257 = vmatpush.msra.mxu0 0.0
    %2258 = vmatpush.msra.mxu0 0.0
    %2259 = vmatpush.msra.mxu0 0.0
    %2260 = vmatpush.msra.mxu0 0.0
    %2261 = vmatpush.msra.mxu0 0.0
    %2262 = vmatpush.msra.mxu0 0.0
    %2263 = vmatpush.msra.mxu0 0.0
    %2264 = vmatpush.msra.mxu0 0.0
    %2265 = vmatpush.msra.mxu0 0.0
    %2266 = vmatpush.msra.mxu0 0.0
    %2267 = vmatpush.msra.mxu0 0.0
    %2268 = vmatpush.msra.mxu0 %v630
    %2269 = vmatmul.f32.gmra.mxu0 %v2251
    %v2270 = vpop.f32.mrf.mxu0
    %v2271 = vadd.f32 0.0, %v2270
    %2272 = vdwg.mxu0
    %v2274 = vsel %vm1008, %v2135, 0
    %2276 = vmatpush.msra.mxu0 0.0
    %2277 = vmatpush.msra.mxu0 0.0
    %2278 = vmatpush.msra.mxu0 0.0
    %2279 = vmatpush.msra.mxu0 0.0
    %2280 = vmatpush.msra.mxu0 0.0
    %2281 = vmatpush.msra.mxu0 0.0
    %2282 = vmatpush.msra.mxu0 0.0
    %2283 = vmatpush.msra.mxu0 0.0
    %2284 = vmatpush.msra.mxu0 0.0
    %2285 = vmatpush.msra.mxu0 0.0
    %2286 = vmatpush.msra.mxu0 0.0
    %2287 = vmatpush.msra.mxu0 0.0
    %2288 = vmatpush.msra.mxu0 0.0
    %2289 = vmatpush.msra.mxu0 0.0
    %2290 = vmatpush.msra.mxu0 0.0
    %2291 = vmatpush.msra.mxu0 %v650
    %2292 = vmatmul.f32.gmra.mxu0 %v2274
    %v2293 = vpop.f32.mrf.mxu0
    %v2294 = vadd.f32 0.0, %v2293
    %2295 = vdwg.mxu0
    %v2297 = vsel %vm1008, %v2150, 0
    %2299 = vmatpush.msra.mxu0 0.0
    %2300 = vmatpush.msra.mxu0 0.0
    %2301 = vmatpush.msra.mxu0 0.0
    %2302 = vmatpush.msra.mxu0 0.0
    %2303 = vmatpush.msra.mxu0 0.0
    %2304 = vmatpush.msra.mxu0 0.0
    %2305 = vmatpush.msra.mxu0 0.0
    %2306 = vmatpush.msra.mxu0 0.0
    %2307 = vmatpush.msra.mxu0 0.0
    %2308 = vmatpush.msra.mxu0 0.0
    %2309 = vmatpush.msra.mxu0 0.0
    %2310 = vmatpush.msra.mxu0 0.0
    %2311 = vmatpush.msra.mxu0 0.0
    %2312 = vmatpush.msra.mxu0 0.0
    %2313 = vmatpush.msra.mxu0 0.0
    %2314 = vmatpush.msra.mxu0 %v670
    %2315 = vmatmul.f32.gmra.mxu0 %v2297
    %v2316 = vpop.f32.mrf.mxu0
    %v2317 = vadd.f32 0.0, %v2316
    %2318 = vdwg.mxu0
    %v2320 = vsel %vm1008, %v2165, 0
    %2322 = vmatpush.msra.mxu0 0.0
    %2323 = vmatpush.msra.mxu0 0.0
    %2324 = vmatpush.msra.mxu0 0.0
    %2325 = vmatpush.msra.mxu0 0.0
    %2326 = vmatpush.msra.mxu0 0.0
    %2327 = vmatpush.msra.mxu0 0.0
    %2328 = vmatpush.msra.mxu0 0.0
    %2329 = vmatpush.msra.mxu0 0.0
    %2330 = vmatpush.msra.mxu0 0.0
    %2331 = vmatpush.msra.mxu0 0.0
    %2332 = vmatpush.msra.mxu0 0.0
    %2333 = vmatpush.msra.mxu0 0.0
    %2334 = vmatpush.msra.mxu0 0.0
    %2335 = vmatpush.msra.mxu0 0.0
    %2336 = vmatpush.msra.mxu0 0.0
    %2337 = vmatpush.msra.mxu0 %v690
    %2338 = vmatmul.f32.gmra.mxu0 %v2320
    %v2339 = vpop.f32.mrf.mxu0
    %v2340 = vadd.f32 0.0, %v2339
    %2341 = vdwg.mxu0
    %v2343 = vsel %vm1008, %v2180, 0
    %2345 = vmatpush.msra.mxu0 0.0
    %2346 = vmatpush.msra.mxu0 0.0
    %2347 = vmatpush.msra.mxu0 0.0
    %2348 = vmatpush.msra.mxu0 0.0
    %2349 = vmatpush.msra.mxu0 0.0
    %2350 = vmatpush.msra.mxu0 0.0
    %2351 = vmatpush.msra.mxu0 0.0
    %2352 = vmatpush.msra.mxu0 0.0
    %2353 = vmatpush.msra.mxu0 0.0
    %2354 = vmatpush.msra.mxu0 0.0
    %2355 = vmatpush.msra.mxu0 0.0
    %2356 = vmatpush.msra.mxu0 0.0
    %2357 = vmatpush.msra.mxu0 0.0
    %2358 = vmatpush.msra.mxu0 0.0
    %2359 = vmatpush.msra.mxu0 0.0
    %2360 = vmatpush.msra.mxu0 %v710
    %2361 = vmatmul.f32.gmra.mxu0 %v2343
    %v2362 = vpop.f32.mrf.mxu0
    %v2363 = vadd.f32 0.0, %v2362
    %2364 = vdwg.mxu0
    %v2365 = vld [vmem:[%s10] sm:$0xff]
    %v2366 = vld [vmem:[%s10 + $0x8] sm:$0xff]
    %v2367 = vld [vmem:[%s10 + $0x10] sm:$0xff]
    %v2368 = vld [vmem:[%s10 + $0x18] sm:$0xff]
    %v2369 = vld [vmem:[%s10 + $0x20] sm:$0xff]
    %v2370 = vld [vmem:[%s10 + $0x28] sm:$0xff]
    %v2371 = vld [vmem:[%s10 + $0x30] sm:$0xff]
    %v2372 = vld [vmem:[%s10 + $0x38] sm:$0xff]
    %v2374 = vsel %vm1008, %v2202, 0
    %2376 = vmatpush.msra.mxu0 0.0
    %2377 = vmatpush.msra.mxu0 0.0
    %2378 = vmatpush.msra.mxu0 0.0
    %2379 = vmatpush.msra.mxu0 0.0
    %2380 = vmatpush.msra.mxu0 0.0
    %2381 = vmatpush.msra.mxu0 0.0
    %2382 = vmatpush.msra.mxu0 0.0
    %2383 = vmatpush.msra.mxu0 0.0
    %2384 = vmatpush.msra.mxu0 0.0
    %2385 = vmatpush.msra.mxu0 0.0
    %2386 = vmatpush.msra.mxu0 0.0
    %2387 = vmatpush.msra.mxu0 0.0
    %2388 = vmatpush.msra.mxu0 0.0
    %2389 = vmatpush.msra.mxu0 0.0
    %2390 = vmatpush.msra.mxu0 0.0
    %2391 = vmatpush.msra.mxu0 %v2365
    %2392 = vmatmul.f32.gmra.mxu0 %v2374
    %v2393 = vpop.f32.mrf.mxu0
    %v2394 = vadd.f32 0.0, %v2393
    %2395 = vdwg.mxu0
    %v2397 = vsel %vm1008, %v2225, 0
    %2399 = vmatpush.msra.mxu0 0.0
    %2400 = vmatpush.msra.mxu0 0.0
    %2401 = vmatpush.msra.mxu0 0.0
    %2402 = vmatpush.msra.mxu0 0.0
    %2403 = vmatpush.msra.mxu0 0.0
    %2404 = vmatpush.msra.mxu0 0.0
    %2405 = vmatpush.msra.mxu0 0.0
    %2406 = vmatpush.msra.mxu0 0.0
    %2407 = vmatpush.msra.mxu0 0.0
    %2408 = vmatpush.msra.mxu0 0.0
    %2409 = vmatpush.msra.mxu0 0.0
    %2410 = vmatpush.msra.mxu0 0.0
    %2411 = vmatpush.msra.mxu0 0.0
    %2412 = vmatpush.msra.mxu0 0.0
    %2413 = vmatpush.msra.mxu0 0.0
    %2414 = vmatpush.msra.mxu0 %v2366
    %2415 = vmatmul.f32.gmra.mxu0 %v2397
    %v2416 = vpop.f32.mrf.mxu0
    %v2417 = vadd.f32 0.0, %v2416
    %2418 = vdwg.mxu0
    %v2420 = vsel %vm1008, %v2248, 0
    %2422 = vmatpush.msra.mxu0 0.0
    %2423 = vmatpush.msra.mxu0 0.0
    %2424 = vmatpush.msra.mxu0 0.0
    %2425 = vmatpush.msra.mxu0 0.0
    %2426 = vmatpush.msra.mxu0 0.0
    %2427 = vmatpush.msra.mxu0 0.0
    %2428 = vmatpush.msra.mxu0 0.0
    %2429 = vmatpush.msra.mxu0 0.0
    %2430 = vmatpush.msra.mxu0 0.0
    %2431 = vmatpush.msra.mxu0 0.0
    %2432 = vmatpush.msra.mxu0 0.0
    %2433 = vmatpush.msra.mxu0 0.0
    %2434 = vmatpush.msra.mxu0 0.0
    %2435 = vmatpush.msra.mxu0 0.0
    %2436 = vmatpush.msra.mxu0 0.0
    %2437 = vmatpush.msra.mxu0 %v2367
    %2438 = vmatmul.f32.gmra.mxu0 %v2420
    %v2439 = vpop.f32.mrf.mxu0
    %v2440 = vadd.f32 0.0, %v2439
    %2441 = vdwg.mxu0
    %v2443 = vsel %vm1008, %v2271, 0
    %2445 = vmatpush.msra.mxu0 0.0
    %2446 = vmatpush.msra.mxu0 0.0
    %2447 = vmatpush.msra.mxu0 0.0
    %2448 = vmatpush.msra.mxu0 0.0
    %2449 = vmatpush.msra.mxu0 0.0
    %2450 = vmatpush.msra.mxu0 0.0
    %2451 = vmatpush.msra.mxu0 0.0
    %2452 = vmatpush.msra.mxu0 0.0
    %2453 = vmatpush.msra.mxu0 0.0
    %2454 = vmatpush.msra.mxu0 0.0
    %2455 = vmatpush.msra.mxu0 0.0
    %2456 = vmatpush.msra.mxu0 0.0
    %2457 = vmatpush.msra.mxu0 0.0
    %2458 = vmatpush.msra.mxu0 0.0
    %2459 = vmatpush.msra.mxu0 0.0
    %2460 = vmatpush.msra.mxu0 %v2368
    %2461 = vmatmul.f32.gmra.mxu0 %v2443
    %v2462 = vpop.f32.mrf.mxu0
    %v2463 = vadd.f32 0.0, %v2462
    %2464 = vdwg.mxu0
    %v2466 = vsel %vm1008, %v2294, 0
    %2468 = vmatpush.msra.mxu0 0.0
    %2469 = vmatpush.msra.mxu0 0.0
    %2470 = vmatpush.msra.mxu0 0.0
    %2471 = vmatpush.msra.mxu0 0.0
    %2472 = vmatpush.msra.mxu0 0.0
    %2473 = vmatpush.msra.mxu0 0.0
    %2474 = vmatpush.msra.mxu0 0.0
    %2475 = vmatpush.msra.mxu0 0.0
    %2476 = vmatpush.msra.mxu0 0.0
    %2477 = vmatpush.msra.mxu0 0.0
    %2478 = vmatpush.msra.mxu0 0.0
    %2479 = vmatpush.msra.mxu0 0.0
    %2480 = vmatpush.msra.mxu0 0.0
    %2481 = vmatpush.msra.mxu0 0.0
    %2482 = vmatpush.msra.mxu0 0.0
    %2483 = vmatpush.msra.mxu0 %v2369
    %2484 = vmatmul.f32.gmra.mxu0 %v2466
    %v2485 = vpop.f32.mrf.mxu0
    %v2486 = vadd.f32 0.0, %v2485
    %2487 = vdwg.mxu0
    %v2489 = vsel %vm1008, %v2317, 0
    %2491 = vmatpush.msra.mxu0 0.0
    %2492 = vmatpush.msra.mxu0 0.0
    %2493 = vmatpush.msra.mxu0 0.0
    %2494 = vmatpush.msra.mxu0 0.0
    %2495 = vmatpush.msra.mxu0 0.0
    %2496 = vmatpush.msra.mxu0 0.0
    %2497 = vmatpush.msra.mxu0 0.0
    %2498 = vmatpush.msra.mxu0 0.0
    %2499 = vmatpush.msra.mxu0 0.0
    %2500 = vmatpush.msra.mxu0 0.0
    %2501 = vmatpush.msra.mxu0 0.0
    %2502 = vmatpush.msra.mxu0 0.0
    %2503 = vmatpush.msra.mxu0 0.0
    %2504 = vmatpush.msra.mxu0 0.0
    %2505 = vmatpush.msra.mxu0 0.0
    %2506 = vmatpush.msra.mxu0 %v2370
    %2507 = vmatmul.f32.gmra.mxu0 %v2489
    %v2508 = vpop.f32.mrf.mxu0
    %v2509 = vadd.f32 0.0, %v2508
    %2510 = vdwg.mxu0
    %v2512 = vsel %vm1008, %v2340, 0
    %2514 = vmatpush.msra.mxu0 0.0
    %2515 = vmatpush.msra.mxu0 0.0
    %2516 = vmatpush.msra.mxu0 0.0
    %2517 = vmatpush.msra.mxu0 0.0
    %2518 = vmatpush.msra.mxu0 0.0
    %2519 = vmatpush.msra.mxu0 0.0
    %2520 = vmatpush.msra.mxu0 0.0
    %2521 = vmatpush.msra.mxu0 0.0
    %2522 = vmatpush.msra.mxu0 0.0
    %2523 = vmatpush.msra.mxu0 0.0
    %2524 = vmatpush.msra.mxu0 0.0
    %2525 = vmatpush.msra.mxu0 0.0
    %2526 = vmatpush.msra.mxu0 0.0
    %2527 = vmatpush.msra.mxu0 0.0
    %2528 = vmatpush.msra.mxu0 0.0
    %2529 = vmatpush.msra.mxu0 %v2371
    %2530 = vmatmul.f32.gmra.mxu0 %v2512
    %v2531 = vpop.f32.mrf.mxu0
    %v2532 = vadd.f32 0.0, %v2531
    %2533 = vdwg.mxu0
    %v2535 = vsel %vm1008, %v2363, 0
    %2537 = vmatpush.msra.mxu0 0.0
    %2538 = vmatpush.msra.mxu0 0.0
    %2539 = vmatpush.msra.mxu0 0.0
    %2540 = vmatpush.msra.mxu0 0.0
    %2541 = vmatpush.msra.mxu0 0.0
    %2542 = vmatpush.msra.mxu0 0.0
    %2543 = vmatpush.msra.mxu0 0.0
    %2544 = vmatpush.msra.mxu0 0.0
    %2545 = vmatpush.msra.mxu0 0.0
    %2546 = vmatpush.msra.mxu0 0.0
    %2547 = vmatpush.msra.mxu0 0.0
    %2548 = vmatpush.msra.mxu0 0.0
    %2549 = vmatpush.msra.mxu0 0.0
    %2550 = vmatpush.msra.mxu0 0.0
    %2551 = vmatpush.msra.mxu0 0.0
    %2552 = vmatpush.msra.mxu0 %v2372
    %2553 = vmatmul.f32.gmra.mxu0 %v2535
    %v2554 = vpop.f32.mrf.mxu0
    %v2555 = vadd.f32 0.0, %v2554
    %2556 = vdwg.mxu0
    %v2557 = vadd.f32 %v2394, %v2417
    %v2558 = vadd.f32 %v2486, %v2509
    %v2559 = vadd.f32 %v2557, %v2440
    %v2560 = vadd.f32 %v2558, %v2532
    %v2561 = vadd.f32 %v2559, %v2463
    %v2562 = vadd.f32 %v2560, %v2555
    %v2563 = vld [vmem:[%s3] sm:$0xff]
    %v2564 = vld [vmem:[%s3 + $0x8] sm:$0xff]
    %v2565 = vadd.f32 %v2563, %v2561
    %v2566 = vadd.f32 %v2564, %v2562
    %v2567 = vsel %vm119, %v2565, 0.0
    %2568 = vadd.xlane.f32.xlu0 %v2567
    %v2569 = vpop.xlane.xlu0 %2568
    %v2570 = vsel %vm119, %v2566, 0.0
    %2571 = vadd.xlane.f32.xlu0 %v2570
    %v2572 = vpop.xlane.xlu0 %2571
    %v2573 = vrcp.pop 32.0
    %v2574 = vmul.f32 32.0, %v2573
    %v2575 = vsub.f32 1.0, %v2574
    %v2576 = vmul.f32 %v2573, %v2575
    %v2577 = vadd.f32 %v2573, %v2576
    %vm2578 = vweird.f32 %v2573
    %v2579 = vsel %vm2578, %v2573, %v2577
    %v2580 = vmul.f32 %v2569, %v2579
    %v2581 = vmul.f32 %v2572, %v2579
    %v2582 = vsub.f32 %v2565, %v2580
    %v2583 = vsub.f32 %v2566, %v2581
    %v2584 = vmul.f32 %v2582, %v2582
    %v2585 = vmul.f32 %v2583, %v2583
    %v2586 = vsel %vm119, %v2584, 0.0
    %2587 = vadd.xlane.f32.xlu0 %v2586
    %v2588 = vpop.xlane.xlu0 %2587
    %v2589 = vsel %vm119, %v2585, 0.0
    %2590 = vadd.xlane.f32.xlu0 %v2589
    %v2591 = vpop.xlane.xlu0 %2590
    %v2592 = vmul.f32 %v2588, %v2579
    %v2593 = vmul.f32 %v2591, %v2579
    %v2594 = vadd.f32 %v2592, 1e-05
    %v2595 = vadd.f32 %v2593, 1e-05
    %v2596 = vrsqrt.pop %v2594
    %v2597 = vmul.f32 %v2596, %v2594
    %v2598 = vmul.f32 %v2597, %v2596
    %v2599 = vmul.f32 0.5, %v2598
    %v2600 = vsub.f32 1.5, %v2599
    %v2601 = vmul.f32 %v2596, %v2600
    %vm2602 = vweird.f32 %v2594
    %vm2603 = vweird.f32 %v2596
    %vm2604 = vmor %vm2602, %vm2603
    %v2605 = vsel %vm2604, %v2596, %v2601
    %v2606 = vrsqrt.pop %v2595
    %v2607 = vmul.f32 %v2606, %v2595
    %v2608 = vmul.f32 %v2607, %v2606
    %v2609 = vmul.f32 0.5, %v2608
    %v2610 = vsub.f32 1.5, %v2609
    %v2611 = vmul.f32 %v2606, %v2610
    %vm2612 = vweird.f32 %v2595
    %vm2613 = vweird.f32 %v2606
    %vm2614 = vmor %vm2612, %vm2613
    %v2615 = vsel %vm2614, %v2606, %v2611
    %v2616 = vmul.f32 %v2582, %v2605
    %v2617 = vmul.f32 %v2583, %v2615
    %v2618 = vld [vmem:[%s11] sm:$0x1]
    %v2620 = vperm.slane %v2618, 0
    %v2622 = vmul.f32 %v2616, %v2620
    %v2623 = vmul.f32 %v2617, %v2620
    %v2624 = vld [vmem:[%s12] sm:$0x1]
    %v2626 = vperm.slane %v2624, 0
    %v2628 = vadd.f32 %v2622, %v2626
    %v2629 = vadd.f32 %v2623, %v2626
    %v2630 = vld [vmem:[%s13] sm:$0xff]
    %v2631 = vld [vmem:[%s13 + $0x8] sm:$0xff]
    %v2632 = vld [vmem:[%s13 + $0x10] sm:$0xff]
    %v2633 = vld [vmem:[%s13 + $0x18] sm:$0xff]
    %v2634 = vld [vmem:[%s14] sm:$0x1]
    %v2636 = vperm.slane %v2634, 0
    %v2639 = vsel %vm119, %v2628, 0
    %v2642 = vsel %vm119, %v2629, 0
    %2644 = vmatpush.msra.mxu0 0.0
    %2645 = vmatpush.msra.mxu0 0.0
    %2646 = vmatpush.msra.mxu0 0.0
    %2647 = vmatpush.msra.mxu0 0.0
    %2648 = vmatpush.msra.mxu0 0.0
    %2649 = vmatpush.msra.mxu0 0.0
    %2650 = vmatpush.msra.mxu0 0.0
    %2651 = vmatpush.msra.mxu0 0.0
    %2652 = vmatpush.msra.mxu0 0.0
    %2653 = vmatpush.msra.mxu0 0.0
    %2654 = vmatpush.msra.mxu0 0.0
    %2655 = vmatpush.msra.mxu0 0.0
    %2656 = vmatpush.msra.mxu0 %v2633
    %2657 = vmatpush.msra.mxu0 %v2632
    %2658 = vmatpush.msra.mxu0 %v2631
    %2659 = vmatpush.msra.mxu0 %v2630
    %2660 = vmatmul.f32.gmra.mxu0 %v2639
    %v2661 = vpop.f32.mrf.mxu0
    %v2662 = vadd.f32 %v2636, %v2661
    %2663 = vmatmul.f32.gmra.mxu0 %v2642
    %v2664 = vpop.f32.mrf.mxu0
    %v2665 = vadd.f32 %v2636, %v2664
    %2666 = vdwg.mxu0
    %v2667 = vmax.f32 %v2662, 0.0
    %v2668 = vmax.f32 %v2665, 0.0
    %v2669 = vld [vmem:[%s15] sm:$0xff]
    %v2670 = vld [vmem:[%s15 + $0x8] sm:$0xff]
    %v2671 = vld [vmem:[%s15 + $0x10] sm:$0xff]
    %v2672 = vld [vmem:[%s15 + $0x18] sm:$0xff]
    %v2673 = vld [vmem:[%s15 + $0x20] sm:$0xff]
    %v2674 = vld [vmem:[%s15 + $0x28] sm:$0xff]
    %v2675 = vld [vmem:[%s15 + $0x30] sm:$0xff]
    %v2676 = vld [vmem:[%s15 + $0x38] sm:$0xff]
    %v2677 = vld [vmem:[%s16] sm:$0x1]
    %v2679 = vperm.slane %v2677, 0
    %vm2681 = vcmask 523264
    %v2683 = vsel %vm2681, %v2667, 0
    %v2686 = vsel %vm2681, %v2668, 0
    %2688 = vmatpush.msra.mxu0 0.0
    %2689 = vmatpush.msra.mxu0 0.0
    %2690 = vmatpush.msra.mxu0 0.0
    %2691 = vmatpush.msra.mxu0 0.0
    %2692 = vmatpush.msra.mxu0 0.0
    %2693 = vmatpush.msra.mxu0 0.0
    %2694 = vmatpush.msra.mxu0 0.0
    %2695 = vmatpush.msra.mxu0 0.0
    %2696 = vmatpush.msra.mxu0 %v2676
    %2697 = vmatpush.msra.mxu0 %v2675
    %2698 = vmatpush.msra.mxu0 %v2674
    %2699 = vmatpush.msra.mxu0 %v2673
    %2700 = vmatpush.msra.mxu0 %v2672
    %2701 = vmatpush.msra.mxu0 %v2671
    %2702 = vmatpush.msra.mxu0 %v2670
    %2703 = vmatpush.msra.mxu0 %v2669
    %2704 = vmatmul.f32.gmra.mxu0 %v2683
    %v2705 = vpop.f32.mrf.mxu0
    %v2706 = vadd.f32 %v2679, %v2705
    %2707 = vmatmul.f32.gmra.mxu0 %v2686
    %v2708 = vpop.f32.mrf.mxu0
    %v2709 = vadd.f32 %v2679, %v2708
    %2710 = vdwg.mxu0
    %v2711 = vadd.f32 %v2628, %v2706
    %v2712 = vadd.f32 %v2629, %v2709
    %v2713 = vsel %vm119, %v2711, 0.0
    %2714 = vadd.xlane.f32.xlu0 %v2713
    %v2715 = vpop.xlane.xlu0 %2714
    %v2716 = vsel %vm119, %v2712, 0.0
    %2717 = vadd.xlane.f32.xlu0 %v2716
    %v2718 = vpop.xlane.xlu0 %2717
    %v2719 = vmul.f32 %v2715, %v2579
    %v2720 = vmul.f32 %v2718, %v2579
    %v2721 = vsub.f32 %v2711, %v2719
    %v2722 = vsub.f32 %v2712, %v2720
    %v2723 = vmul.f32 %v2721, %v2721
    %v2724 = vmul.f32 %v2722, %v2722
    %v2725 = vsel %vm119, %v2723, 0.0
    %2726 = vadd.xlane.f32.xlu0 %v2725
    %v2727 = vpop.xlane.xlu0 %2726
    %v2728 = vsel %vm119, %v2724, 0.0
    %2729 = vadd.xlane.f32.xlu0 %v2728
    %v2730 = vpop.xlane.xlu0 %2729
    %v2731 = vmul.f32 %v2727, %v2579
    %v2732 = vmul.f32 %v2730, %v2579
    %v2733 = vadd.f32 %v2731, 1e-05
    %v2734 = vadd.f32 %v2732, 1e-05
    %v2735 = vrsqrt.pop %v2733
    %v2736 = vmul.f32 %v2735, %v2733
    %v2737 = vmul.f32 %v2736, %v2735
    %v2738 = vmul.f32 0.5, %v2737
    %v2739 = vsub.f32 1.5, %v2738
    %v2740 = vmul.f32 %v2735, %v2739
    %vm2741 = vweird.f32 %v2733
    %vm2742 = vweird.f32 %v2735
    %vm2743 = vmor %vm2741, %vm2742
    %v2744 = vsel %vm2743, %v2735, %v2740
    %v2745 = vrsqrt.pop %v2734
    %v2746 = vmul.f32 %v2745, %v2734
    %v2747 = vmul.f32 %v2746, %v2745
    %v2748 = vmul.f32 0.5, %v2747
    %v2749 = vsub.f32 1.5, %v2748
    %v2750 = vmul.f32 %v2745, %v2749
    %vm2751 = vweird.f32 %v2734
    %vm2752 = vweird.f32 %v2745
    %vm2753 = vmor %vm2751, %vm2752
    %v2754 = vsel %vm2753, %v2745, %v2750
    %v2755 = vmul.f32 %v2721, %v2744
    %v2756 = vmul.f32 %v2722, %v2754
    %v2757 = vld [vmem:[%s17] sm:$0x1]
    %v2759 = vperm.slane %v2757, 0
    %v2761 = vmul.f32 %v2755, %v2759
    %v2762 = vmul.f32 %v2756, %v2759
    %v2763 = vld [vmem:[%s18] sm:$0x1]
    %v2765 = vperm.slane %v2763, 0
    %v2767 = vadd.f32 %v2761, %v2765
    %v2768 = vadd.f32 %v2762, %v2765
    %2769 = vst.msk [vmem:[#allocation4] sm:$0xff] %vm119, %v2767
    %2770 = vst.msk [vmem:[#allocation4 + $0x8] sm:$0xff] %vm119, %v2768
    // Predicated region
    $region78: #{tpu_custom_call.1} parent=1 // pred_check
      _
    $region79: #{tpu_custom_call.1} parent=1 // pred_check_branch
      %2772 = sbr.rel (0) target = $region81
    $region80: #{tpu_custom_call.1} parent=1 // pred_region
      %2774 = vsyncadd [#allocation5], 0
      %s2775 = sshll.u32 [#allocation4], 4
      %s2776 = int_to_ptr.vmem [resolvable:$true] %s2775
      %s2777 = sshll.u32 %s19, 4
      %s2778 = int_to_ptr.hbm [resolvable:$true] %s2777
      %2783 = dma.vmem_to_hbm [thread:$0]  %s2776, 256, %s2778, [#allocation5], 128, 128, 8
    $region81: #{tpu_custom_call.1} parent=1 // pred_fallthru
      _
    // Predicated region
    $region82: #{tpu_custom_call.1} parent=1 // pred_check
      _
    $region83: #{tpu_custom_call.1} parent=1 // pred_check_branch
      %2785 = sbr.rel (0) target = $region85
    $region84: #{tpu_custom_call.1} parent=1 // pred_region
      %2787 = dma.done [#allocation5], 256
    $region85: #{tpu_custom_call.1} parent=1 // pred_fallthru
      _
    %2788 = vsyncpa [#allocation5], 1

</llo_original>
